<compile_context>
chip_gen: v7x
topology: tpu7x:2x2x1
jax: 0.10.0
libtpu: 0.0.40
codegen_flags: <defaults>
</compile_context>

<pallas_src>
import functools

import jax
import jax.numpy as jnp
from jax.experimental import pallas as pl
from jax.experimental.pallas import tpu as pltpu

BN_EPS = 1e-5
LANE = 128            # channel (lane) padding granularity
BLOCK_ROWS = 512      # rows (of N*Ho*Wo) per tile in matmul / epilogue passes


def _vmem_limit_bytes():
    """Generation-aware scoped-VMEM limit (~3/4 of physical per-core VMEM)."""
    try:
        cap = getattr(pltpu.get_tpu_info(), "vmem_capacity_bytes", None)
        if cap:
            return int(cap) * 3 // 4
    except Exception:
        pass
    return 48 * 1024 * 1024


VMEM_LIMIT_BYTES = _vmem_limit_bytes()


# ------------------------------ small helpers ------------------------------
def _round_up(x, m):
    return (x + m - 1) // m * m


def _pad_rows_to(a, rows):
    if a.shape[0] == rows:
        return a
    return jnp.pad(a, ((0, rows - a.shape[0]),) + ((0, 0),) * (a.ndim - 1))


def _largest_divisor_leq(n, target):
    t = max(1, min(target, n))
    for c in range(t, 0, -1):
        if n % c == 0:
            return c
    return 1


# --------------------------------- kernels ---------------------------------
def _conv_matmul_stats_kernel(p_ref, w_ref, z_ref, s1_ref, s2_ref):
    """(TM, K)bf16 x (K, TN)bf16 MXU matmul; bf16 z + f32 per-channel stats."""
    acc = jnp.dot(p_ref[...], w_ref[...], preferred_element_type=jnp.float32)
    z_ref[...] = acc.astype(z_ref.dtype)
    s1_ref[...] = jnp.sum(acc, axis=0)[None, None, :]
    s2_ref[...] = jnp.sum(acc * acc, axis=0)[None, None, :]


def _make_conv_taps_stats_kernel(KH, KW, dilation, TH, SUB, Wo, Cin, Cp):
    """Large-Cin path: shifted-window tap loop over a VMEM-resident image.

    The f32 accumulator is processed in (SUB*Wo, Cp) sub-tiles so it stays
    well inside the vreg file across all KH*KW taps (no spills).
    """
    n_sub = TH // SUB

    def kernel(x_ref, w_ref, z_ref, s1_ref, s2_ref):
        h = pl.program_id(1)
        row0 = h * TH
        s1 = jnp.zeros((1, Cp), jnp.float32)
        s2 = jnp.zeros((1, Cp), jnp.float32)
        for sb in range(n_sub):
            acc = jnp.zeros((SUB * Wo, Cp), jnp.float32)
            for i in range(KH):
                for j in range(KW):
                    # TODO(synk): Wo-unaligned reshape may relayout; padding Wo
                    # to a multiple of 8 in the wrapper would remove it.
                    xs = x_ref[0, pl.ds(row0 + sb * SUB + i * dilation, SUB),
                               pl.ds(j * dilation, Wo), :]
                    acc = acc + jnp.dot(xs.reshape(SUB * Wo, Cin),
                                        w_ref[i, j],
                                        preferred_element_type=jnp.float32)
            z_ref[0, pl.ds(sb * SUB, SUB), :, :] = (
                acc.reshape(SUB, Wo, Cp).astype(z_ref.dtype))
            s1 = s1 + jnp.sum(acc, axis=0, keepdims=True)
            s2 = s2 + jnp.sum(acc * acc, axis=0, keepdims=True)
        s1_ref[...] = s1[None, None]
        s2_ref[...] = s2[None, None]

    return kernel


def _make_bn_epilogue_kernel(res_mode, relu):
    """y = z*scale + bias [+ residual] [-> relu].

    res_mode: None | "raw" (plain residual) | "affine" (fused downsample BN:
    residual = rz*rscale + rbias).
    """

    def kernel(*refs):
        if res_mode == "affine":
            z_ref, s_ref, b_ref, rz_ref, rs_ref, rb_ref, o_ref = refs
        elif res_mode == "raw":
            z_ref, s_ref, b_ref, r_ref, o_ref = refs
        else:
            z_ref, s_ref, b_ref, o_ref = refs
        y = z_ref[...].astype(jnp.float32) * s_ref[...] + b_ref[...]
        if res_mode == "affine":
            y = y + (rz_ref[...].astype(jnp.float32) * rs_ref[...] + rb_ref[...])
        elif res_mode == "raw":
            y = y + r_ref[...].astype(jnp.float32)
        if relu:
            y = jnp.maximum(y, 0.0)
        o_ref[...] = y.astype(o_ref.dtype)

    return kernel


# --------------------------- conv pass-1 wrappers ----------------------------
def _im2col(xp, KH, KW, stride, dilation, Ho, Wo):
    """xp: padded NHWC input -> (N*Ho*Wo, KH*KW*Cin) patches (plain XLA)."""
    N, Hp, Wp, Cin = xp.shape
    cols = []
    for i in range(KH):
        for j in range(KW):
            h0 = i * dilation
            w0 = j * dilation
            cols.append(jax.lax.slice(
                xp, (0, h0, w0, 0),
                (N, h0 + (Ho - 1) * stride + 1, w0 + (Wo - 1) * stride + 1, Cin),
                (1, stride, stride, 1)))
    patches = jnp.concatenate(cols, axis=-1)             # (N, Ho, Wo, KH*KW*Cin)
    return patches.reshape(N * Ho * Wo, KH * KW * Cin)


def _conv_stats_im2col(xp, w_p, Ho, Wo, stride, dilation, block_rows):
    """Small-Cin / 1x1 / strided conv: one deep (TM,K)x(K,TN) bf16 matmul."""
    N, Hp, Wp, Cin = xp.shape
    KH, KW, _, Cp = w_p.shape
    K = KH * KW * Cin
    M = N * Ho * Wo

    # Patch matrix built directly in bf16 (halves its HBM round trip).
    patches = _im2col(xp, KH, KW, stride, dilation, Ho, Wo).astype(jnp.bfloat16)
    TM = min(block_rows, _round_up(M, 8))
    Mp = _round_up(M, TM)
    patches = _pad_rows_to(patches, Mp)   # zero rows -> zero conv rows (stats-safe)
    num_m = Mp // TM

    # Channel tiling: MXU-aligned 256-wide tiles for big Cout, else full Cp.
    if Cp > 256:
        TN = 256 if Cp % 256 == 0 else 128
    else:
        TN = Cp
    num_n = Cp // TN

    w2d = w_p.reshape(K, Cp).astype(jnp.bfloat16)

    z, s1, s2 = pl.pallas_call(
        _conv_matmul_stats_kernel,
        grid=(num_m, num_n),
        in_specs=[pl.BlockSpec((TM, K), lambda m, n: (m, 0)),
                  pl.BlockSpec((K, TN), lambda m, n: (0, n))],
        out_specs=[pl.BlockSpec((TM, TN), lambda m, n: (m, n)),
                   pl.BlockSpec((1, 1, TN), lambda m, n: (m, 0, n)),
                   pl.BlockSpec((1, 1, TN), lambda m, n: (m, 0, n))],
        out_shape=[jax.ShapeDtypeStruct((Mp, Cp), jnp.bfloat16),
                   jax.ShapeDtypeStruct((num_m, 1, Cp), jnp.float32),
                   jax.ShapeDtypeStruct((num_m, 1, Cp), jnp.float32)],
        compiler_params=pltpu.CompilerParams(
            dimension_semantics=("parallel", "parallel"),
            vmem_limit_bytes=VMEM_LIMIT_BYTES),
    )(patches, w2d)
    return z, jnp.sum(s1, axis=(0, 1)), jnp.sum(s2, axis=(0, 1))


def _conv_stats_taps(xp, w_p, Ho, Wo, dilation, block_rows):
    """Large-Cin stride-1 conv: tap loop over a VMEM-resident padded image."""
    N, Hp, Wp, Cin = xp.shape
    KH, KW, _, Cp = w_p.shape

    xp = xp.astype(jnp.bfloat16)
    w_p = w_p.astype(jnp.bfloat16)

    # Bound the live f32 accumulator sub-tile (~128 KiB) so it does not spill.
    max_sub_rows = max(1, (32 * 1024) // Cp)
    SUB = _largest_divisor_leq(Ho, max(1, max_sub_rows // max(Wo, 1)))
    th_target = max(SUB, block_rows // max(Wo, 1))
    TH = SUB
    cand = (th_target // SUB) * SUB
    while cand >= SUB:
        if Ho % cand == 0:
            TH = cand
            break
        cand -= SUB
    num_h = Ho // TH

    kernel = _make_conv_taps_stats_kernel(KH, KW, dilation, TH, SUB, Wo, Cin, Cp)
    z, s1, s2 = pl.pallas_call(
        kernel,
        grid=(N, num_h),
        in_specs=[
            # Image and weight block indices are constant over the h axis ->
            # single-buffer them to free VMEM for bigger TH.
            pl.BlockSpec((1, Hp, Wp, Cin), lambda n, h: (n, 0, 0, 0),
                         pipeline_mode=pl.Buffered(1)),
            pl.BlockSpec((KH, KW, Cin, Cp), lambda n, h: (0, 0, 0, 0),
                         pipeline_mode=pl.Buffered(1)),
        ],
        out_specs=[pl.BlockSpec((1, TH, Wo, Cp), lambda n, h: (n, h, 0, 0)),
                   pl.BlockSpec((1, 1, 1, Cp), lambda n, h: (n, h, 0, 0)),
                   pl.BlockSpec((1, 1, 1, Cp), lambda n, h: (n, h, 0, 0))],
        out_shape=[jax.ShapeDtypeStruct((N, Ho, Wo, Cp), jnp.bfloat16),
                   jax.ShapeDtypeStruct((N, num_h, 1, Cp), jnp.float32),
                   jax.ShapeDtypeStruct((N, num_h, 1, Cp), jnp.float32)],
        compiler_params=pltpu.CompilerParams(
            dimension_semantics=("parallel", "parallel"),
            vmem_limit_bytes=VMEM_LIMIT_BYTES),
    )(xp, w_p)
    M = N * Ho * Wo
    return z.reshape(M, Cp), jnp.sum(s1, axis=(0, 1, 2)), jnp.sum(s2, axis=(0, 1, 2))


def conv_bn_stats(x_nhwc, w_hwio, gamma, beta, *, stride=1, dilation=1,
                  padding=0, block_rows=BLOCK_ROWS):
    """Pass 1: conv -> bf16 pre-BN activations + folded BN scale/bias."""
    N, H, W, Cin = x_nhwc.shape
    KH, KW, _, Cout = w_hwio.shape
    Ho = (H + 2 * padding - dilation * (KH - 1) - 1) // stride + 1
    Wo = (W + 2 * padding - dilation * (KW - 1) - 1) // stride + 1
    M = N * Ho * Wo
    Cp = _round_up(Cout, LANE)   # lane-dense channels -> unmasked stores
    pad_c = Cp - Cout

    # TODO(synk): the conv halo is materialized with a wrapper-side jnp.pad
    # (one extra input-sized HBM round trip); overlapping-halo index_maps or a
    # manual halo-window DMA would remove it.
    xp = x_nhwc
    if padding:
        xp = jnp.pad(x_nhwc,
                     ((0, 0), (padding, padding), (padding, padding), (0, 0)))

    w_p = jnp.pad(w_hwio, ((0, 0),) * 3 + ((0, pad_c),)) if pad_c else w_hwio
    gamma_p = jnp.pad(gamma, (0, pad_c)) if pad_c else gamma
    beta_p = jnp.pad(beta, (0, pad_c)) if pad_c else beta

    use_taps = (stride == 1) and (KH * KW > 1) and (Cin >= LANE)
    if use_taps:
        z, s1, s2 = _conv_stats_taps(xp, w_p, Ho, Wo, dilation, block_rows)
    else:
        z, s1, s2 = _conv_stats_im2col(xp, w_p, Ho, Wo, stride, dilation,
                                       block_rows)

    # Fold training-mode BN (biased variance over N*Ho*Wo) into scale/bias.
    mean = s1 / M
    var = jnp.maximum(s2 / M - mean * mean, 0.0)
    scale = gamma_p * jax.lax.rsqrt(var + BN_EPS)
    bias = beta_p - mean * scale
    return z, scale, bias, (N, Ho, Wo, Cout, Cp, M)


def bn_epilogue(z, scale, bias, *, relu, residual=None, out_dtype=jnp.float32,
                block_rows=BLOCK_ROWS):
    """Pass 2: tiled, lane-dense BN epilogue (+ fused residual) (+ ReLU)."""
    Cp = z.shape[1]
    rows_all = z.shape[0]
    if residual is not None:
        rows_all = max(rows_all, residual[1].shape[0])
    TM = min(block_rows, _round_up(rows_all, 8))
    Mp = _round_up(rows_all, TM)
    num_m = Mp // TM

    inputs = [_pad_rows_to(z, Mp), scale.reshape(1, Cp), bias.reshape(1, Cp)]
    in_specs = [pl.BlockSpec((TM, Cp), lambda m: (m, 0)),
                pl.BlockSpec((1, Cp), lambda m: (0, 0)),
                pl.BlockSpec((1, Cp), lambda m: (0, 0))]
    res_mode = None
    if residual is not None:
        if residual[0] == "affine":
            _, rz, rs, rb = residual
            res_mode = "affine"
            inputs += [_pad_rows_to(rz, Mp), rs.reshape(1, Cp), rb.reshape(1, Cp)]
            in_specs += [pl.BlockSpec((TM, Cp), lambda m: (m, 0)),
                         pl.BlockSpec((1, Cp), lambda m: (0, 0)),
                         pl.BlockSpec((1, Cp), lambda m: (0, 0))]
        else:
            _, r = residual
            res_mode = "raw"
            inputs.append(_pad_rows_to(r, Mp))
            in_specs.append(pl.BlockSpec((TM, Cp), lambda m: (m, 0)))

    return pl.pallas_call(
        _make_bn_epilogue_kernel(res_mode, relu),
        grid=(num_m,),
        in_specs=in_specs,
        out_specs=pl.BlockSpec((TM, Cp), lambda m: (m, 0)),
        out_shape=jax.ShapeDtypeStruct((Mp, Cp), out_dtype),
        compiler_params=pltpu.CompilerParams(
            dimension_semantics=("parallel",),
            vmem_limit_bytes=VMEM_LIMIT_BYTES),
    )(*inputs)


def conv_bn(x_nhwc, w_hwio, gamma, beta, *, stride=1, dilation=1, padding=0,
            relu=False, out_dtype=jnp.float32):
    """conv2d (no bias) -> BatchNorm2d (batch stats) [-> ReLU]."""
    z, scale, bias, (N, Ho, Wo, Cout, Cp, M) = conv_bn_stats(
        x_nhwc, w_hwio, gamma, beta, stride=stride, dilation=dilation,
        padding=padding)
    out = bn_epilogue(z, scale, bias, relu=relu, out_dtype=out_dtype)
    return out[:M, :Cout].reshape(N, Ho, Wo, Cout)


# -------------------------- BasicBlock forward pass --------------------------
def init_basic_block_params(key, in_channels, channels, stride):
    """Deterministic synthetic parameters (shapes match BasicBlock.__init__)."""
    expansion = 1
    out_channels = expansion * channels
    ks = jax.random.split(key, 8)

    def conv_w(k, cout, cin, kh, kw):
        w_oihw = jax.random.normal(k, (cout, cin, kh, kw), jnp.float32) * 0.1
        return jnp.transpose(w_oihw, (2, 3, 1, 0))   # OIHW -> HWIO

    def bn_params(kg, kb, c):
        gamma = 1.0 + 0.1 * jax.random.normal(kg, (c,), jnp.float32)
        beta = 0.1 * jax.random.normal(kb, (c,), jnp.float32)
        return gamma, beta

    g1, b1 = bn_params(ks[2], ks[3], channels)
    g2, b2 = bn_params(ks[4], ks[5], channels)
    params = {
        "w1": conv_w(ks[0], channels, in_channels, 3, 3),
        "gamma1": g1, "beta1": b1,
        "w2": conv_w(ks[1], channels, channels, 3, 3),
        "gamma2": g2, "beta2": b2,
        "down_w": None, "down_gamma": None, "down_beta": None,
    }
    if stride != 1 or in_channels != out_channels:
        gd, bd = bn_params(ks[7], ks[7], out_channels)
        params["down_w"] = conv_w(ks[6], out_channels, in_channels, 1, 1)
        params["down_gamma"] = gd
        params["down_beta"] = bd
    return params


def basic_block_forward(x_nchw, params, *, stride=1, dilation=1):
    """Pallas implementation of BasicBlock.forward (input/output NCHW f32)."""
    x = jnp.transpose(x_nchw, (0, 2, 3, 1))          # NCHW -> NHWC

    # out = relu(bn1(conv1(x)))  -- emitted in bf16 to halve inter-stage HBM
    # traffic (conv2 feeds the MXU in bf16 anyway).
    out1 = conv_bn(x, params["w1"], params["gamma1"], params["beta1"],
                   stride=stride, dilation=dilation, padding=dilation,
                   relu=True, out_dtype=jnp.bfloat16)

    # conv2 pass 1: pre-BN activations + folded BN scale/bias.
    z2, scale2, bias2, (N, Ho, Wo, Cout, Cp, M) = conv_bn_stats(
        out1, params["w2"], params["gamma2"], params["beta2"],
        stride=1, dilation=dilation, padding=dilation)

    # Residual path.  Downsample (1x1 conv + BN) is pre-strided in the wrapper
    # and its BN epilogue is fused into conv2's epilogue below.
    if params["down_w"] is not None:
        xs = x[:, ::stride, ::stride, :] if stride != 1 else x
        zd, scaled, biasd, _ = conv_bn_stats(
            xs, params["down_w"], params["down_gamma"], params["down_beta"],
            stride=1, dilation=1, padding=0)
        residual = ("affine", zd, scaled, biasd)
    else:
        res_flat = x.reshape(-1, x.shape[-1])        # native dtype; upcast in-kernel
        pad_c = Cp - res_flat.shape[1]
        if pad_c:
            res_flat = jnp.pad(res_flat, ((0, 0), (0, pad_c)))
        residual = ("raw", res_flat)

    # out = relu(bn2(conv2(out1)) + residual)  -- single fused epilogue.
    out = bn_epilogue(z2, scale2, bias2, relu=True, residual=residual,
                      out_dtype=jnp.float32)
    out = out[:M, :Cout].reshape(N, Ho, Wo, Cout)
    return jnp.transpose(out, (0, 3, 1, 2))           # NHWC -> NCHW


# ----------------------------- pure-JAX reference -----------------------------
def _ref_conv(x_nchw, w_hwio, stride, dilation, padding):
    w_oihw = jnp.transpose(w_hwio, (3, 2, 0, 1))
    return jax.lax.conv_general_dilated(
        x_nchw, w_oihw, window_strides=(stride, stride),
        padding=[(padding, padding), (padding, padding)],
        rhs_dilation=(dilation, dilation),
        dimension_numbers=("NCHW", "OIHW", "NCHW"))


def _ref_bn(x_nchw, gamma, beta):
    mean = jnp.mean(x_nchw, axis=(0, 2, 3), keepdims=True)
    var = jnp.mean((x_nchw - mean) ** 2, axis=(0, 2, 3), keepdims=True)
    y = (x_nchw - mean) * jax.lax.rsqrt(var + BN_EPS)
    return y * gamma.reshape(1, -1, 1, 1) + beta.reshape(1, -1, 1, 1)


def basic_block_reference(x_nchw, params, *, stride=1, dilation=1):
    out = jax.nn.relu(_ref_bn(_ref_conv(x_nchw, params["w1"], stride, dilation,
                                        dilation),
                              params["gamma1"], params["beta1"]))
    out = _ref_bn(_ref_conv(out, params["w2"], 1, dilation, dilation),
                  params["gamma2"], params["beta2"])
    if params["down_w"] is not None:
        res = _ref_bn(_ref_conv(x_nchw, params["down_w"], stride, 1, 0),
                      params["down_gamma"], params["down_beta"])
    else:
        res = x_nchw
    return jax.nn.relu(out + res)


# TODO(synk): the BatchNorm running_mean/running_var update (a training-time
# side effect of nn.BatchNorm2d) is not reproduced; only the forward value is.

if __name__ == "__main__":
    key = jax.random.PRNGKey(0)
    kx, kp = jax.random.split(key)

    # BasicBlock(in_channels=4, channels=8, stride=1, dilation=2) at small
    # shapes (dilation=2 mirrors the OS8 dilated layer4 blocks; in != out
    # channels exercises the fused downsample/residual path).
    in_channels, channels, stride, dilation = 4, 8, 1, 2
    x = jax.random.normal(kx, (2, in_channels, 16, 16), jnp.float32)
    params = init_basic_block_params(kp, in_channels, channels, stride)

    fwd = jax.jit(functools.partial(basic_block_forward,
                                    stride=stride, dilation=dilation))
    out = jax.block_until_ready(fwd(x, params))

    ref = basic_block_reference(x, params, stride=stride, dilation=dilation)
    assert out.shape == ref.shape, (out.shape, ref.shape)
    max_diff = float(jnp.max(jnp.abs(out - ref)))
    # bf16 MXU inputs + bf16 pre-BN activations (f32 accumulation/stats),
    # hence the 3e-2 tolerance.
    assert jnp.allclose(out, ref, atol=3e-2, rtol=3e-2), ("max abs diff:", max_diff)

    print("KERNEL_OK")
</pallas_src>

<mosaic_0001>
module attributes {stable_mosaic.version = 11 : i64} {
  func.func @_conv_matmul_stats_kernel(%arg0: i32, %arg1: i32, %arg2: memref<512x36xbf16, #tpu.memory_space<vmem>>, %arg3: memref<36x128xbf16, #tpu.memory_space<vmem>>, %arg4: memref<512x128xbf16, #tpu.memory_space<vmem>>, %arg5: memref<1x1x128xf32, #tpu.memory_space<vmem>>, %arg6: memref<1x1x128xf32, #tpu.memory_space<vmem>>) attributes {dimension_semantics = [#tpu.dimension_semantics<parallel>, #tpu.dimension_semantics<parallel>], iteration_bounds = array<i64: 1, 1>, scalar_prefetch = 0 : i64, scratch_operands = 0 : i64, tpu.core_type = #tpu.core_type<tc>, window_params = [{transform_indices = @transform_0, window_bounds = array<i64: 512, 36>}, {transform_indices = @transform_1, window_bounds = array<i64: 36, 128>}, {transform_indices = @transform_2, window_bounds = array<i64: 512, 128>}, {transform_indices = @transform_3, window_bounds = array<i64: 1, 1, 128>}, {transform_indices = @transform_4, window_bounds = array<i64: 1, 1, 128>}]} {
    %c0 = arith.constant 0 : index
    %c0_0 = arith.constant 0 : index
    %0 = vector.load %arg2[%c0, %c0_0] : memref<512x36xbf16, #tpu.memory_space<vmem>>, vector<512x36xbf16>
    %c0_1 = arith.constant 0 : index
    %c0_2 = arith.constant 0 : index
    %1 = vector.load %arg3[%c0_1, %c0_2] : memref<36x128xbf16, #tpu.memory_space<vmem>>, vector<36x128xbf16>
    %cst = arith.constant dense<0.000000e+00> : vector<512x128xf32>
    %2 = tpu.matmul %0, %1, %cst {dimension_numbers = #tpu.dot_dimension_numbers<[1], [0], [0], [1], [0, 0, 1, 1], [], []>} : vector<512x36xbf16>, vector<36x128xbf16>, vector<512x128xf32> -> vector<512x128xf32>
    %3 = arith.truncf %2 : vector<512x128xf32> to vector<512x128xbf16>
    %c0_3 = arith.constant 0 : index
    %c0_4 = arith.constant 0 : index
    %4 = vector.load %arg4[%c0_3, %c0_4] : memref<512x128xbf16, #tpu.memory_space<vmem>>, vector<512x128xbf16>
    tpu.vector_store %arg4[%c0_3, %c0_4], %3 {strides = array<i32>} : memref<512x128xbf16, #tpu.memory_space<vmem>>, vector<512x128xbf16>,
    %cst_5 = arith.constant dense<0.000000e+00> : vector<128xf32>
    %5 = vector.multi_reduction <add>, %2, %cst_5 [0] : vector<512x128xf32> to vector<128xf32>
    %6 = vector.shape_cast %5 : vector<128xf32> to vector<1x1x128xf32>
    %c0_6 = arith.constant 0 : index
    %c0_7 = arith.constant 0 : index
    %c0_8 = arith.constant 0 : index
    %7 = vector.load %arg5[%c0_6, %c0_7, %c0_8] : memref<1x1x128xf32, #tpu.memory_space<vmem>>, vector<1x1x128xf32>
    tpu.vector_store %arg5[%c0_6, %c0_7, %c0_8], %6 {strides = array<i32>} : memref<1x1x128xf32, #tpu.memory_space<vmem>>, vector<1x1x128xf32>,
    %8 = arith.mulf %2, %2 : vector<512x128xf32>
    %cst_9 = arith.constant dense<0.000000e+00> : vector<128xf32>
    %9 = vector.multi_reduction <add>, %8, %cst_9 [0] : vector<512x128xf32> to vector<128xf32>
    %10 = vector.shape_cast %9 : vector<128xf32> to vector<1x1x128xf32>
    %c0_10 = arith.constant 0 : index
    %c0_11 = arith.constant 0 : index
    %c0_12 = arith.constant 0 : index
    %11 = vector.load %arg6[%c0_10, %c0_11, %c0_12] : memref<1x1x128xf32, #tpu.memory_space<vmem>>, vector<1x1x128xf32>
    tpu.vector_store %arg6[%c0_10, %c0_11, %c0_12], %10 {strides = array<i32>} : memref<1x1x128xf32, #tpu.memory_space<vmem>>, vector<1x1x128xf32>,
    return
  }
  func.func @transform_0(%arg0: i32, %arg1: i32) -> (i32, i32) {
    %c0_i32 = arith.constant 0 : i32
    %c0_i32_0 = arith.constant 0 : i32
    return %arg0, %c0_i32 : i32, i32
  }
  func.func @transform_1(%arg0: i32, %arg1: i32) -> (i32, i32) {
    %c0_i32 = arith.constant 0 : i32
    %c0_i32_0 = arith.constant 0 : i32
    return %c0_i32, %arg1 : i32, i32
  }
  func.func @transform_2(%arg0: i32, %arg1: i32) -> (i32, i32) {
    %c0_i32 = arith.constant 0 : i32
    return %arg0, %arg1 : i32, i32
  }
  func.func @transform_3(%arg0: i32, %arg1: i32) -> (i32, i32, i32) {
    %c0_i32 = arith.constant 0 : i32
    %c0_i32_0 = arith.constant 0 : i32
    return %arg0, %c0_i32, %arg1 : i32, i32, i32
  }
  func.func @transform_4(%arg0: i32, %arg1: i32) -> (i32, i32, i32) {
    %c0_i32 = arith.constant 0 : i32
    %c0_i32_0 = arith.constant 0 : i32
    return %arg0, %c0_i32, %arg1 : i32, i32, i32
  }
}

module attributes {stable_mosaic.version = 11 : i64} {
  func.func @kernel(%arg0: i32, %arg1: memref<512x128xbf16, #tpu.memory_space<vmem>>, %arg2: memref<1x128xf32, #tpu.memory_space<vmem>>, %arg3: memref<1x128xf32, #tpu.memory_space<vmem>>, %arg4: memref<512x128xbf16, #tpu.memory_space<vmem>>) attributes {dimension_semantics = [#tpu.dimension_semantics<parallel>], iteration_bounds = array<i64: 1>, scalar_prefetch = 0 : i64, scratch_operands = 0 : i64, tpu.core_type = #tpu.core_type<tc>, window_params = [{transform_indices = @transform_0, window_bounds = array<i64: 512, 128>}, {pipeline_mode = #tpu.pipeline_mode<synchronous>, transform_indices = @transform_1, window_bounds = array<i64: 1, 128>}, {pipeline_mode = #tpu.pipeline_mode<synchronous>, transform_indices = @transform_2, window_bounds = array<i64: 1, 128>}, {transform_indices = @transform_3, window_bounds = array<i64: 512, 128>}]} {
    %c0 = arith.constant 0 : index
    %c0_0 = arith.constant 0 : index
    %0 = vector.load %arg1[%c0, %c0_0] : memref<512x128xbf16, #tpu.memory_space<vmem>>, vector<512x128xbf16>
    %1 = arith.extf %0 : vector<512x128xbf16> to vector<512x128xf32>
    %c0_1 = arith.constant 0 : index
    %c0_2 = arith.constant 0 : index
    %2 = vector.load %arg2[%c0_1, %c0_2] : memref<1x128xf32, #tpu.memory_space<vmem>>, vector<1x128xf32>
    %3 = vector.broadcast %2 : vector<1x128xf32> to vector<512x128xf32>
    %4 = arith.mulf %1, %3 : vector<512x128xf32>
    %c0_3 = arith.constant 0 : index
    %c0_4 = arith.constant 0 : index
    %5 = vector.load %arg3[%c0_3, %c0_4] : memref<1x128xf32, #tpu.memory_space<vmem>>, vector<1x128xf32>
    %6 = vector.broadcast %5 : vector<1x128xf32> to vector<512x128xf32>
    %7 = arith.addf %4, %6 : vector<512x128xf32>
    %cst = arith.constant 0.000000e+00 : f32
    %8 = vector.broadcast %cst : f32 to vector<512x128xf32>
    %9 = arith.maximumf %7, %8 : vector<512x128xf32>
    %10 = arith.truncf %9 : vector<512x128xf32> to vector<512x128xbf16>
    %c0_5 = arith.constant 0 : index
    %c0_6 = arith.constant 0 : index
    %11 = vector.load %arg4[%c0_5, %c0_6] : memref<512x128xbf16, #tpu.memory_space<vmem>>, vector<512x128xbf16>
    tpu.vector_store %arg4[%c0_5, %c0_6], %10 {strides = array<i32>} : memref<512x128xbf16, #tpu.memory_space<vmem>>, vector<512x128xbf16>,
    return
  }
  func.func @transform_0(%arg0: i32) -> (i32, i32) {
    %c0_i32 = arith.constant 0 : i32
    %c0_i32_0 = arith.constant 0 : i32
    return %arg0, %c0_i32 : i32, i32
  }
  func.func @transform_1(%arg0: i32) -> (i32, i32) {
    %c0_i32 = arith.constant 0 : i32
    %c0_i32_0 = arith.constant 0 : i32
    %c0_i32_1 = arith.constant 0 : i32
    return %c0_i32, %c0_i32_0 : i32, i32
  }
  func.func @transform_2(%arg0: i32) -> (i32, i32) {
    %c0_i32 = arith.constant 0 : i32
    %c0_i32_0 = arith.constant 0 : i32
    %c0_i32_1 = arith.constant 0 : i32
    return %c0_i32, %c0_i32_0 : i32, i32
  }
  func.func @transform_3(%arg0: i32) -> (i32, i32) {
    %c0_i32 = arith.constant 0 : i32
    %c0_i32_0 = arith.constant 0 : i32
    return %arg0, %c0_i32 : i32, i32
  }
}

module attributes {stable_mosaic.version = 11 : i64} {
  func.func @_conv_matmul_stats_kernel(%arg0: i32, %arg1: i32, %arg2: memref<512x72xbf16, #tpu.memory_space<vmem>>, %arg3: memref<72x128xbf16, #tpu.memory_space<vmem>>, %arg4: memref<512x128xbf16, #tpu.memory_space<vmem>>, %arg5: memref<1x1x128xf32, #tpu.memory_space<vmem>>, %arg6: memref<1x1x128xf32, #tpu.memory_space<vmem>>) attributes {dimension_semantics = [#tpu.dimension_semantics<parallel>, #tpu.dimension_semantics<parallel>], iteration_bounds = array<i64: 1, 1>, scalar_prefetch = 0 : i64, scratch_operands = 0 : i64, tpu.core_type = #tpu.core_type<tc>, window_params = [{transform_indices = @transform_0, window_bounds = array<i64: 512, 72>}, {transform_indices = @transform_1, window_bounds = array<i64: 72, 128>}, {transform_indices = @transform_2, window_bounds = array<i64: 512, 128>}, {transform_indices = @transform_3, window_bounds = array<i64: 1, 1, 128>}, {transform_indices = @transform_4, window_bounds = array<i64: 1, 1, 128>}]} {
    %c0 = arith.constant 0 : index
    %c0_0 = arith.constant 0 : index
    %0 = vector.load %arg2[%c0, %c0_0] : memref<512x72xbf16, #tpu.memory_space<vmem>>, vector<512x72xbf16>
    %c0_1 = arith.constant 0 : index
    %c0_2 = arith.constant 0 : index
    %1 = vector.load %arg3[%c0_1, %c0_2] : memref<72x128xbf16, #tpu.memory_space<vmem>>, vector<72x128xbf16>
    %cst = arith.constant dense<0.000000e+00> : vector<512x128xf32>
    %2 = tpu.matmul %0, %1, %cst {dimension_numbers = #tpu.dot_dimension_numbers<[1], [0], [0], [1], [0, 0, 1, 1], [], []>} : vector<512x72xbf16>, vector<72x128xbf16>, vector<512x128xf32> -> vector<512x128xf32>
    %3 = arith.truncf %2 : vector<512x128xf32> to vector<512x128xbf16>
    %c0_3 = arith.constant 0 : index
    %c0_4 = arith.constant 0 : index
    %4 = vector.load %arg4[%c0_3, %c0_4] : memref<512x128xbf16, #tpu.memory_space<vmem>>, vector<512x128xbf16>
    tpu.vector_store %arg4[%c0_3, %c0_4], %3 {strides = array<i32>} : memref<512x128xbf16, #tpu.memory_space<vmem>>, vector<512x128xbf16>,
    %cst_5 = arith.constant dense<0.000000e+00> : vector<128xf32>
    %5 = vector.multi_reduction <add>, %2, %cst_5 [0] : vector<512x128xf32> to vector<128xf32>
    %6 = vector.shape_cast %5 : vector<128xf32> to vector<1x1x128xf32>
    %c0_6 = arith.constant 0 : index
    %c0_7 = arith.constant 0 : index
    %c0_8 = arith.constant 0 : index
    %7 = vector.load %arg5[%c0_6, %c0_7, %c0_8] : memref<1x1x128xf32, #tpu.memory_space<vmem>>, vector<1x1x128xf32>
    tpu.vector_store %arg5[%c0_6, %c0_7, %c0_8], %6 {strides = array<i32>} : memref<1x1x128xf32, #tpu.memory_space<vmem>>, vector<1x1x128xf32>,
    %8 = arith.mulf %2, %2 : vector<512x128xf32>
    %cst_9 = arith.constant dense<0.000000e+00> : vector<128xf32>
    %9 = vector.multi_reduction <add>, %8, %cst_9 [0] : vector<512x128xf32> to vector<128xf32>
    %10 = vector.shape_cast %9 : vector<128xf32> to vector<1x1x128xf32>
    %c0_10 = arith.constant 0 : index
    %c0_11 = arith.constant 0 : index
    %c0_12 = arith.constant 0 : index
    %11 = vector.load %arg6[%c0_10, %c0_11, %c0_12] : memref<1x1x128xf32, #tpu.memory_space<vmem>>, vector<1x1x128xf32>
    tpu.vector_store %arg6[%c0_10, %c0_11, %c0_12], %10 {strides = array<i32>} : memref<1x1x128xf32, #tpu.memory_space<vmem>>, vector<1x1x128xf32>,
    return
  }
  func.func @transform_0(%arg0: i32, %arg1: i32) -> (i32, i32) {
    %c0_i32 = arith.constant 0 : i32
    %c0_i32_0 = arith.constant 0 : i32
    return %arg0, %c0_i32 : i32, i32
  }
  func.func @transform_1(%arg0: i32, %arg1: i32) -> (i32, i32) {
    %c0_i32 = arith.constant 0 : i32
    %c0_i32_0 = arith.constant 0 : i32
    return %c0_i32, %arg1 : i32, i32
  }
  func.func @transform_2(%arg0: i32, %arg1: i32) -> (i32, i32) {
    %c0_i32 = arith.constant 0 : i32
    return %arg0, %arg1 : i32, i32
  }
  func.func @transform_3(%arg0: i32, %arg1: i32) -> (i32, i32, i32) {
    %c0_i32 = arith.constant 0 : i32
    %c0_i32_0 = arith.constant 0 : i32
    return %arg0, %c0_i32, %arg1 : i32, i32, i32
  }
  func.func @transform_4(%arg0: i32, %arg1: i32) -> (i32, i32, i32) {
    %c0_i32 = arith.constant 0 : i32
    %c0_i32_0 = arith.constant 0 : i32
    return %arg0, %c0_i32, %arg1 : i32, i32, i32
  }
}

module attributes {stable_mosaic.version = 11 : i64} {
  func.func @_conv_matmul_stats_kernel(%arg0: i32, %arg1: i32, %arg2: memref<512x4xbf16, #tpu.memory_space<vmem>>, %arg3: memref<4x128xbf16, #tpu.memory_space<vmem>>, %arg4: memref<512x128xbf16, #tpu.memory_space<vmem>>, %arg5: memref<1x1x128xf32, #tpu.memory_space<vmem>>, %arg6: memref<1x1x128xf32, #tpu.memory_space<vmem>>) attributes {dimension_semantics = [#tpu.dimension_semantics<parallel>, #tpu.dimension_semantics<parallel>], iteration_bounds = array<i64: 1, 1>, scalar_prefetch = 0 : i64, scratch_operands = 0 : i64, tpu.core_type = #tpu.core_type<tc>, window_params = [{transform_indices = @transform_0, window_bounds = array<i64: 512, 4>}, {transform_indices = @transform_1, window_bounds = array<i64: 4, 128>}, {transform_indices = @transform_2, window_bounds = array<i64: 512, 128>}, {transform_indices = @transform_3, window_bounds = array<i64: 1, 1, 128>}, {transform_indices = @transform_4, window_bounds = array<i64: 1, 1, 128>}]} {
    %c0 = arith.constant 0 : index
    %c0_0 = arith.constant 0 : index
    %0 = vector.load %arg2[%c0, %c0_0] : memref<512x4xbf16, #tpu.memory_space<vmem>>, vector<512x4xbf16>
    %c0_1 = arith.constant 0 : index
    %c0_2 = arith.constant 0 : index
    %1 = vector.load %arg3[%c0_1, %c0_2] : memref<4x128xbf16, #tpu.memory_space<vmem>>, vector<4x128xbf16>
    %cst = arith.constant dense<0.000000e+00> : vector<512x128xf32>
    %2 = tpu.matmul %0, %1, %cst {dimension_numbers = #tpu.dot_dimension_numbers<[1], [0], [0], [1], [0, 0, 1, 1], [], []>} : vector<512x4xbf16>, vector<4x128xbf16>, vector<512x128xf32> -> vector<512x128xf32>
    %3 = arith.truncf %2 : vector<512x128xf32> to vector<512x128xbf16>
    %c0_3 = arith.constant 0 : index
    %c0_4 = arith.constant 0 : index
    %4 = vector.load %arg4[%c0_3, %c0_4] : memref<512x128xbf16, #tpu.memory_space<vmem>>, vector<512x128xbf16>
    tpu.vector_store %arg4[%c0_3, %c0_4], %3 {strides = array<i32>} : memref<512x128xbf16, #tpu.memory_space<vmem>>, vector<512x128xbf16>,
    %cst_5 = arith.constant dense<0.000000e+00> : vector<128xf32>
    %5 = vector.multi_reduction <add>, %2, %cst_5 [0] : vector<512x128xf32> to vector<128xf32>
    %6 = vector.shape_cast %5 : vector<128xf32> to vector<1x1x128xf32>
    %c0_6 = arith.constant 0 : index
    %c0_7 = arith.constant 0 : index
    %c0_8 = arith.constant 0 : index
    %7 = vector.load %arg5[%c0_6, %c0_7, %c0_8] : memref<1x1x128xf32, #tpu.memory_space<vmem>>, vector<1x1x128xf32>
    tpu.vector_store %arg5[%c0_6, %c0_7, %c0_8], %6 {strides = array<i32>} : memref<1x1x128xf32, #tpu.memory_space<vmem>>, vector<1x1x128xf32>,
    %8 = arith.mulf %2, %2 : vector<512x128xf32>
    %cst_9 = arith.constant dense<0.000000e+00> : vector<128xf32>
    %9 = vector.multi_reduction <add>, %8, %cst_9 [0] : vector<512x128xf32> to vector<128xf32>
    %10 = vector.shape_cast %9 : vector<128xf32> to vector<1x1x128xf32>
    %c0_10 = arith.constant 0 : index
    %c0_11 = arith.constant 0 : index
    %c0_12 = arith.constant 0 : index
    %11 = vector.load %arg6[%c0_10, %c0_11, %c0_12] : memref<1x1x128xf32, #tpu.memory_space<vmem>>, vector<1x1x128xf32>
    tpu.vector_store %arg6[%c0_10, %c0_11, %c0_12], %10 {strides = array<i32>} : memref<1x1x128xf32, #tpu.memory_space<vmem>>, vector<1x1x128xf32>,
    return
  }
  func.func @transform_0(%arg0: i32, %arg1: i32) -> (i32, i32) {
    %c0_i32 = arith.constant 0 : i32
    %c0_i32_0 = arith.constant 0 : i32
    return %arg0, %c0_i32 : i32, i32
  }
  func.func @transform_1(%arg0: i32, %arg1: i32) -> (i32, i32) {
    %c0_i32 = arith.constant 0 : i32
    %c0_i32_0 = arith.constant 0 : i32
    return %c0_i32, %arg1 : i32, i32
  }
  func.func @transform_2(%arg0: i32, %arg1: i32) -> (i32, i32) {
    %c0_i32 = arith.constant 0 : i32
    return %arg0, %arg1 : i32, i32
  }
  func.func @transform_3(%arg0: i32, %arg1: i32) -> (i32, i32, i32) {
    %c0_i32 = arith.constant 0 : i32
    %c0_i32_0 = arith.constant 0 : i32
    return %arg0, %c0_i32, %arg1 : i32, i32, i32
  }
  func.func @transform_4(%arg0: i32, %arg1: i32) -> (i32, i32, i32) {
    %c0_i32 = arith.constant 0 : i32
    %c0_i32_0 = arith.constant 0 : i32
    return %arg0, %c0_i32, %arg1 : i32, i32, i32
  }
}

module attributes {stable_mosaic.version = 11 : i64} {
  func.func @kernel(%arg0: i32, %arg1: memref<512x128xbf16, #tpu.memory_space<vmem>>, %arg2: memref<1x128xf32, #tpu.memory_space<vmem>>, %arg3: memref<1x128xf32, #tpu.memory_space<vmem>>, %arg4: memref<512x128xbf16, #tpu.memory_space<vmem>>, %arg5: memref<1x128xf32, #tpu.memory_space<vmem>>, %arg6: memref<1x128xf32, #tpu.memory_space<vmem>>, %arg7: memref<512x128xf32, #tpu.memory_space<vmem>>) attributes {dimension_semantics = [#tpu.dimension_semantics<parallel>], iteration_bounds = array<i64: 1>, scalar_prefetch = 0 : i64, scratch_operands = 0 : i64, tpu.core_type = #tpu.core_type<tc>, window_params = [{transform_indices = @transform_0, window_bounds = array<i64: 512, 128>}, {pipeline_mode = #tpu.pipeline_mode<synchronous>, transform_indices = @transform_1, window_bounds = array<i64: 1, 128>}, {pipeline_mode = #tpu.pipeline_mode<synchronous>, transform_indices = @transform_2, window_bounds = array<i64: 1, 128>}, {transform_indices = @transform_3, window_bounds = array<i64: 512, 128>}, {pipeline_mode = #tpu.pipeline_mode<synchronous>, transform_indices = @transform_4, window_bounds = array<i64: 1, 128>}, {pipeline_mode = #tpu.pipeline_mode<synchronous>, transform_indices = @transform_5, window_bounds = array<i64: 1, 128>}, {transform_indices = @transform_6, window_bounds = array<i64: 512, 128>}]} {
    %c0 = arith.constant 0 : index
    %c0_0 = arith.constant 0 : index
    %0 = vector.load %arg1[%c0, %c0_0] : memref<512x128xbf16, #tpu.memory_space<vmem>>, vector<512x128xbf16>
    %1 = arith.extf %0 : vector<512x128xbf16> to vector<512x128xf32>
    %c0_1 = arith.constant 0 : index
    %c0_2 = arith.constant 0 : index
    %2 = vector.load %arg2[%c0_1, %c0_2] : memref<1x128xf32, #tpu.memory_space<vmem>>, vector<1x128xf32>
    %3 = vector.broadcast %2 : vector<1x128xf32> to vector<512x128xf32>
    %4 = arith.mulf %1, %3 : vector<512x128xf32>
    %c0_3 = arith.constant 0 : index
    %c0_4 = arith.constant 0 : index
    %5 = vector.load %arg3[%c0_3, %c0_4] : memref<1x128xf32, #tpu.memory_space<vmem>>, vector<1x128xf32>
    %6 = vector.broadcast %5 : vector<1x128xf32> to vector<512x128xf32>
    %7 = arith.addf %4, %6 : vector<512x128xf32>
    %c0_5 = arith.constant 0 : index
    %c0_6 = arith.constant 0 : index
    %8 = vector.load %arg4[%c0_5, %c0_6] : memref<512x128xbf16, #tpu.memory_space<vmem>>, vector<512x128xbf16>
    %9 = arith.extf %8 : vector<512x128xbf16> to vector<512x128xf32>
    %c0_7 = arith.constant 0 : index
    %c0_8 = arith.constant 0 : index
    %10 = vector.load %arg5[%c0_7, %c0_8] : memref<1x128xf32, #tpu.memory_space<vmem>>, vector<1x128xf32>
    %11 = vector.broadcast %10 : vector<1x128xf32> to vector<512x128xf32>
    %12 = arith.mulf %9, %11 : vector<512x128xf32>
    %c0_9 = arith.constant 0 : index
    %c0_10 = arith.constant 0 : index
    %13 = vector.load %arg6[%c0_9, %c0_10] : memref<1x128xf32, #tpu.memory_space<vmem>>, vector<1x128xf32>
    %14 = vector.broadcast %13 : vector<1x128xf32> to vector<512x128xf32>
    %15 = arith.addf %12, %14 : vector<512x128xf32>
    %16 = arith.addf %7, %15 : vector<512x128xf32>
    %cst = arith.constant 0.000000e+00 : f32
    %17 = vector.broadcast %cst : f32 to vector<512x128xf32>
    %18 = arith.maximumf %16, %17 : vector<512x128xf32>
    %c0_11 = arith.constant 0 : index
    %c0_12 = arith.constant 0 : index
    %19 = vector.load %arg7[%c0_11, %c0_12] : memref<512x128xf32, #tpu.memory_space<vmem>>, vector<512x128xf32>
    tpu.vector_store %arg7[%c0_11, %c0_12], %18 {strides = array<i32>} : memref<512x128xf32, #tpu.memory_space<vmem>>, vector<512x128xf32>,
    return
  }
  func.func @transform_0(%arg0: i32) -> (i32, i32) {
    %c0_i32 = arith.constant 0 : i32
    %c0_i32_0 = arith.constant 0 : i32
    return %arg0, %c0_i32 : i32, i32
  }
  func.func @transform_1(%arg0: i32) -> (i32, i32) {
    %c0_i32 = arith.constant 0 : i32
    %c0_i32_0 = arith.constant 0 : i32
    %c0_i32_1 = arith.constant 0 : i32
    return %c0_i32, %c0_i32_0 : i32, i32
  }
  func.func @transform_2(%arg0: i32) -> (i32, i32) {
    %c0_i32 = arith.constant 0 : i32
    %c0_i32_0 = arith.constant 0 : i32
    %c0_i32_1 = arith.constant 0 : i32
    return %c0_i32, %c0_i32_0 : i32, i32
  }
  func.func @transform_3(%arg0: i32) -> (i32, i32) {
    %c0_i32 = arith.constant 0 : i32
    %c0_i32_0 = arith.constant 0 : i32
    return %arg0, %c0_i32 : i32, i32
  }
  func.func @transform_4(%arg0: i32) -> (i32, i32) {
    %c0_i32 = arith.constant 0 : i32
    %c0_i32_0 = arith.constant 0 : i32
    %c0_i32_1 = arith.constant 0 : i32
    return %c0_i32, %c0_i32_0 : i32, i32
  }
  func.func @transform_5(%arg0: i32) -> (i32, i32) {
    %c0_i32 = arith.constant 0 : i32
    %c0_i32_0 = arith.constant 0 : i32
    %c0_i32_1 = arith.constant 0 : i32
    return %c0_i32, %c0_i32_0 : i32, i32
  }
  func.func @transform_6(%arg0: i32) -> (i32, i32) {
    %c0_i32 = arith.constant 0 : i32
    %c0_i32_0 = arith.constant 0 : i32
    return %arg0, %c0_i32 : i32, i32
  }
}

</mosaic_0001>

<llo_original>
// kernel: basic_block_forward.6
$region0: #{basic_block_forward.6}
  #allocation0 [shape = 'u32[]', space=smem, size = 0x4, offset = 0x4, fixed_abs, tag = 'smem constant byte address 0x4 - core index']
  #allocation1 [shape = 'u32[144,128]{1,0:T(1,128)}', space=vmem, size = 0x12000, scoped, tag = 'internal scratch']
  %s0 = inlined_call_operand.vmem [shape: bf16[512,128], index: 0, kind: input, shape index: {}]
  %s1 = inlined_call_operand.vmem [shape: f32[1,128], index: 1, kind: input, shape index: {}]
  %s2 = inlined_call_operand.vmem [shape: f32[1,128], index: 2, kind: input, shape index: {}]
  %s3 = inlined_call_operand.vmem [shape: bf16[512,128], index: 3, kind: output, shape index: {}]
  %s4 = sld [smem:[#allocation0]]
  $region22: #{basic_block_forward.6} parent=0
    _
  %s6 = ssub.s32 1, %s4
  %s7 = scalar_select 0, %s6, %s4
  // Predicated region
  $region2: #{basic_block_forward.6} parent=0 // pred_check
    _
  $region3: #{basic_block_forward.6} parent=0 // pred_check_branch
    %9 = sbr.rel (0) target = $region5
  $region4: #{basic_block_forward.6} parent=0 // pred_region
    _
  $region5: #{basic_block_forward.6} parent=0 // pred_fallthru
    _
  // Predicated region
  $region6: #{basic_block_forward.6} parent=0 // pred_check
    _
  $region7: #{basic_block_forward.6} parent=0 // pred_check_branch
    %11 = sbr.rel (0) target = $region9
  $region8: #{basic_block_forward.6} parent=0 // pred_region
    _
  $region9: #{basic_block_forward.6} parent=0 // pred_fallthru
    _
  // Predicated region
  $region10: #{basic_block_forward.6} parent=0 // pred_check
    _
  $region11: #{basic_block_forward.6} parent=0 // pred_check_branch
    %13 = sbr.rel (0) target = $region13
  $region12: #{basic_block_forward.6} parent=0 // pred_region
    _
  $region13: #{basic_block_forward.6} parent=0 // pred_fallthru
    _
  %v14 = vld [vmem:[%s0] sm:$0xf]
  %v15 = vld [vmem:[%s0 + $0x4] sm:$0xf]
  %v16 = vld [vmem:[%s0 + $0x8] sm:$0xf]
  %v17 = vld [vmem:[%s0 + $0xc] sm:$0xf]
  %v18 = vld [vmem:[%s0 + $0x10] sm:$0xf]
  %v19 = vld [vmem:[%s0 + $0x14] sm:$0xf]
  %v20 = vld [vmem:[%s0 + $0x18] sm:$0xf]
  %v21 = vld [vmem:[%s0 + $0x1c] sm:$0xf]
  %v22 = vld [vmem:[%s0 + $0x20] sm:$0xf]
  %v23 = vld [vmem:[%s0 + $0x24] sm:$0xf]
  %v24 = vld [vmem:[%s0 + $0x28] sm:$0xf]
  %v25 = vld [vmem:[%s0 + $0x2c] sm:$0xf]
  %v26 = vld [vmem:[%s0 + $0x30] sm:$0xf]
  %v27 = vld [vmem:[%s0 + $0x34] sm:$0xf]
  %v28 = vld [vmem:[%s0 + $0x38] sm:$0xf]
  %v29 = vld [vmem:[%s0 + $0x3c] sm:$0xf]
  %v30 = vld [vmem:[%s0 + $0x40] sm:$0xf]
  %v31 = vld [vmem:[%s0 + $0x44] sm:$0xf]
  %v32 = vld [vmem:[%s0 + $0x48] sm:$0xf]
  %v33 = vld [vmem:[%s0 + $0x4c] sm:$0xf]
  %v34 = vld [vmem:[%s0 + $0x50] sm:$0xf]
  %v35 = vld [vmem:[%s0 + $0x54] sm:$0xf]
  %v36 = vld [vmem:[%s0 + $0x58] sm:$0xf]
  %v37 = vld [vmem:[%s0 + $0x5c] sm:$0xf]
  %v38 = vld [vmem:[%s0 + $0x60] sm:$0xf]
  %v39 = vld [vmem:[%s0 + $0x64] sm:$0xf]
  %v40 = vld [vmem:[%s0 + $0x68] sm:$0xf]
  %v41 = vld [vmem:[%s0 + $0x6c] sm:$0xf]
  %v42 = vld [vmem:[%s0 + $0x70] sm:$0xf]
  %v43 = vld [vmem:[%s0 + $0x74] sm:$0xf]
  %v44 = vld [vmem:[%s0 + $0x78] sm:$0xf]
  %v45 = vld [vmem:[%s0 + $0x7c] sm:$0xf]
  %v46 = vld [vmem:[%s0 + $0x80] sm:$0xf]
  %v47 = vld [vmem:[%s0 + $0x84] sm:$0xf]
  %v48 = vld [vmem:[%s0 + $0x88] sm:$0xf]
  %v49 = vld [vmem:[%s0 + $0x8c] sm:$0xf]
  %v50 = vld [vmem:[%s0 + $0x90] sm:$0xf]
  %v51 = vld [vmem:[%s0 + $0x94] sm:$0xf]
  %v52 = vld [vmem:[%s0 + $0x98] sm:$0xf]
  %v53 = vld [vmem:[%s0 + $0x9c] sm:$0xf]
  %v54 = vld [vmem:[%s0 + $0xa0] sm:$0xf]
  %v55 = vld [vmem:[%s0 + $0xa4] sm:$0xf]
  %v56 = vld [vmem:[%s0 + $0xa8] sm:$0xf]
  %v57 = vld [vmem:[%s0 + $0xac] sm:$0xf]
  %v58 = vld [vmem:[%s0 + $0xb0] sm:$0xf]
  %v59 = vld [vmem:[%s0 + $0xb4] sm:$0xf]
  %v60 = vld [vmem:[%s0 + $0xb8] sm:$0xf]
  %v61 = vld [vmem:[%s0 + $0xbc] sm:$0xf]
  %v62 = vld [vmem:[%s0 + $0xc0] sm:$0xf]
  %v63 = vld [vmem:[%s0 + $0xc4] sm:$0xf]
  %v64 = vld [vmem:[%s0 + $0xc8] sm:$0xf]
  %v65 = vld [vmem:[%s0 + $0xcc] sm:$0xf]
  %v66 = vld [vmem:[%s0 + $0xd0] sm:$0xf]
  %v67 = vld [vmem:[%s0 + $0xd4] sm:$0xf]
  %v68 = vld [vmem:[%s0 + $0xd8] sm:$0xf]
  %v69 = vld [vmem:[%s0 + $0xdc] sm:$0xf]
  %v70 = vld [vmem:[%s0 + $0xe0] sm:$0xf]
  %v71 = vld [vmem:[%s0 + $0xe4] sm:$0xf]
  %v72 = vld [vmem:[%s0 + $0xe8] sm:$0xf]
  %v73 = vld [vmem:[%s0 + $0xec] sm:$0xf]
  %v74 = vld [vmem:[%s0 + $0xf0] sm:$0xf]
  %v75 = vld [vmem:[%s0 + $0xf4] sm:$0xf]
  %v76 = vld [vmem:[%s0 + $0xf8] sm:$0xf]
  %v77 = vld [vmem:[%s0 + $0xfc] sm:$0xf]
  %v78 = vunpack.c.l.bf16 %v14
  %v79 = vunpack.c.l.bf16 %v15
  %v80 = vunpack.c.l.bf16 %v16
  %v81 = vunpack.c.l.bf16 %v17
  %v82 = vunpack.c.l.bf16 %v18
  %v83 = vunpack.c.l.bf16 %v19
  %v84 = vunpack.c.l.bf16 %v20
  %v85 = vunpack.c.l.bf16 %v21
  %v86 = vunpack.c.l.bf16 %v22
  %v87 = vunpack.c.l.bf16 %v23
  %v88 = vunpack.c.l.bf16 %v24
  %v89 = vunpack.c.l.bf16 %v25
  %v90 = vunpack.c.l.bf16 %v26
  %v91 = vunpack.c.l.bf16 %v27
  %v92 = vunpack.c.l.bf16 %v28
  %v93 = vunpack.c.l.bf16 %v29
  %v94 = vunpack.c.l.bf16 %v30
  %v95 = vunpack.c.l.bf16 %v31
  %v96 = vunpack.c.l.bf16 %v32
  %v97 = vunpack.c.l.bf16 %v33
  %v98 = vunpack.c.l.bf16 %v34
  %v99 = vunpack.c.l.bf16 %v35
  %v100 = vunpack.c.l.bf16 %v36
  %v101 = vunpack.c.l.bf16 %v37
  %v102 = vunpack.c.l.bf16 %v38
  %v103 = vunpack.c.l.bf16 %v39
  %v104 = vunpack.c.l.bf16 %v40
  %v105 = vunpack.c.l.bf16 %v41
  %v106 = vunpack.c.l.bf16 %v42
  %v107 = vunpack.c.l.bf16 %v43
  %v108 = vunpack.c.l.bf16 %v44
  %v109 = vunpack.c.l.bf16 %v45
  %v110 = vunpack.c.l.bf16 %v46
  %v111 = vunpack.c.l.bf16 %v47
  %v112 = vunpack.c.l.bf16 %v48
  %v113 = vunpack.c.l.bf16 %v49
  %v114 = vunpack.c.l.bf16 %v50
  %v115 = vunpack.c.l.bf16 %v51
  %v116 = vunpack.c.l.bf16 %v52
  %v117 = vunpack.c.l.bf16 %v53
  %v118 = vunpack.c.l.bf16 %v54
  %v119 = vunpack.c.l.bf16 %v55
  %v120 = vunpack.c.l.bf16 %v56
  %v121 = vunpack.c.l.bf16 %v57
  %v122 = vunpack.c.l.bf16 %v58
  %v123 = vunpack.c.l.bf16 %v59
  %v124 = vunpack.c.l.bf16 %v60
  %v125 = vunpack.c.l.bf16 %v61
  %v126 = vunpack.c.l.bf16 %v62
  %v127 = vunpack.c.l.bf16 %v63
  %v128 = vunpack.c.l.bf16 %v64
  %v129 = vunpack.c.l.bf16 %v65
  %v130 = vunpack.c.l.bf16 %v66
  %v131 = vunpack.c.l.bf16 %v67
  %v132 = vunpack.c.l.bf16 %v68
  %v133 = vunpack.c.l.bf16 %v69
  %v134 = vunpack.c.l.bf16 %v70
  %v135 = vunpack.c.l.bf16 %v71
  %v136 = vunpack.c.l.bf16 %v72
  %v137 = vunpack.c.l.bf16 %v73
  %v138 = vunpack.c.l.bf16 %v74
  %v139 = vunpack.c.l.bf16 %v75
  %v140 = vunpack.c.l.bf16 %v76
  %v141 = vunpack.c.l.bf16 %v77
  %v142 = vld [vmem:[%s1] sm:$0x1]
  %v144 = vlaneseq
  %v145 = vshrl.u32 %v144, 7
  %v146 = vsub.s32 0, %v145
  %v147 = vrot.slane %v142, %v146
  %v149 = vmul.f32 %v78, %v147
  %v150 = vmul.f32 %v79, %v147
  %v151 = vmul.f32 %v80, %v147
  %v152 = vmul.f32 %v81, %v147
  %v153 = vmul.f32 %v82, %v147
  %v154 = vmul.f32 %v83, %v147
  %v155 = vmul.f32 %v84, %v147
  %v156 = vmul.f32 %v85, %v147
  %v157 = vmul.f32 %v86, %v147
  %v158 = vmul.f32 %v87, %v147
  %v159 = vmul.f32 %v88, %v147
  %v160 = vmul.f32 %v89, %v147
  %v161 = vmul.f32 %v90, %v147
  %v162 = vmul.f32 %v91, %v147
  %v163 = vmul.f32 %v92, %v147
  %v164 = vmul.f32 %v93, %v147
  %v165 = vmul.f32 %v94, %v147
  %v166 = vmul.f32 %v95, %v147
  %v167 = vmul.f32 %v96, %v147
  %v168 = vmul.f32 %v97, %v147
  %v169 = vmul.f32 %v98, %v147
  %v170 = vmul.f32 %v99, %v147
  %v171 = vmul.f32 %v100, %v147
  %v172 = vmul.f32 %v101, %v147
  %v173 = vmul.f32 %v102, %v147
  %v174 = vmul.f32 %v103, %v147
  %v175 = vmul.f32 %v104, %v147
  %v176 = vmul.f32 %v105, %v147
  %v177 = vmul.f32 %v106, %v147
  %v178 = vmul.f32 %v107, %v147
  %v179 = vmul.f32 %v108, %v147
  %v180 = vmul.f32 %v109, %v147
  %v181 = vmul.f32 %v110, %v147
  %v182 = vmul.f32 %v111, %v147
  %v183 = vmul.f32 %v112, %v147
  %v184 = vmul.f32 %v113, %v147
  %v185 = vmul.f32 %v114, %v147
  %v186 = vmul.f32 %v115, %v147
  %v187 = vmul.f32 %v116, %v147
  %v188 = vmul.f32 %v117, %v147
  %v189 = vmul.f32 %v118, %v147
  %v190 = vmul.f32 %v119, %v147
  %v191 = vmul.f32 %v120, %v147
  %v192 = vmul.f32 %v121, %v147
  %v193 = vmul.f32 %v122, %v147
  %v194 = vmul.f32 %v123, %v147
  %v195 = vmul.f32 %v124, %v147
  %v196 = vmul.f32 %v125, %v147
  %v197 = vmul.f32 %v126, %v147
  %v198 = vmul.f32 %v127, %v147
  %v199 = vmul.f32 %v128, %v147
  %v200 = vmul.f32 %v129, %v147
  %v201 = vmul.f32 %v130, %v147
  %v202 = vmul.f32 %v131, %v147
  %v203 = vmul.f32 %v132, %v147
  %v204 = vmul.f32 %v133, %v147
  %v205 = vmul.f32 %v134, %v147
  %v206 = vmul.f32 %v135, %v147
  %v207 = vmul.f32 %v136, %v147
  %v208 = vmul.f32 %v137, %v147
  %v209 = vmul.f32 %v138, %v147
  %v210 = vmul.f32 %v139, %v147
  %v211 = vmul.f32 %v140, %v147
  %v212 = vmul.f32 %v141, %v147
  %v213 = vld [vmem:[%s2] sm:$0x1]
  %v215 = vlaneseq
  %v216 = vshrl.u32 %v215, 7
  %v217 = vsub.s32 0, %v216
  %v218 = vrot.slane %v213, %v217
  %v220 = vadd.f32 %v149, %v218
  %v221 = vadd.f32 %v150, %v218
  %v222 = vadd.f32 %v151, %v218
  %v223 = vadd.f32 %v152, %v218
  %v224 = vadd.f32 %v153, %v218
  %v225 = vadd.f32 %v154, %v218
  %v226 = vadd.f32 %v155, %v218
  %v227 = vadd.f32 %v156, %v218
  %v228 = vadd.f32 %v157, %v218
  %v229 = vadd.f32 %v158, %v218
  %v230 = vadd.f32 %v159, %v218
  %v231 = vadd.f32 %v160, %v218
  %v232 = vadd.f32 %v161, %v218
  %v233 = vadd.f32 %v162, %v218
  %v234 = vadd.f32 %v163, %v218
  %v235 = vadd.f32 %v164, %v218
  %v236 = vadd.f32 %v165, %v218
  %v237 = vadd.f32 %v166, %v218
  %v238 = vadd.f32 %v167, %v218
  %v239 = vadd.f32 %v168, %v218
  %v240 = vadd.f32 %v169, %v218
  %v241 = vadd.f32 %v170, %v218
  %v242 = vadd.f32 %v171, %v218
  %v243 = vadd.f32 %v172, %v218
  %v244 = vadd.f32 %v173, %v218
  %v245 = vadd.f32 %v174, %v218
  %v246 = vadd.f32 %v175, %v218
  %v247 = vadd.f32 %v176, %v218
  %v248 = vadd.f32 %v177, %v218
  %v249 = vadd.f32 %v178, %v218
  %v250 = vadd.f32 %v179, %v218
  %v251 = vadd.f32 %v180, %v218
  %v252 = vadd.f32 %v181, %v218
  %v253 = vadd.f32 %v182, %v218
  %v254 = vadd.f32 %v183, %v218
  %v255 = vadd.f32 %v184, %v218
  %v256 = vadd.f32 %v185, %v218
  %v257 = vadd.f32 %v186, %v218
  %v258 = vadd.f32 %v187, %v218
  %v259 = vadd.f32 %v188, %v218
  %v260 = vadd.f32 %v189, %v218
  %v261 = vadd.f32 %v190, %v218
  %v262 = vadd.f32 %v191, %v218
  %v263 = vadd.f32 %v192, %v218
  %v264 = vadd.f32 %v193, %v218
  %v265 = vadd.f32 %v194, %v218
  %v266 = vadd.f32 %v195, %v218
  %v267 = vadd.f32 %v196, %v218
  %v268 = vadd.f32 %v197, %v218
  %v269 = vadd.f32 %v198, %v218
  %v270 = vadd.f32 %v199, %v218
  %v271 = vadd.f32 %v200, %v218
  %v272 = vadd.f32 %v201, %v218
  %v273 = vadd.f32 %v202, %v218
  %v274 = vadd.f32 %v203, %v218
  %v275 = vadd.f32 %v204, %v218
  %v276 = vadd.f32 %v205, %v218
  %v277 = vadd.f32 %v206, %v218
  %v278 = vadd.f32 %v207, %v218
  %v279 = vadd.f32 %v208, %v218
  %v280 = vadd.f32 %v209, %v218
  %v281 = vadd.f32 %v210, %v218
  %v282 = vadd.f32 %v211, %v218
  %v283 = vadd.f32 %v212, %v218
  %v284 = vmax.f32 %v220, 0.0
  %v285 = vmax.f32 %v221, 0.0
  %v286 = vmax.f32 %v222, 0.0
  %v287 = vmax.f32 %v223, 0.0
  %v288 = vmax.f32 %v224, 0.0
  %v289 = vmax.f32 %v225, 0.0
  %v290 = vmax.f32 %v226, 0.0
  %v291 = vmax.f32 %v227, 0.0
  %v292 = vmax.f32 %v228, 0.0
  %v293 = vmax.f32 %v229, 0.0
  %v294 = vmax.f32 %v230, 0.0
  %v295 = vmax.f32 %v231, 0.0
  %v296 = vmax.f32 %v232, 0.0
  %v297 = vmax.f32 %v233, 0.0
  %v298 = vmax.f32 %v234, 0.0
  %v299 = vmax.f32 %v235, 0.0
  %v300 = vmax.f32 %v236, 0.0
  %v301 = vmax.f32 %v237, 0.0
  %v302 = vmax.f32 %v238, 0.0
  %v303 = vmax.f32 %v239, 0.0
  %v304 = vmax.f32 %v240, 0.0
  %v305 = vmax.f32 %v241, 0.0
  %v306 = vmax.f32 %v242, 0.0
  %v307 = vmax.f32 %v243, 0.0
  %v308 = vmax.f32 %v244, 0.0
  %v309 = vmax.f32 %v245, 0.0
  %v310 = vmax.f32 %v246, 0.0
  %v311 = vmax.f32 %v247, 0.0
  %v312 = vmax.f32 %v248, 0.0
  %v313 = vmax.f32 %v249, 0.0
  %v314 = vmax.f32 %v250, 0.0
  %v315 = vmax.f32 %v251, 0.0
  %v316 = vmax.f32 %v252, 0.0
  %v317 = vmax.f32 %v253, 0.0
  %v318 = vmax.f32 %v254, 0.0
  %v319 = vmax.f32 %v255, 0.0
  %v320 = vmax.f32 %v256, 0.0
  %v321 = vmax.f32 %v257, 0.0
  %v322 = vmax.f32 %v258, 0.0
  %v323 = vmax.f32 %v259, 0.0
  %v324 = vmax.f32 %v260, 0.0
  %v325 = vmax.f32 %v261, 0.0
  %v326 = vmax.f32 %v262, 0.0
  %v327 = vmax.f32 %v263, 0.0
  %v328 = vmax.f32 %v264, 0.0
  %v329 = vmax.f32 %v265, 0.0
  %v330 = vmax.f32 %v266, 0.0
  %v331 = vmax.f32 %v267, 0.0
  %v332 = vmax.f32 %v268, 0.0
  %v333 = vmax.f32 %v269, 0.0
  %v334 = vmax.f32 %v270, 0.0
  %v335 = vmax.f32 %v271, 0.0
  %v336 = vmax.f32 %v272, 0.0
  %v337 = vmax.f32 %v273, 0.0
  %v338 = vmax.f32 %v274, 0.0
  %v339 = vmax.f32 %v275, 0.0
  %v340 = vmax.f32 %v276, 0.0
  %v341 = vmax.f32 %v277, 0.0
  %v342 = vmax.f32 %v278, 0.0
  %v343 = vmax.f32 %v279, 0.0
  %v344 = vmax.f32 %v280, 0.0
  %v345 = vmax.f32 %v281, 0.0
  %v346 = vmax.f32 %v282, 0.0
  %v347 = vmax.f32 %v283, 0.0
  %v348 = vpack.c.bf16 %v285, %v284
  %v349 = vpack.c.bf16 %v287, %v286
  %v350 = vpack.c.bf16 %v289, %v288
  %v351 = vpack.c.bf16 %v291, %v290
  %v352 = vpack.c.bf16 %v293, %v292
  %v353 = vpack.c.bf16 %v295, %v294
  %v354 = vpack.c.bf16 %v297, %v296
  %v355 = vpack.c.bf16 %v299, %v298
  %v356 = vpack.c.bf16 %v301, %v300
  %v357 = vpack.c.bf16 %v303, %v302
  %v358 = vpack.c.bf16 %v305, %v304
  %v359 = vpack.c.bf16 %v307, %v306
  %v360 = vpack.c.bf16 %v309, %v308
  %v361 = vpack.c.bf16 %v311, %v310
  %v362 = vpack.c.bf16 %v313, %v312
  %v363 = vpack.c.bf16 %v315, %v314
  %v364 = vpack.c.bf16 %v317, %v316
  %v365 = vpack.c.bf16 %v319, %v318
  %v366 = vpack.c.bf16 %v321, %v320
  %v367 = vpack.c.bf16 %v323, %v322
  %v368 = vpack.c.bf16 %v325, %v324
  %v369 = vpack.c.bf16 %v327, %v326
  %v370 = vpack.c.bf16 %v329, %v328
  %v371 = vpack.c.bf16 %v331, %v330
  %v372 = vpack.c.bf16 %v333, %v332
  %v373 = vpack.c.bf16 %v335, %v334
  %v374 = vpack.c.bf16 %v337, %v336
  %v375 = vpack.c.bf16 %v339, %v338
  %v376 = vpack.c.bf16 %v341, %v340
  %v377 = vpack.c.bf16 %v343, %v342
  %v378 = vpack.c.bf16 %v345, %v344
  %v379 = vpack.c.bf16 %v347, %v346
  %v412 = vunpack.c.l.b16 %v348
  %v413 = vunpack.c.h.b16 %v348
  %v414 = vunpack.c.l.b16 %v349
  %v415 = vunpack.c.h.b16 %v349
  %v416 = vunpack.c.l.b16 %v350
  %v417 = vunpack.c.h.b16 %v350
  %v418 = vunpack.c.l.b16 %v351
  %v419 = vunpack.c.h.b16 %v351
  %v420 = vunpack.c.l.b16 %v352
  %v421 = vunpack.c.h.b16 %v352
  %v422 = vunpack.c.l.b16 %v353
  %v423 = vunpack.c.h.b16 %v353
  %v424 = vunpack.c.l.b16 %v354
  %v425 = vunpack.c.h.b16 %v354
  %v426 = vunpack.c.l.b16 %v355
  %v427 = vunpack.c.h.b16 %v355
  %v428 = vunpack.c.l.b16 %v356
  %v429 = vunpack.c.h.b16 %v356
  %v430 = vunpack.c.l.b16 %v357
  %v431 = vunpack.c.h.b16 %v357
  %v432 = vunpack.c.l.b16 %v358
  %v433 = vunpack.c.h.b16 %v358
  %v434 = vunpack.c.l.b16 %v359
  %v435 = vunpack.c.h.b16 %v359
  %v436 = vunpack.c.l.b16 %v360
  %v437 = vunpack.c.h.b16 %v360
  %v438 = vunpack.c.l.b16 %v361
  %v439 = vunpack.c.h.b16 %v361
  %v440 = vunpack.c.l.b16 %v362
  %v441 = vunpack.c.h.b16 %v362
  %v442 = vunpack.c.l.b16 %v363
  %v443 = vunpack.c.h.b16 %v363
  %v444 = vunpack.c.l.b16 %v364
  %v445 = vunpack.c.h.b16 %v364
  %v446 = vunpack.c.l.b16 %v365
  %v447 = vunpack.c.h.b16 %v365
  %v448 = vunpack.c.l.b16 %v366
  %v449 = vunpack.c.h.b16 %v366
  %v450 = vunpack.c.l.b16 %v367
  %v451 = vunpack.c.h.b16 %v367
  %v452 = vunpack.c.l.b16 %v368
  %v453 = vunpack.c.h.b16 %v368
  %v454 = vunpack.c.l.b16 %v369
  %v455 = vunpack.c.h.b16 %v369
  %v456 = vunpack.c.l.b16 %v370
  %v457 = vunpack.c.h.b16 %v370
  %v458 = vunpack.c.l.b16 %v371
  %v459 = vunpack.c.h.b16 %v371
  %v460 = vunpack.c.l.b16 %v372
  %v461 = vunpack.c.h.b16 %v372
  %v462 = vunpack.c.l.b16 %v373
  %v463 = vunpack.c.h.b16 %v373
  %v464 = vunpack.c.l.b16 %v374
  %v465 = vunpack.c.h.b16 %v374
  %v466 = vunpack.c.l.b16 %v375
  %v467 = vunpack.c.h.b16 %v375
  %v468 = vunpack.c.l.b16 %v376
  %v469 = vunpack.c.h.b16 %v376
  %v470 = vunpack.c.l.b16 %v377
  %v471 = vunpack.c.h.b16 %v377
  %v472 = vunpack.c.l.b16 %v378
  %v473 = vunpack.c.h.b16 %v378
  %v474 = vunpack.c.l.b16 %v379
  %v475 = vunpack.c.h.b16 %v379
  %v476 = vpack.c.b16 %v412, %v412
  %v477 = vpack.c.b16 %v413, %v413
  %v478 = vpack.c.b16 %v414, %v414
  %v479 = vpack.c.b16 %v415, %v415
  %v480 = vpack.c.b16 %v416, %v416
  %v481 = vpack.c.b16 %v417, %v417
  %v482 = vpack.c.b16 %v418, %v418
  %v483 = vpack.c.b16 %v419, %v419
  %v484 = vpack.c.b16 %v420, %v420
  %v485 = vpack.c.b16 %v421, %v421
  %v486 = vpack.c.b16 %v422, %v422
  %v487 = vpack.c.b16 %v423, %v423
  %v488 = vpack.c.b16 %v424, %v424
  %v489 = vpack.c.b16 %v425, %v425
  %v490 = vpack.c.b16 %v426, %v426
  %v491 = vpack.c.b16 %v427, %v427
  %v492 = vpack.c.b16 %v428, %v428
  %v493 = vpack.c.b16 %v429, %v429
  %v494 = vpack.c.b16 %v430, %v430
  %v495 = vpack.c.b16 %v431, %v431
  %v496 = vpack.c.b16 %v432, %v432
  %v497 = vpack.c.b16 %v433, %v433
  %v498 = vpack.c.b16 %v434, %v434
  %v499 = vpack.c.b16 %v435, %v435
  %v500 = vpack.c.b16 %v436, %v436
  %v501 = vpack.c.b16 %v437, %v437
  %v502 = vpack.c.b16 %v438, %v438
  %v503 = vpack.c.b16 %v439, %v439
  %v504 = vpack.c.b16 %v440, %v440
  %v505 = vpack.c.b16 %v441, %v441
  %v506 = vpack.c.b16 %v442, %v442
  %v507 = vpack.c.b16 %v443, %v443
  %v508 = vpack.c.b16 %v444, %v444
  %v509 = vpack.c.b16 %v445, %v445
  %v510 = vpack.c.b16 %v446, %v446
  %v511 = vpack.c.b16 %v447, %v447
  %v512 = vpack.c.b16 %v448, %v448
  %v513 = vpack.c.b16 %v449, %v449
  %v514 = vpack.c.b16 %v450, %v450
  %v515 = vpack.c.b16 %v451, %v451
  %v516 = vpack.c.b16 %v452, %v452
  %v517 = vpack.c.b16 %v453, %v453
  %v518 = vpack.c.b16 %v454, %v454
  %v519 = vpack.c.b16 %v455, %v455
  %v520 = vpack.c.b16 %v456, %v456
  %v521 = vpack.c.b16 %v457, %v457
  %v522 = vpack.c.b16 %v458, %v458
  %v523 = vpack.c.b16 %v459, %v459
  %v524 = vpack.c.b16 %v460, %v460
  %v525 = vpack.c.b16 %v461, %v461
  %v526 = vpack.c.b16 %v462, %v462
  %v527 = vpack.c.b16 %v463, %v463
  %v528 = vpack.c.b16 %v464, %v464
  %v529 = vpack.c.b16 %v465, %v465
  %v530 = vpack.c.b16 %v466, %v466
  %v531 = vpack.c.b16 %v467, %v467
  %v532 = vpack.c.b16 %v468, %v468
  %v533 = vpack.c.b16 %v469, %v469
  %v534 = vpack.c.b16 %v470, %v470
  %v535 = vpack.c.b16 %v471, %v471
  %v536 = vpack.c.b16 %v472, %v472
  %v537 = vpack.c.b16 %v473, %v473
  %v538 = vpack.c.b16 %v474, %v474
  %v539 = vpack.c.b16 %v475, %v475
  %604 = vst [vmem:[%s3] sm:$0xf] %v476
  %605 = vst [vmem:[%s3 + $0x4] sm:$0xf] %v477
  %606 = vst [vmem:[%s3 + $0x8] sm:$0xf] %v478
  %607 = vst [vmem:[%s3 + $0xc] sm:$0xf] %v479
  %608 = vst [vmem:[%s3 + $0x10] sm:$0xf] %v480
  %609 = vst [vmem:[%s3 + $0x14] sm:$0xf] %v481
  %610 = vst [vmem:[%s3 + $0x18] sm:$0xf] %v482
  %611 = vst [vmem:[%s3 + $0x1c] sm:$0xf] %v483
  %612 = vst [vmem:[%s3 + $0x20] sm:$0xf] %v484
  %613 = vst [vmem:[%s3 + $0x24] sm:$0xf] %v485
  %614 = vst [vmem:[%s3 + $0x28] sm:$0xf] %v486
  %615 = vst [vmem:[%s3 + $0x2c] sm:$0xf] %v487
  %616 = vst [vmem:[%s3 + $0x30] sm:$0xf] %v488
  %617 = vst [vmem:[%s3 + $0x34] sm:$0xf] %v489
  %618 = vst [vmem:[%s3 + $0x38] sm:$0xf] %v490
  %619 = vst [vmem:[%s3 + $0x3c] sm:$0xf] %v491
  %620 = vst [vmem:[%s3 + $0x40] sm:$0xf] %v492
  %621 = vst [vmem:[%s3 + $0x44] sm:$0xf] %v493
  %622 = vst [vmem:[%s3 + $0x48] sm:$0xf] %v494
  %623 = vst [vmem:[%s3 + $0x4c] sm:$0xf] %v495
  %624 = vst [vmem:[%s3 + $0x50] sm:$0xf] %v496
  %625 = vst [vmem:[%s3 + $0x54] sm:$0xf] %v497
  %626 = vst [vmem:[%s3 + $0x58] sm:$0xf] %v498
  %627 = vst [vmem:[%s3 + $0x5c] sm:$0xf] %v499
  %628 = vst [vmem:[%s3 + $0x60] sm:$0xf] %v500
  %629 = vst [vmem:[%s3 + $0x64] sm:$0xf] %v501
  %630 = vst [vmem:[%s3 + $0x68] sm:$0xf] %v502
  %631 = vst [vmem:[%s3 + $0x6c] sm:$0xf] %v503
  %632 = vst [vmem:[%s3 + $0x70] sm:$0xf] %v504
  %633 = vst [vmem:[%s3 + $0x74] sm:$0xf] %v505
  %634 = vst [vmem:[%s3 + $0x78] sm:$0xf] %v506
  %635 = vst [vmem:[%s3 + $0x7c] sm:$0xf] %v507
  %636 = vst [vmem:[%s3 + $0x80] sm:$0xf] %v508
  %637 = vst [vmem:[%s3 + $0x84] sm:$0xf] %v509
  %638 = vst [vmem:[%s3 + $0x88] sm:$0xf] %v510
  %639 = vst [vmem:[%s3 + $0x8c] sm:$0xf] %v511
  %640 = vst [vmem:[%s3 + $0x90] sm:$0xf] %v512
  %641 = vst [vmem:[%s3 + $0x94] sm:$0xf] %v513
  %642 = vst [vmem:[%s3 + $0x98] sm:$0xf] %v514
  %643 = vst [vmem:[%s3 + $0x9c] sm:$0xf] %v515
  %644 = vst [vmem:[%s3 + $0xa0] sm:$0xf] %v516
  %645 = vst [vmem:[%s3 + $0xa4] sm:$0xf] %v517
  %646 = vst [vmem:[%s3 + $0xa8] sm:$0xf] %v518
  %647 = vst [vmem:[%s3 + $0xac] sm:$0xf] %v519
  %648 = vst [vmem:[%s3 + $0xb0] sm:$0xf] %v520
  %649 = vst [vmem:[%s3 + $0xb4] sm:$0xf] %v521
  %650 = vst [vmem:[%s3 + $0xb8] sm:$0xf] %v522
  %651 = vst [vmem:[%s3 + $0xbc] sm:$0xf] %v523
  %652 = vst [vmem:[%s3 + $0xc0] sm:$0xf] %v524
  %653 = vst [vmem:[%s3 + $0xc4] sm:$0xf] %v525
  %654 = vst [vmem:[%s3 + $0xc8] sm:$0xf] %v526
  %655 = vst [vmem:[%s3 + $0xcc] sm:$0xf] %v527
  %656 = vst [vmem:[%s3 + $0xd0] sm:$0xf] %v528
  %657 = vst [vmem:[%s3 + $0xd4] sm:$0xf] %v529
  %658 = vst [vmem:[%s3 + $0xd8] sm:$0xf] %v530
  %659 = vst [vmem:[%s3 + $0xdc] sm:$0xf] %v531
  %660 = vst [vmem:[%s3 + $0xe0] sm:$0xf] %v532
  %661 = vst [vmem:[%s3 + $0xe4] sm:$0xf] %v533
  %662 = vst [vmem:[%s3 + $0xe8] sm:$0xf] %v534
  %663 = vst [vmem:[%s3 + $0xec] sm:$0xf] %v535
  %664 = vst [vmem:[%s3 + $0xf0] sm:$0xf] %v536
  %665 = vst [vmem:[%s3 + $0xf4] sm:$0xf] %v537
  %666 = vst [vmem:[%s3 + $0xf8] sm:$0xf] %v538
  %667 = vst [vmem:[%s3 + $0xfc] sm:$0xf] %v539
  // Predicated region
  $region14: #{basic_block_forward.6} parent=0 // pred_check
    _
  $region15: #{basic_block_forward.6} parent=0 // pred_check_branch
    %669 = sbr.rel (0) target = $region17
  $region16: #{basic_block_forward.6} parent=0 // pred_region
    _
  $region17: #{basic_block_forward.6} parent=0 // pred_fallthru
    _
  // Predicated region
  $region18: #{basic_block_forward.6} parent=0 // pred_check
    _
  $region19: #{basic_block_forward.6} parent=0 // pred_check_branch
    %671 = sbr.rel (0) target = $region21
  $region20: #{basic_block_forward.6} parent=0 // pred_region
    _
  $region21: #{basic_block_forward.6} parent=0 // pred_fallthru
    _

// kernel: basic_block_forward.5
$region0: #{basic_block_forward.5}
  #allocation0 [shape = 'u32[]', space=smem, size = 0x4, offset = 0x4, fixed_abs, tag = 'smem constant byte address 0x4 - core index']
  #allocation1 [shape = 'u32[144,128]{1,0:T(1,128)}', space=vmem, size = 0x12000, scoped, tag = 'internal scratch']
  %s0 = inlined_call_operand.vmem [shape: bf16[512,36], index: 0, kind: input, shape index: {}]
  %s1 = inlined_call_operand.vmem [shape: bf16[36,128], index: 1, kind: input, shape index: {}]
  %s2 = inlined_call_operand.vmem [shape: bf16[512,128], index: 2, kind: output, shape index: {0}]
  %s3 = inlined_call_operand.vmem [shape: f32[1,1,128], index: 3, kind: output, shape index: {1}]
  %s4 = inlined_call_operand.vmem [shape: f32[1,1,128], index: 4, kind: output, shape index: {2}]
  %5 = xla_tuple %s2, %s3, %s4
  %s6 = sld [smem:[#allocation0]]
  $region34: #{basic_block_forward.5} parent=0
    _
  %s8 = ssub.s32 1, %s6
  %s9 = scalar_select 0, %s8, %s6
  // Predicated region
  $region2: #{basic_block_forward.5} parent=0 // pred_check
    _
  $region3: #{basic_block_forward.5} parent=0 // pred_check_branch
    %11 = sbr.rel (0) target = $region5
  $region4: #{basic_block_forward.5} parent=0 // pred_region
    _
  $region5: #{basic_block_forward.5} parent=0 // pred_fallthru
    _
  // Predicated region
  $region6: #{basic_block_forward.5} parent=0 // pred_check
    _
  $region7: #{basic_block_forward.5} parent=0 // pred_check_branch
    %13 = sbr.rel (0) target = $region9
  $region8: #{basic_block_forward.5} parent=0 // pred_region
    _
  $region9: #{basic_block_forward.5} parent=0 // pred_fallthru
    _
  %v15 = vld [vmem:[%s0] sm:$0xf]
  %v16 = vld [vmem:[%s0 + $0x4] sm:$0xf]
  %v17 = vld [vmem:[%s0 + $0x8] sm:$0xf]
  %v18 = vld [vmem:[%s0 + $0xc] sm:$0xf]
  %v19 = vld [vmem:[%s0 + $0x10] sm:$0xf]
  %v20 = vld [vmem:[%s0 + $0x14] sm:$0xf]
  %v21 = vld [vmem:[%s0 + $0x18] sm:$0xf]
  %v22 = vld [vmem:[%s0 + $0x1c] sm:$0xf]
  %v23 = vld [vmem:[%s0 + $0x20] sm:$0xf]
  %v24 = vld [vmem:[%s0 + $0x24] sm:$0xf]
  %v25 = vld [vmem:[%s0 + $0x28] sm:$0xf]
  %v26 = vld [vmem:[%s0 + $0x2c] sm:$0xf]
  %v27 = vld [vmem:[%s0 + $0x30] sm:$0xf]
  %v28 = vld [vmem:[%s0 + $0x34] sm:$0xf]
  %v29 = vld [vmem:[%s0 + $0x38] sm:$0xf]
  %v30 = vld [vmem:[%s0 + $0x3c] sm:$0xf]
  %v31 = vld [vmem:[%s0 + $0x40] sm:$0xf]
  %v32 = vld [vmem:[%s0 + $0x44] sm:$0xf]
  %v33 = vld [vmem:[%s0 + $0x48] sm:$0xf]
  %v34 = vld [vmem:[%s0 + $0x4c] sm:$0xf]
  %v35 = vld [vmem:[%s0 + $0x50] sm:$0xf]
  %v36 = vld [vmem:[%s0 + $0x54] sm:$0xf]
  %v37 = vld [vmem:[%s0 + $0x58] sm:$0xf]
  %v38 = vld [vmem:[%s0 + $0x5c] sm:$0xf]
  %v39 = vld [vmem:[%s0 + $0x60] sm:$0xf]
  %v40 = vld [vmem:[%s0 + $0x64] sm:$0xf]
  %v41 = vld [vmem:[%s0 + $0x68] sm:$0xf]
  %v42 = vld [vmem:[%s0 + $0x6c] sm:$0xf]
  %v43 = vld [vmem:[%s0 + $0x70] sm:$0xf]
  %v44 = vld [vmem:[%s0 + $0x74] sm:$0xf]
  %v45 = vld [vmem:[%s0 + $0x78] sm:$0xf]
  %v46 = vld [vmem:[%s0 + $0x7c] sm:$0xf]
  %v47 = vld [vmem:[%s0 + $0x80] sm:$0xf]
  %v48 = vld [vmem:[%s0 + $0x84] sm:$0xf]
  %v49 = vld [vmem:[%s0 + $0x88] sm:$0xf]
  %v50 = vld [vmem:[%s0 + $0x8c] sm:$0xf]
  %v51 = vld [vmem:[%s0 + $0x90] sm:$0xf]
  %v52 = vld [vmem:[%s0 + $0x94] sm:$0xf]
  %v53 = vld [vmem:[%s0 + $0x98] sm:$0xf]
  %v54 = vld [vmem:[%s0 + $0x9c] sm:$0xf]
  %v55 = vld [vmem:[%s0 + $0xa0] sm:$0xf]
  %v56 = vld [vmem:[%s0 + $0xa4] sm:$0xf]
  %v57 = vld [vmem:[%s0 + $0xa8] sm:$0xf]
  %v58 = vld [vmem:[%s0 + $0xac] sm:$0xf]
  %v59 = vld [vmem:[%s0 + $0xb0] sm:$0xf]
  %v60 = vld [vmem:[%s0 + $0xb4] sm:$0xf]
  %v61 = vld [vmem:[%s0 + $0xb8] sm:$0xf]
  %v62 = vld [vmem:[%s0 + $0xbc] sm:$0xf]
  %v63 = vld [vmem:[%s0 + $0xc0] sm:$0xf]
  %v64 = vld [vmem:[%s0 + $0xc4] sm:$0xf]
  %v65 = vld [vmem:[%s0 + $0xc8] sm:$0xf]
  %v66 = vld [vmem:[%s0 + $0xcc] sm:$0xf]
  %v67 = vld [vmem:[%s0 + $0xd0] sm:$0xf]
  %v68 = vld [vmem:[%s0 + $0xd4] sm:$0xf]
  %v69 = vld [vmem:[%s0 + $0xd8] sm:$0xf]
  %v70 = vld [vmem:[%s0 + $0xdc] sm:$0xf]
  %v71 = vld [vmem:[%s0 + $0xe0] sm:$0xf]
  %v72 = vld [vmem:[%s0 + $0xe4] sm:$0xf]
  %v73 = vld [vmem:[%s0 + $0xe8] sm:$0xf]
  %v74 = vld [vmem:[%s0 + $0xec] sm:$0xf]
  %v75 = vld [vmem:[%s0 + $0xf0] sm:$0xf]
  %v76 = vld [vmem:[%s0 + $0xf4] sm:$0xf]
  %v77 = vld [vmem:[%s0 + $0xf8] sm:$0xf]
  %v78 = vld [vmem:[%s0 + $0xfc] sm:$0xf]
  %v79 = vld [vmem:[%s1] sm:$0xf]
  %v80 = vld [vmem:[%s1 + $0x4] sm:$0xf]
  %v81 = vld [vmem:[%s1 + $0x8] sm:$0xf]
  %v82 = vld [vmem:[%s1 + $0xc] sm:$0xf]
  %v83 = vld [vmem:[%s1 + $0x10] sm:$0x3]
  %v148 = vunpack.c.l.b16 %v15
  %v149 = vunpack.c.l.b16 %v16
  %v150 = vunpack.c.l.b16 %v17
  %v151 = vunpack.c.l.b16 %v18
  %v152 = vunpack.c.l.b16 %v19
  %v153 = vunpack.c.l.b16 %v20
  %v154 = vunpack.c.l.b16 %v21
  %v155 = vunpack.c.l.b16 %v22
  %v156 = vunpack.c.l.b16 %v23
  %v157 = vunpack.c.l.b16 %v24
  %v158 = vunpack.c.l.b16 %v25
  %v159 = vunpack.c.l.b16 %v26
  %v160 = vunpack.c.l.b16 %v27
  %v161 = vunpack.c.l.b16 %v28
  %v162 = vunpack.c.l.b16 %v29
  %v163 = vunpack.c.l.b16 %v30
  %v164 = vunpack.c.l.b16 %v31
  %v165 = vunpack.c.l.b16 %v32
  %v166 = vunpack.c.l.b16 %v33
  %v167 = vunpack.c.l.b16 %v34
  %v168 = vunpack.c.l.b16 %v35
  %v169 = vunpack.c.l.b16 %v36
  %v170 = vunpack.c.l.b16 %v37
  %v171 = vunpack.c.l.b16 %v38
  %v172 = vunpack.c.l.b16 %v39
  %v173 = vunpack.c.l.b16 %v40
  %v174 = vunpack.c.l.b16 %v41
  %v175 = vunpack.c.l.b16 %v42
  %v176 = vunpack.c.l.b16 %v43
  %v177 = vunpack.c.l.b16 %v44
  %v178 = vunpack.c.l.b16 %v45
  %v179 = vunpack.c.l.b16 %v46
  %v180 = vunpack.c.l.b16 %v47
  %v181 = vunpack.c.l.b16 %v48
  %v182 = vunpack.c.l.b16 %v49
  %v183 = vunpack.c.l.b16 %v50
  %v184 = vunpack.c.l.b16 %v51
  %v185 = vunpack.c.l.b16 %v52
  %v186 = vunpack.c.l.b16 %v53
  %v187 = vunpack.c.l.b16 %v54
  %v188 = vunpack.c.l.b16 %v55
  %v189 = vunpack.c.l.b16 %v56
  %v190 = vunpack.c.l.b16 %v57
  %v191 = vunpack.c.l.b16 %v58
  %v192 = vunpack.c.l.b16 %v59
  %v193 = vunpack.c.l.b16 %v60
  %v194 = vunpack.c.l.b16 %v61
  %v195 = vunpack.c.l.b16 %v62
  %v196 = vunpack.c.l.b16 %v63
  %v197 = vunpack.c.l.b16 %v64
  %v198 = vunpack.c.l.b16 %v65
  %v199 = vunpack.c.l.b16 %v66
  %v200 = vunpack.c.l.b16 %v67
  %v201 = vunpack.c.l.b16 %v68
  %v202 = vunpack.c.l.b16 %v69
  %v203 = vunpack.c.l.b16 %v70
  %v204 = vunpack.c.l.b16 %v71
  %v205 = vunpack.c.l.b16 %v72
  %v206 = vunpack.c.l.b16 %v73
  %v207 = vunpack.c.l.b16 %v74
  %v208 = vunpack.c.l.b16 %v75
  %v209 = vunpack.c.l.b16 %v76
  %v210 = vunpack.c.l.b16 %v77
  %v211 = vunpack.c.l.b16 %v78
  %v212 = vpack.c.b16 %v149, %v148
  %v213 = vpack.c.b16 %v151, %v150
  %v214 = vpack.c.b16 %v153, %v152
  %v215 = vpack.c.b16 %v155, %v154
  %v216 = vpack.c.b16 %v157, %v156
  %v217 = vpack.c.b16 %v159, %v158
  %v218 = vpack.c.b16 %v161, %v160
  %v219 = vpack.c.b16 %v163, %v162
  %v220 = vpack.c.b16 %v165, %v164
  %v221 = vpack.c.b16 %v167, %v166
  %v222 = vpack.c.b16 %v169, %v168
  %v223 = vpack.c.b16 %v171, %v170
  %v224 = vpack.c.b16 %v173, %v172
  %v225 = vpack.c.b16 %v175, %v174
  %v226 = vpack.c.b16 %v177, %v176
  %v227 = vpack.c.b16 %v179, %v178
  %v228 = vpack.c.b16 %v181, %v180
  %v229 = vpack.c.b16 %v183, %v182
  %v230 = vpack.c.b16 %v185, %v184
  %v231 = vpack.c.b16 %v187, %v186
  %v232 = vpack.c.b16 %v189, %v188
  %v233 = vpack.c.b16 %v191, %v190
  %v234 = vpack.c.b16 %v193, %v192
  %v235 = vpack.c.b16 %v195, %v194
  %v236 = vpack.c.b16 %v197, %v196
  %v237 = vpack.c.b16 %v199, %v198
  %v238 = vpack.c.b16 %v201, %v200
  %v239 = vpack.c.b16 %v203, %v202
  %v240 = vpack.c.b16 %v205, %v204
  %v241 = vpack.c.b16 %v207, %v206
  %v242 = vpack.c.b16 %v209, %v208
  %v243 = vpack.c.b16 %v211, %v210
  %v249 = vunpack.c.l.b16 %v79
  %v250 = vunpack.c.l.b16 %v80
  %v251 = vunpack.c.l.b16 %v81
  %v252 = vunpack.c.l.b16 %v82
  %v253 = vunpack.c.l.b16 %v83
  %v254 = vpack.c.b16 %v250, %v249
  %v255 = vpack.c.b16 %v252, %v251
  %v256 = vpack.c.b16 %v253, %v253
  %vm259 = vcmask 293888
  %v261 = vsel %vm259, %v212, 0
  %v264 = vsel %vm259, %v213, 0
  %v267 = vsel %vm259, %v214, 0
  %v270 = vsel %vm259, %v215, 0
  %v273 = vsel %vm259, %v216, 0
  %v276 = vsel %vm259, %v217, 0
  %v279 = vsel %vm259, %v218, 0
  %v282 = vsel %vm259, %v219, 0
  %v285 = vsel %vm259, %v220, 0
  %v288 = vsel %vm259, %v221, 0
  %v291 = vsel %vm259, %v222, 0
  %v294 = vsel %vm259, %v223, 0
  %v297 = vsel %vm259, %v224, 0
  %v300 = vsel %vm259, %v225, 0
  %v303 = vsel %vm259, %v226, 0
  %v306 = vsel %vm259, %v227, 0
  %v309 = vsel %vm259, %v228, 0
  %v312 = vsel %vm259, %v229, 0
  %v315 = vsel %vm259, %v230, 0
  %v318 = vsel %vm259, %v231, 0
  %v321 = vsel %vm259, %v232, 0
  %v324 = vsel %vm259, %v233, 0
  %v327 = vsel %vm259, %v234, 0
  %v330 = vsel %vm259, %v235, 0
  %v333 = vsel %vm259, %v236, 0
  %v336 = vsel %vm259, %v237, 0
  %v339 = vsel %vm259, %v238, 0
  %v342 = vsel %vm259, %v239, 0
  %v345 = vsel %vm259, %v240, 0
  %v348 = vsel %vm259, %v241, 0
  %v351 = vsel %vm259, %v242, 0
  %v354 = vsel %vm259, %v243, 0
  %vm356 = vcmask 1041408
  %v358 = vsel %vm356, %v256, 0
  %360 = vmatprep.subr.bf16.mxu0 0
  %361 = vmatpush1.bf16.msra.mxu0 %v254
  %362 = vmatprep.subr.bf16.mxu0 0
  %363 = vmatpush1.bf16.msra.mxu0 %v255
  %364 = vmatprep.subr.bf16.mxu0 0
  %365 = vmatpush1.bf16.msra.mxu0 %v358
  %366 = vmatprep.subr.bf16.mxu0 0
  %367 = vmatpush1.bf16.msra.mxu0 0
  %368 = vmatprep.subr.bf16.mxu0 0
  %369 = vmatpush1.bf16.msra.mxu0 0
  %370 = vmatprep.subr.bf16.mxu0 0
  %371 = vmatpush1.bf16.msra.mxu0 0
  %372 = vmatprep.subr.bf16.mxu0 0
  %373 = vmatpush1.bf16.msra.mxu0 0
  %374 = vmatprep.subr.bf16.mxu0 0
  %375 = vmatpush1.bf16.msra.mxu0 0
  %376 = vmatprep.subr.bf16.mxu0 0
  %377 = vmatpush1.bf16.msra.mxu0 0
  %378 = vmatprep.subr.bf16.mxu0 0
  %379 = vmatpush1.bf16.msra.mxu0 0
  %380 = vmatprep.subr.bf16.mxu0 0
  %381 = vmatpush1.bf16.msra.mxu0 0
  %382 = vmatprep.subr.bf16.mxu0 0
  %383 = vmatpush1.bf16.msra.mxu0 0
  %384 = vmatprep.subr.bf16.mxu0 0
  %385 = vmatpush1.bf16.msra.mxu0 0
  %386 = vmatprep.subr.bf16.mxu0 0
  %387 = vmatpush1.bf16.msra.mxu0 0
  %388 = vmatprep.subr.bf16.mxu0 0
  %389 = vmatpush1.bf16.msra.mxu0 0
  %390 = vmatprep.subr.bf16.mxu0 0
  %391 = vmatpush1.bf16.msra.mxu0 0
  %392 = vmatprep.mubr.bf16.mxu0 0
  %393 = vmatmul.mubr.bf16.gmra.mrb[0].mxu0 %v261
  %v394 = vpop.f32.mrb[0].mxu0
  %v395 = vadd.f32 0.0, %v394
  %v396 = vpop.f32.mrb[0].mxu0
  %v397 = vpop.f32.mrb[0].mxu0
  %v398 = vadd.f32 0.0, %v397
  %v399 = vpop.f32.mrb[0].mxu0
  %400 = vmatprep.mubr.bf16.mxu0 0
  %401 = vmatmul.mubr.bf16.gmra.mrb[0].mxu0 %v264
  %v402 = vpop.f32.mrb[0].mxu0
  %v403 = vadd.f32 0.0, %v402
  %v404 = vpop.f32.mrb[0].mxu0
  %v405 = vpop.f32.mrb[0].mxu0
  %v406 = vadd.f32 0.0, %v405
  %v407 = vpop.f32.mrb[0].mxu0
  %408 = vmatprep.mubr.bf16.mxu0 0
  %409 = vmatmul.mubr.bf16.gmra.mrb[0].mxu0 %v267
  %v410 = vpop.f32.mrb[0].mxu0
  %v411 = vadd.f32 0.0, %v410
  %v412 = vpop.f32.mrb[0].mxu0
  %v413 = vpop.f32.mrb[0].mxu0
  %v414 = vadd.f32 0.0, %v413
  %v415 = vpop.f32.mrb[0].mxu0
  %416 = vmatprep.mubr.bf16.mxu0 0
  %417 = vmatmul.mubr.bf16.gmra.mrb[0].mxu0 %v270
  %v418 = vpop.f32.mrb[0].mxu0
  %v419 = vadd.f32 0.0, %v418
  %v420 = vpop.f32.mrb[0].mxu0
  %v421 = vpop.f32.mrb[0].mxu0
  %v422 = vadd.f32 0.0, %v421
  %v423 = vpop.f32.mrb[0].mxu0
  %424 = vmatprep.mubr.bf16.mxu0 0
  %425 = vmatmul.mubr.bf16.gmra.mrb[0].mxu0 %v273
  %v426 = vpop.f32.mrb[0].mxu0
  %v427 = vadd.f32 0.0, %v426
  %v428 = vpop.f32.mrb[0].mxu0
  %v429 = vpop.f32.mrb[0].mxu0
  %v430 = vadd.f32 0.0, %v429
  %v431 = vpop.f32.mrb[0].mxu0
  %432 = vmatprep.mubr.bf16.mxu0 0
  %433 = vmatmul.mubr.bf16.gmra.mrb[0].mxu0 %v276
  %v434 = vpop.f32.mrb[0].mxu0
  %v435 = vadd.f32 0.0, %v434
  %v436 = vpop.f32.mrb[0].mxu0
  %v437 = vpop.f32.mrb[0].mxu0
  %v438 = vadd.f32 0.0, %v437
  %v439 = vpop.f32.mrb[0].mxu0
  %440 = vmatprep.mubr.bf16.mxu0 0
  %441 = vmatmul.mubr.bf16.gmra.mrb[0].mxu0 %v279
  %v442 = vpop.f32.mrb[0].mxu0
  %v443 = vadd.f32 0.0, %v442
  %v444 = vpop.f32.mrb[0].mxu0
  %v445 = vpop.f32.mrb[0].mxu0
  %v446 = vadd.f32 0.0, %v445
  %v447 = vpop.f32.mrb[0].mxu0
  %448 = vmatprep.mubr.bf16.mxu0 0
  %449 = vmatmul.mubr.bf16.gmra.mrb[0].mxu0 %v282
  %v450 = vpop.f32.mrb[0].mxu0
  %v451 = vadd.f32 0.0, %v450
  %v452 = vpop.f32.mrb[0].mxu0
  %v453 = vpop.f32.mrb[0].mxu0
  %v454 = vadd.f32 0.0, %v453
  %v455 = vpop.f32.mrb[0].mxu0
  %456 = vmatprep.mubr.bf16.mxu0 0
  %457 = vmatmul.mubr.bf16.gmra.mrb[0].mxu0 %v285
  %v458 = vpop.f32.mrb[0].mxu0
  %v459 = vadd.f32 0.0, %v458
  %v460 = vpop.f32.mrb[0].mxu0
  %v461 = vpop.f32.mrb[0].mxu0
  %v462 = vadd.f32 0.0, %v461
  %v463 = vpop.f32.mrb[0].mxu0
  %464 = vmatprep.mubr.bf16.mxu0 0
  %465 = vmatmul.mubr.bf16.gmra.mrb[0].mxu0 %v288
  %v466 = vpop.f32.mrb[0].mxu0
  %v467 = vadd.f32 0.0, %v466
  %v468 = vpop.f32.mrb[0].mxu0
  %v469 = vpop.f32.mrb[0].mxu0
  %v470 = vadd.f32 0.0, %v469
  %v471 = vpop.f32.mrb[0].mxu0
  %472 = vmatprep.mubr.bf16.mxu0 0
  %473 = vmatmul.mubr.bf16.gmra.mrb[0].mxu0 %v291
  %v474 = vpop.f32.mrb[0].mxu0
  %v475 = vadd.f32 0.0, %v474
  %v476 = vpop.f32.mrb[0].mxu0
  %v477 = vpop.f32.mrb[0].mxu0
  %v478 = vadd.f32 0.0, %v477
  %v479 = vpop.f32.mrb[0].mxu0
  %480 = vmatprep.mubr.bf16.mxu0 0
  %481 = vmatmul.mubr.bf16.gmra.mrb[0].mxu0 %v294
  %v482 = vpop.f32.mrb[0].mxu0
  %v483 = vadd.f32 0.0, %v482
  %v484 = vpop.f32.mrb[0].mxu0
  %v485 = vpop.f32.mrb[0].mxu0
  %v486 = vadd.f32 0.0, %v485
  %v487 = vpop.f32.mrb[0].mxu0
  %488 = vmatprep.mubr.bf16.mxu0 0
  %489 = vmatmul.mubr.bf16.gmra.mrb[0].mxu0 %v297
  %v490 = vpop.f32.mrb[0].mxu0
  %v491 = vadd.f32 0.0, %v490
  %v492 = vpop.f32.mrb[0].mxu0
  %v493 = vpop.f32.mrb[0].mxu0
  %v494 = vadd.f32 0.0, %v493
  %v495 = vpop.f32.mrb[0].mxu0
  %496 = vmatprep.mubr.bf16.mxu0 0
  %497 = vmatmul.mubr.bf16.gmra.mrb[0].mxu0 %v300
  %v498 = vpop.f32.mrb[0].mxu0
  %v499 = vadd.f32 0.0, %v498
  %v500 = vpop.f32.mrb[0].mxu0
  %v501 = vpop.f32.mrb[0].mxu0
  %v502 = vadd.f32 0.0, %v501
  %v503 = vpop.f32.mrb[0].mxu0
  %504 = vmatprep.mubr.bf16.mxu0 0
  %505 = vmatmul.mubr.bf16.gmra.mrb[0].mxu0 %v303
  %v506 = vpop.f32.mrb[0].mxu0
  %v507 = vadd.f32 0.0, %v506
  %v508 = vpop.f32.mrb[0].mxu0
  %v509 = vpop.f32.mrb[0].mxu0
  %v510 = vadd.f32 0.0, %v509
  %v511 = vpop.f32.mrb[0].mxu0
  %512 = vmatprep.mubr.bf16.mxu0 0
  %513 = vmatmul.mubr.bf16.gmra.mrb[0].mxu0 %v306
  %v514 = vpop.f32.mrb[0].mxu0
  %v515 = vadd.f32 0.0, %v514
  %v516 = vpop.f32.mrb[0].mxu0
  %v517 = vpop.f32.mrb[0].mxu0
  %v518 = vadd.f32 0.0, %v517
  %v519 = vpop.f32.mrb[0].mxu0
  %520 = vmatprep.mubr.bf16.mxu0 0
  %521 = vmatmul.mubr.bf16.gmra.mrb[0].mxu0 %v309
  %v522 = vpop.f32.mrb[0].mxu0
  %v523 = vadd.f32 0.0, %v522
  %v524 = vpop.f32.mrb[0].mxu0
  %v525 = vpop.f32.mrb[0].mxu0
  %v526 = vadd.f32 0.0, %v525
  %v527 = vpop.f32.mrb[0].mxu0
  %528 = vmatprep.mubr.bf16.mxu0 0
  %529 = vmatmul.mubr.bf16.gmra.mrb[0].mxu0 %v312
  %v530 = vpop.f32.mrb[0].mxu0
  %v531 = vadd.f32 0.0, %v530
  %v532 = vpop.f32.mrb[0].mxu0
  %v533 = vpop.f32.mrb[0].mxu0
  %v534 = vadd.f32 0.0, %v533
  %v535 = vpop.f32.mrb[0].mxu0
  %536 = vmatprep.mubr.bf16.mxu0 0
  %537 = vmatmul.mubr.bf16.gmra.mrb[0].mxu0 %v315
  %v538 = vpop.f32.mrb[0].mxu0
  %v539 = vadd.f32 0.0, %v538
  %v540 = vpop.f32.mrb[0].mxu0
  %v541 = vpop.f32.mrb[0].mxu0
  %v542 = vadd.f32 0.0, %v541
  %v543 = vpop.f32.mrb[0].mxu0
  %544 = vmatprep.mubr.bf16.mxu0 0
  %545 = vmatmul.mubr.bf16.gmra.mrb[0].mxu0 %v318
  %v546 = vpop.f32.mrb[0].mxu0
  %v547 = vadd.f32 0.0, %v546
  %v548 = vpop.f32.mrb[0].mxu0
  %v549 = vpop.f32.mrb[0].mxu0
  %v550 = vadd.f32 0.0, %v549
  %v551 = vpop.f32.mrb[0].mxu0
  %552 = vmatprep.mubr.bf16.mxu0 0
  %553 = vmatmul.mubr.bf16.gmra.mrb[0].mxu0 %v321
  %v554 = vpop.f32.mrb[0].mxu0
  %v555 = vadd.f32 0.0, %v554
  %v556 = vpop.f32.mrb[0].mxu0
  %v557 = vpop.f32.mrb[0].mxu0
  %v558 = vadd.f32 0.0, %v557
  %v559 = vpop.f32.mrb[0].mxu0
  %560 = vmatprep.mubr.bf16.mxu0 0
  %561 = vmatmul.mubr.bf16.gmra.mrb[0].mxu0 %v324
  %v562 = vpop.f32.mrb[0].mxu0
  %v563 = vadd.f32 0.0, %v562
  %v564 = vpop.f32.mrb[0].mxu0
  %v565 = vpop.f32.mrb[0].mxu0
  %v566 = vadd.f32 0.0, %v565
  %v567 = vpop.f32.mrb[0].mxu0
  %568 = vmatprep.mubr.bf16.mxu0 0
  %569 = vmatmul.mubr.bf16.gmra.mrb[0].mxu0 %v327
  %v570 = vpop.f32.mrb[0].mxu0
  %v571 = vadd.f32 0.0, %v570
  %v572 = vpop.f32.mrb[0].mxu0
  %v573 = vpop.f32.mrb[0].mxu0
  %v574 = vadd.f32 0.0, %v573
  %v575 = vpop.f32.mrb[0].mxu0
  %576 = vmatprep.mubr.bf16.mxu0 0
  %577 = vmatmul.mubr.bf16.gmra.mrb[0].mxu0 %v330
  %v578 = vpop.f32.mrb[0].mxu0
  %v579 = vadd.f32 0.0, %v578
  %v580 = vpop.f32.mrb[0].mxu0
  %v581 = vpop.f32.mrb[0].mxu0
  %v582 = vadd.f32 0.0, %v581
  %v583 = vpop.f32.mrb[0].mxu0
  %584 = vmatprep.mubr.bf16.mxu0 0
  %585 = vmatmul.mubr.bf16.gmra.mrb[0].mxu0 %v333
  %v586 = vpop.f32.mrb[0].mxu0
  %v587 = vadd.f32 0.0, %v586
  %v588 = vpop.f32.mrb[0].mxu0
  %v589 = vpop.f32.mrb[0].mxu0
  %v590 = vadd.f32 0.0, %v589
  %v591 = vpop.f32.mrb[0].mxu0
  %592 = vmatprep.mubr.bf16.mxu0 0
  %593 = vmatmul.mubr.bf16.gmra.mrb[0].mxu0 %v336
  %v594 = vpop.f32.mrb[0].mxu0
  %v595 = vadd.f32 0.0, %v594
  %v596 = vpop.f32.mrb[0].mxu0
  %v597 = vpop.f32.mrb[0].mxu0
  %v598 = vadd.f32 0.0, %v597
  %v599 = vpop.f32.mrb[0].mxu0
  %600 = vmatprep.mubr.bf16.mxu0 0
  %601 = vmatmul.mubr.bf16.gmra.mrb[0].mxu0 %v339
  %v602 = vpop.f32.mrb[0].mxu0
  %v603 = vadd.f32 0.0, %v602
  %v604 = vpop.f32.mrb[0].mxu0
  %v605 = vpop.f32.mrb[0].mxu0
  %v606 = vadd.f32 0.0, %v605
  %v607 = vpop.f32.mrb[0].mxu0
  %608 = vmatprep.mubr.bf16.mxu0 0
  %609 = vmatmul.mubr.bf16.gmra.mrb[0].mxu0 %v342
  %v610 = vpop.f32.mrb[0].mxu0
  %v611 = vadd.f32 0.0, %v610
  %v612 = vpop.f32.mrb[0].mxu0
  %v613 = vpop.f32.mrb[0].mxu0
  %v614 = vadd.f32 0.0, %v613
  %v615 = vpop.f32.mrb[0].mxu0
  %616 = vmatprep.mubr.bf16.mxu0 0
  %617 = vmatmul.mubr.bf16.gmra.mrb[0].mxu0 %v345
  %v618 = vpop.f32.mrb[0].mxu0
  %v619 = vadd.f32 0.0, %v618
  %v620 = vpop.f32.mrb[0].mxu0
  %v621 = vpop.f32.mrb[0].mxu0
  %v622 = vadd.f32 0.0, %v621
  %v623 = vpop.f32.mrb[0].mxu0
  %624 = vmatprep.mubr.bf16.mxu0 0
  %625 = vmatmul.mubr.bf16.gmra.mrb[0].mxu0 %v348
  %v626 = vpop.f32.mrb[0].mxu0
  %v627 = vadd.f32 0.0, %v626
  %v628 = vpop.f32.mrb[0].mxu0
  %v629 = vpop.f32.mrb[0].mxu0
  %v630 = vadd.f32 0.0, %v629
  %v631 = vpop.f32.mrb[0].mxu0
  %632 = vmatprep.mubr.bf16.mxu0 0
  %633 = vmatmul.mubr.bf16.gmra.mrb[0].mxu0 %v351
  %v634 = vpop.f32.mrb[0].mxu0
  %v635 = vadd.f32 0.0, %v634
  %v636 = vpop.f32.mrb[0].mxu0
  %v637 = vpop.f32.mrb[0].mxu0
  %v638 = vadd.f32 0.0, %v637
  %v639 = vpop.f32.mrb[0].mxu0
  %640 = vmatprep.mubr.bf16.mxu0 0
  %641 = vmatmul.mubr.bf16.gmra.mrb[0].mxu0 %v354
  %v642 = vpop.f32.mrb[0].mxu0
  %v643 = vadd.f32 0.0, %v642
  %v644 = vpop.f32.mrb[0].mxu0
  %v645 = vpop.f32.mrb[0].mxu0
  %v646 = vadd.f32 0.0, %v645
  %v647 = vpop.f32.mrb[0].mxu0
  %648 = vdwg.mxu0
  %v649 = vpack.c.bf16 %v398, %v395
  %v650 = vpack.c.bf16 %v406, %v403
  %v651 = vpack.c.bf16 %v414, %v411
  %v652 = vpack.c.bf16 %v422, %v419
  %v653 = vpack.c.bf16 %v430, %v427
  %v654 = vpack.c.bf16 %v438, %v435
  %v655 = vpack.c.bf16 %v446, %v443
  %v656 = vpack.c.bf16 %v454, %v451
  %v657 = vpack.c.bf16 %v462, %v459
  %v658 = vpack.c.bf16 %v470, %v467
  %v659 = vpack.c.bf16 %v478, %v475
  %v660 = vpack.c.bf16 %v486, %v483
  %v661 = vpack.c.bf16 %v494, %v491
  %v662 = vpack.c.bf16 %v502, %v499
  %v663 = vpack.c.bf16 %v510, %v507
  %v664 = vpack.c.bf16 %v518, %v515
  %v665 = vpack.c.bf16 %v526, %v523
  %v666 = vpack.c.bf16 %v534, %v531
  %v667 = vpack.c.bf16 %v542, %v539
  %v668 = vpack.c.bf16 %v550, %v547
  %v669 = vpack.c.bf16 %v558, %v555
  %v670 = vpack.c.bf16 %v566, %v563
  %v671 = vpack.c.bf16 %v574, %v571
  %v672 = vpack.c.bf16 %v582, %v579
  %v673 = vpack.c.bf16 %v590, %v587
  %v674 = vpack.c.bf16 %v598, %v595
  %v675 = vpack.c.bf16 %v606, %v603
  %v676 = vpack.c.bf16 %v614, %v611
  %v677 = vpack.c.bf16 %v622, %v619
  %v678 = vpack.c.bf16 %v630, %v627
  %v679 = vpack.c.bf16 %v638, %v635
  %v680 = vpack.c.bf16 %v646, %v643
  %v713 = vunpack.c.l.b16 %v649
  %v714 = vunpack.c.h.b16 %v649
  %v715 = vunpack.c.l.b16 %v650
  %v716 = vunpack.c.h.b16 %v650
  %v717 = vunpack.c.l.b16 %v651
  %v718 = vunpack.c.h.b16 %v651
  %v719 = vunpack.c.l.b16 %v652
  %v720 = vunpack.c.h.b16 %v652
  %v721 = vunpack.c.l.b16 %v653
  %v722 = vunpack.c.h.b16 %v653
  %v723 = vunpack.c.l.b16 %v654
  %v724 = vunpack.c.h.b16 %v654
  %v725 = vunpack.c.l.b16 %v655
  %v726 = vunpack.c.h.b16 %v655
  %v727 = vunpack.c.l.b16 %v656
  %v728 = vunpack.c.h.b16 %v656
  %v729 = vunpack.c.l.b16 %v657
  %v730 = vunpack.c.h.b16 %v657
  %v731 = vunpack.c.l.b16 %v658
  %v732 = vunpack.c.h.b16 %v658
  %v733 = vunpack.c.l.b16 %v659
  %v734 = vunpack.c.h.b16 %v659
  %v735 = vunpack.c.l.b16 %v660
  %v736 = vunpack.c.h.b16 %v660
  %v737 = vunpack.c.l.b16 %v661
  %v738 = vunpack.c.h.b16 %v661
  %v739 = vunpack.c.l.b16 %v662
  %v740 = vunpack.c.h.b16 %v662
  %v741 = vunpack.c.l.b16 %v663
  %v742 = vunpack.c.h.b16 %v663
  %v743 = vunpack.c.l.b16 %v664
  %v744 = vunpack.c.h.b16 %v664
  %v745 = vunpack.c.l.b16 %v665
  %v746 = vunpack.c.h.b16 %v665
  %v747 = vunpack.c.l.b16 %v666
  %v748 = vunpack.c.h.b16 %v666
  %v749 = vunpack.c.l.b16 %v667
  %v750 = vunpack.c.h.b16 %v667
  %v751 = vunpack.c.l.b16 %v668
  %v752 = vunpack.c.h.b16 %v668
  %v753 = vunpack.c.l.b16 %v669
  %v754 = vunpack.c.h.b16 %v669
  %v755 = vunpack.c.l.b16 %v670
  %v756 = vunpack.c.h.b16 %v670
  %v757 = vunpack.c.l.b16 %v671
  %v758 = vunpack.c.h.b16 %v671
  %v759 = vunpack.c.l.b16 %v672
  %v760 = vunpack.c.h.b16 %v672
  %v761 = vunpack.c.l.b16 %v673
  %v762 = vunpack.c.h.b16 %v673
  %v763 = vunpack.c.l.b16 %v674
  %v764 = vunpack.c.h.b16 %v674
  %v765 = vunpack.c.l.b16 %v675
  %v766 = vunpack.c.h.b16 %v675
  %v767 = vunpack.c.l.b16 %v676
  %v768 = vunpack.c.h.b16 %v676
  %v769 = vunpack.c.l.b16 %v677
  %v770 = vunpack.c.h.b16 %v677
  %v771 = vunpack.c.l.b16 %v678
  %v772 = vunpack.c.h.b16 %v678
  %v773 = vunpack.c.l.b16 %v679
  %v774 = vunpack.c.h.b16 %v679
  %v775 = vunpack.c.l.b16 %v680
  %v776 = vunpack.c.h.b16 %v680
  %v777 = vpack.c.b16 %v713, %v713
  %v778 = vpack.c.b16 %v714, %v714
  %v779 = vpack.c.b16 %v715, %v715
  %v780 = vpack.c.b16 %v716, %v716
  %v781 = vpack.c.b16 %v717, %v717
  %v782 = vpack.c.b16 %v718, %v718
  %v783 = vpack.c.b16 %v719, %v719
  %v784 = vpack.c.b16 %v720, %v720
  %v785 = vpack.c.b16 %v721, %v721
  %v786 = vpack.c.b16 %v722, %v722
  %v787 = vpack.c.b16 %v723, %v723
  %v788 = vpack.c.b16 %v724, %v724
  %v789 = vpack.c.b16 %v725, %v725
  %v790 = vpack.c.b16 %v726, %v726
  %v791 = vpack.c.b16 %v727, %v727
  %v792 = vpack.c.b16 %v728, %v728
  %v793 = vpack.c.b16 %v729, %v729
  %v794 = vpack.c.b16 %v730, %v730
  %v795 = vpack.c.b16 %v731, %v731
  %v796 = vpack.c.b16 %v732, %v732
  %v797 = vpack.c.b16 %v733, %v733
  %v798 = vpack.c.b16 %v734, %v734
  %v799 = vpack.c.b16 %v735, %v735
  %v800 = vpack.c.b16 %v736, %v736
  %v801 = vpack.c.b16 %v737, %v737
  %v802 = vpack.c.b16 %v738, %v738
  %v803 = vpack.c.b16 %v739, %v739
  %v804 = vpack.c.b16 %v740, %v740
  %v805 = vpack.c.b16 %v741, %v741
  %v806 = vpack.c.b16 %v742, %v742
  %v807 = vpack.c.b16 %v743, %v743
  %v808 = vpack.c.b16 %v744, %v744
  %v809 = vpack.c.b16 %v745, %v745
  %v810 = vpack.c.b16 %v746, %v746
  %v811 = vpack.c.b16 %v747, %v747
  %v812 = vpack.c.b16 %v748, %v748
  %v813 = vpack.c.b16 %v749, %v749
  %v814 = vpack.c.b16 %v750, %v750
  %v815 = vpack.c.b16 %v751, %v751
  %v816 = vpack.c.b16 %v752, %v752
  %v817 = vpack.c.b16 %v753, %v753
  %v818 = vpack.c.b16 %v754, %v754
  %v819 = vpack.c.b16 %v755, %v755
  %v820 = vpack.c.b16 %v756, %v756
  %v821 = vpack.c.b16 %v757, %v757
  %v822 = vpack.c.b16 %v758, %v758
  %v823 = vpack.c.b16 %v759, %v759
  %v824 = vpack.c.b16 %v760, %v760
  %v825 = vpack.c.b16 %v761, %v761
  %v826 = vpack.c.b16 %v762, %v762
  %v827 = vpack.c.b16 %v763, %v763
  %v828 = vpack.c.b16 %v764, %v764
  %v829 = vpack.c.b16 %v765, %v765
  %v830 = vpack.c.b16 %v766, %v766
  %v831 = vpack.c.b16 %v767, %v767
  %v832 = vpack.c.b16 %v768, %v768
  %v833 = vpack.c.b16 %v769, %v769
  %v834 = vpack.c.b16 %v770, %v770
  %v835 = vpack.c.b16 %v771, %v771
  %v836 = vpack.c.b16 %v772, %v772
  %v837 = vpack.c.b16 %v773, %v773
  %v838 = vpack.c.b16 %v774, %v774
  %v839 = vpack.c.b16 %v775, %v775
  %v840 = vpack.c.b16 %v776, %v776
  %905 = vst [vmem:[%s2] sm:$0xf] %v777
  %906 = vst [vmem:[%s2 + $0x4] sm:$0xf] %v778
  %907 = vst [vmem:[%s2 + $0x8] sm:$0xf] %v779
  %908 = vst [vmem:[%s2 + $0xc] sm:$0xf] %v780
  %909 = vst [vmem:[%s2 + $0x10] sm:$0xf] %v781
  %910 = vst [vmem:[%s2 + $0x14] sm:$0xf] %v782
  %911 = vst [vmem:[%s2 + $0x18] sm:$0xf] %v783
  %912 = vst [vmem:[%s2 + $0x1c] sm:$0xf] %v784
  %913 = vst [vmem:[%s2 + $0x20] sm:$0xf] %v785
  %914 = vst [vmem:[%s2 + $0x24] sm:$0xf] %v786
  %915 = vst [vmem:[%s2 + $0x28] sm:$0xf] %v787
  %916 = vst [vmem:[%s2 + $0x2c] sm:$0xf] %v788
  %917 = vst [vmem:[%s2 + $0x30] sm:$0xf] %v789
  %918 = vst [vmem:[%s2 + $0x34] sm:$0xf] %v790
  %919 = vst [vmem:[%s2 + $0x38] sm:$0xf] %v791
  %920 = vst [vmem:[%s2 + $0x3c] sm:$0xf] %v792
  %921 = vst [vmem:[%s2 + $0x40] sm:$0xf] %v793
  %922 = vst [vmem:[%s2 + $0x44] sm:$0xf] %v794
  %923 = vst [vmem:[%s2 + $0x48] sm:$0xf] %v795
  %924 = vst [vmem:[%s2 + $0x4c] sm:$0xf] %v796
  %925 = vst [vmem:[%s2 + $0x50] sm:$0xf] %v797
  %926 = vst [vmem:[%s2 + $0x54] sm:$0xf] %v798
  %927 = vst [vmem:[%s2 + $0x58] sm:$0xf] %v799
  %928 = vst [vmem:[%s2 + $0x5c] sm:$0xf] %v800
  %929 = vst [vmem:[%s2 + $0x60] sm:$0xf] %v801
  %930 = vst [vmem:[%s2 + $0x64] sm:$0xf] %v802
  %931 = vst [vmem:[%s2 + $0x68] sm:$0xf] %v803
  %932 = vst [vmem:[%s2 + $0x6c] sm:$0xf] %v804
  %933 = vst [vmem:[%s2 + $0x70] sm:$0xf] %v805
  %934 = vst [vmem:[%s2 + $0x74] sm:$0xf] %v806
  %935 = vst [vmem:[%s2 + $0x78] sm:$0xf] %v807
  %936 = vst [vmem:[%s2 + $0x7c] sm:$0xf] %v808
  %937 = vst [vmem:[%s2 + $0x80] sm:$0xf] %v809
  %938 = vst [vmem:[%s2 + $0x84] sm:$0xf] %v810
  %939 = vst [vmem:[%s2 + $0x88] sm:$0xf] %v811
  %940 = vst [vmem:[%s2 + $0x8c] sm:$0xf] %v812
  %941 = vst [vmem:[%s2 + $0x90] sm:$0xf] %v813
  %942 = vst [vmem:[%s2 + $0x94] sm:$0xf] %v814
  %943 = vst [vmem:[%s2 + $0x98] sm:$0xf] %v815
  %944 = vst [vmem:[%s2 + $0x9c] sm:$0xf] %v816
  %945 = vst [vmem:[%s2 + $0xa0] sm:$0xf] %v817
  %946 = vst [vmem:[%s2 + $0xa4] sm:$0xf] %v818
  %947 = vst [vmem:[%s2 + $0xa8] sm:$0xf] %v819
  %948 = vst [vmem:[%s2 + $0xac] sm:$0xf] %v820
  %949 = vst [vmem:[%s2 + $0xb0] sm:$0xf] %v821
  %950 = vst [vmem:[%s2 + $0xb4] sm:$0xf] %v822
  %951 = vst [vmem:[%s2 + $0xb8] sm:$0xf] %v823
  %952 = vst [vmem:[%s2 + $0xbc] sm:$0xf] %v824
  %953 = vst [vmem:[%s2 + $0xc0] sm:$0xf] %v825
  %954 = vst [vmem:[%s2 + $0xc4] sm:$0xf] %v826
  %955 = vst [vmem:[%s2 + $0xc8] sm:$0xf] %v827
  %956 = vst [vmem:[%s2 + $0xcc] sm:$0xf] %v828
  %957 = vst [vmem:[%s2 + $0xd0] sm:$0xf] %v829
  %958 = vst [vmem:[%s2 + $0xd4] sm:$0xf] %v830
  %959 = vst [vmem:[%s2 + $0xd8] sm:$0xf] %v831
  %960 = vst [vmem:[%s2 + $0xdc] sm:$0xf] %v832
  %961 = vst [vmem:[%s2 + $0xe0] sm:$0xf] %v833
  %962 = vst [vmem:[%s2 + $0xe4] sm:$0xf] %v834
  %963 = vst [vmem:[%s2 + $0xe8] sm:$0xf] %v835
  %964 = vst [vmem:[%s2 + $0xec] sm:$0xf] %v836
  %965 = vst [vmem:[%s2 + $0xf0] sm:$0xf] %v837
  %966 = vst [vmem:[%s2 + $0xf4] sm:$0xf] %v838
  %967 = vst [vmem:[%s2 + $0xf8] sm:$0xf] %v839
  %968 = vst [vmem:[%s2 + $0xfc] sm:$0xf] %v840
  %v969 = vadd.f32 %v395, %v398
  %v970 = vadd.f32 %v969, %v403
  %v971 = vadd.f32 %v970, %v406
  %v972 = vadd.f32 %v971, %v411
  %v973 = vadd.f32 %v972, %v414
  %v974 = vadd.f32 %v973, %v419
  %v975 = vadd.f32 %v974, %v422
  %v976 = vadd.f32 %v975, %v427
  %v977 = vadd.f32 %v976, %v430
  %v978 = vadd.f32 %v977, %v435
  %v979 = vadd.f32 %v978, %v438
  %v980 = vadd.f32 %v979, %v443
  %v981 = vadd.f32 %v980, %v446
  %v982 = vadd.f32 %v981, %v451
  %v983 = vadd.f32 %v982, %v454
  %v984 = vadd.f32 %v983, %v459
  %v985 = vadd.f32 %v984, %v462
  %v986 = vadd.f32 %v985, %v467
  %v987 = vadd.f32 %v986, %v470
  %v988 = vadd.f32 %v987, %v475
  %v989 = vadd.f32 %v988, %v478
  %v990 = vadd.f32 %v989, %v483
  %v991 = vadd.f32 %v990, %v486
  %v992 = vadd.f32 %v991, %v491
  %v993 = vadd.f32 %v992, %v494
  %v994 = vadd.f32 %v993, %v499
  %v995 = vadd.f32 %v994, %v502
  %v996 = vadd.f32 %v995, %v507
  %v997 = vadd.f32 %v996, %v510
  %v998 = vadd.f32 %v997, %v515
  %v999 = vadd.f32 %v998, %v518
  %v1000 = vadd.f32 %v999, %v523
  %v1001 = vadd.f32 %v1000, %v526
  %v1002 = vadd.f32 %v1001, %v531
  %v1003 = vadd.f32 %v1002, %v534
  %v1004 = vadd.f32 %v1003, %v539
  %v1005 = vadd.f32 %v1004, %v542
  %v1006 = vadd.f32 %v1005, %v547
  %v1007 = vadd.f32 %v1006, %v550
  %v1008 = vadd.f32 %v1007, %v555
  %v1009 = vadd.f32 %v1008, %v558
  %v1010 = vadd.f32 %v1009, %v563
  %v1011 = vadd.f32 %v1010, %v566
  %v1012 = vadd.f32 %v1011, %v571
  %v1013 = vadd.f32 %v1012, %v574
  %v1014 = vadd.f32 %v1013, %v579
  %v1015 = vadd.f32 %v1014, %v582
  %v1016 = vadd.f32 %v1015, %v587
  %v1017 = vadd.f32 %v1016, %v590
  %v1018 = vadd.f32 %v1017, %v595
  %v1019 = vadd.f32 %v1018, %v598
  %v1020 = vadd.f32 %v1019, %v603
  %v1021 = vadd.f32 %v1020, %v606
  %v1022 = vadd.f32 %v1021, %v611
  %v1023 = vadd.f32 %v1022, %v614
  %v1024 = vadd.f32 %v1023, %v619
  %v1025 = vadd.f32 %v1024, %v622
  %v1026 = vadd.f32 %v1025, %v627
  %v1027 = vadd.f32 %v1026, %v630
  %v1028 = vadd.f32 %v1027, %v635
  %v1029 = vadd.f32 %v1028, %v638
  %v1030 = vadd.f32 %v1029, %v643
  %v1031 = vadd.f32 %v1030, %v646
  %v1032 = vrot.slane %v1031, 4
  %v1033 = vadd.f32 %v1031, %v1032
  %v1034 = vrot.slane %v1033, 2
  %v1035 = vadd.f32 %v1033, %v1034
  %v1036 = vrot.slane %v1035, 1
  %v1037 = vadd.f32 %v1035, %v1036
  %1038 = vst [vmem:[%s3] sm:$0x1] %v1037
  %v1039 = vmul.f32 %v395, %v395
  %v1040 = vmul.f32 %v398, %v398
  %v1041 = vmul.f32 %v403, %v403
  %v1042 = vmul.f32 %v406, %v406
  %v1043 = vmul.f32 %v411, %v411
  %v1044 = vmul.f32 %v414, %v414
  %v1045 = vmul.f32 %v419, %v419
  %v1046 = vmul.f32 %v422, %v422
  %v1047 = vmul.f32 %v427, %v427
  %v1048 = vmul.f32 %v430, %v430
  %v1049 = vmul.f32 %v435, %v435
  %v1050 = vmul.f32 %v438, %v438
  %v1051 = vmul.f32 %v443, %v443
  %v1052 = vmul.f32 %v446, %v446
  %v1053 = vmul.f32 %v451, %v451
  %v1054 = vmul.f32 %v454, %v454
  %v1055 = vmul.f32 %v459, %v459
  %v1056 = vmul.f32 %v462, %v462
  %v1057 = vmul.f32 %v467, %v467
  %v1058 = vmul.f32 %v470, %v470
  %v1059 = vmul.f32 %v475, %v475
  %v1060 = vmul.f32 %v478, %v478
  %v1061 = vmul.f32 %v483, %v483
  %v1062 = vmul.f32 %v486, %v486
  %v1063 = vmul.f32 %v491, %v491
  %v1064 = vmul.f32 %v494, %v494
  %v1065 = vmul.f32 %v499, %v499
  %v1066 = vmul.f32 %v502, %v502
  %v1067 = vmul.f32 %v507, %v507
  %v1068 = vmul.f32 %v510, %v510
  %v1069 = vmul.f32 %v515, %v515
  %v1070 = vmul.f32 %v518, %v518
  %v1071 = vmul.f32 %v523, %v523
  %v1072 = vmul.f32 %v526, %v526
  %v1073 = vmul.f32 %v531, %v531
  %v1074 = vmul.f32 %v534, %v534
  %v1075 = vmul.f32 %v539, %v539
  %v1076 = vmul.f32 %v542, %v542
  %v1077 = vmul.f32 %v547, %v547
  %v1078 = vmul.f32 %v550, %v550
  %v1079 = vmul.f32 %v555, %v555
  %v1080 = vmul.f32 %v558, %v558
  %v1081 = vmul.f32 %v563, %v563
  %v1082 = vmul.f32 %v566, %v566
  %v1083 = vmul.f32 %v571, %v571
  %v1084 = vmul.f32 %v574, %v574
  %v1085 = vmul.f32 %v579, %v579
  %v1086 = vmul.f32 %v582, %v582
  %v1087 = vmul.f32 %v587, %v587
  %v1088 = vmul.f32 %v590, %v590
  %v1089 = vmul.f32 %v595, %v595
  %v1090 = vmul.f32 %v598, %v598
  %v1091 = vmul.f32 %v603, %v603
  %v1092 = vmul.f32 %v606, %v606
  %v1093 = vmul.f32 %v611, %v611
  %v1094 = vmul.f32 %v614, %v614
  %v1095 = vmul.f32 %v619, %v619
  %v1096 = vmul.f32 %v622, %v622
  %v1097 = vmul.f32 %v627, %v627
  %v1098 = vmul.f32 %v630, %v630
  %v1099 = vmul.f32 %v635, %v635
  %v1100 = vmul.f32 %v638, %v638
  %v1101 = vmul.f32 %v643, %v643
  %v1102 = vmul.f32 %v646, %v646
  %v1103 = vadd.f32 %v1039, %v1040
  %v1104 = vadd.f32 %v1103, %v1041
  %v1105 = vadd.f32 %v1104, %v1042
  %v1106 = vadd.f32 %v1105, %v1043
  %v1107 = vadd.f32 %v1106, %v1044
  %v1108 = vadd.f32 %v1107, %v1045
  %v1109 = vadd.f32 %v1108, %v1046
  %v1110 = vadd.f32 %v1109, %v1047
  %v1111 = vadd.f32 %v1110, %v1048
  %v1112 = vadd.f32 %v1111, %v1049
  %v1113 = vadd.f32 %v1112, %v1050
  %v1114 = vadd.f32 %v1113, %v1051
  %v1115 = vadd.f32 %v1114, %v1052
  %v1116 = vadd.f32 %v1115, %v1053
  %v1117 = vadd.f32 %v1116, %v1054
  %v1118 = vadd.f32 %v1117, %v1055
  %v1119 = vadd.f32 %v1118, %v1056
  %v1120 = vadd.f32 %v1119, %v1057
  %v1121 = vadd.f32 %v1120, %v1058
  %v1122 = vadd.f32 %v1121, %v1059
  %v1123 = vadd.f32 %v1122, %v1060
  %v1124 = vadd.f32 %v1123, %v1061
  %v1125 = vadd.f32 %v1124, %v1062
  %v1126 = vadd.f32 %v1125, %v1063
  %v1127 = vadd.f32 %v1126, %v1064
  %v1128 = vadd.f32 %v1127, %v1065
  %v1129 = vadd.f32 %v1128, %v1066
  %v1130 = vadd.f32 %v1129, %v1067
  %v1131 = vadd.f32 %v1130, %v1068
  %v1132 = vadd.f32 %v1131, %v1069
  %v1133 = vadd.f32 %v1132, %v1070
  %v1134 = vadd.f32 %v1133, %v1071
  %v1135 = vadd.f32 %v1134, %v1072
  %v1136 = vadd.f32 %v1135, %v1073
  %v1137 = vadd.f32 %v1136, %v1074
  %v1138 = vadd.f32 %v1137, %v1075
  %v1139 = vadd.f32 %v1138, %v1076
  %v1140 = vadd.f32 %v1139, %v1077
  %v1141 = vadd.f32 %v1140, %v1078
  %v1142 = vadd.f32 %v1141, %v1079
  %v1143 = vadd.f32 %v1142, %v1080
  %v1144 = vadd.f32 %v1143, %v1081
  %v1145 = vadd.f32 %v1144, %v1082
  %v1146 = vadd.f32 %v1145, %v1083
  %v1147 = vadd.f32 %v1146, %v1084
  %v1148 = vadd.f32 %v1147, %v1085
  %v1149 = vadd.f32 %v1148, %v1086
  %v1150 = vadd.f32 %v1149, %v1087
  %v1151 = vadd.f32 %v1150, %v1088
  %v1152 = vadd.f32 %v1151, %v1089
  %v1153 = vadd.f32 %v1152, %v1090
  %v1154 = vadd.f32 %v1153, %v1091
  %v1155 = vadd.f32 %v1154, %v1092
  %v1156 = vadd.f32 %v1155, %v1093
  %v1157 = vadd.f32 %v1156, %v1094
  %v1158 = vadd.f32 %v1157, %v1095
  %v1159 = vadd.f32 %v1158, %v1096
  %v1160 = vadd.f32 %v1159, %v1097
  %v1161 = vadd.f32 %v1160, %v1098
  %v1162 = vadd.f32 %v1161, %v1099
  %v1163 = vadd.f32 %v1162, %v1100
  %v1164 = vadd.f32 %v1163, %v1101
  %v1165 = vadd.f32 %v1164, %v1102
  %v1166 = vrot.slane %v1165, 4
  %v1167 = vadd.f32 %v1165, %v1166
  %v1168 = vrot.slane %v1167, 2
  %v1169 = vadd.f32 %v1167, %v1168
  %v1170 = vrot.slane %v1169, 1
  %v1171 = vadd.f32 %v1169, %v1170
  %1172 = vst [vmem:[%s4] sm:$0x1] %v1171
  // Predicated region
  $region10: #{basic_block_forward.5} parent=0 // pred_check
    _
  $region11: #{basic_block_forward.5} parent=0 // pred_check_branch
    %1174 = sbr.rel (0) target = $region13
  $region12: #{basic_block_forward.5} parent=0 // pred_region
    _
  $region13: #{basic_block_forward.5} parent=0 // pred_fallthru
    _
  // Predicated region
  $region14: #{basic_block_forward.5} parent=0 // pred_check
    _
  $region15: #{basic_block_forward.5} parent=0 // pred_check_branch
    %1176 = sbr.rel (0) target = $region17
  $region16: #{basic_block_forward.5} parent=0 // pred_region
    _
  $region17: #{basic_block_forward.5} parent=0 // pred_fallthru
    _
  // Predicated region
  $region18: #{basic_block_forward.5} parent=0 // pred_check
    _
  $region19: #{basic_block_forward.5} parent=0 // pred_check_branch
    %1178 = sbr.rel (0) target = $region21
  $region20: #{basic_block_forward.5} parent=0 // pred_region
    _
  $region21: #{basic_block_forward.5} parent=0 // pred_fallthru
    _
  // Predicated region
  $region22: #{basic_block_forward.5} parent=0 // pred_check
    _
  $region23: #{basic_block_forward.5} parent=0 // pred_check_branch
    %1180 = sbr.rel (0) target = $region25
  $region24: #{basic_block_forward.5} parent=0 // pred_region
    _
  $region25: #{basic_block_forward.5} parent=0 // pred_fallthru
    _
  // Predicated region
  $region26: #{basic_block_forward.5} parent=0 // pred_check
    _
  $region27: #{basic_block_forward.5} parent=0 // pred_check_branch
    %1182 = sbr.rel (0) target = $region29
  $region28: #{basic_block_forward.5} parent=0 // pred_region
    _
  $region29: #{basic_block_forward.5} parent=0 // pred_fallthru
    _
  // Predicated region
  $region30: #{basic_block_forward.5} parent=0 // pred_check
    _
  $region31: #{basic_block_forward.5} parent=0 // pred_check_branch
    %1184 = sbr.rel (0) target = $region33
  $region32: #{basic_block_forward.5} parent=0 // pred_region
    _
  $region33: #{basic_block_forward.5} parent=0 // pred_fallthru
    _

// kernel: basic_block_forward.7
$region0: #{basic_block_forward.7}
  #allocation0 [shape = 'u32[]', space=smem, size = 0x4, offset = 0x4, fixed_abs, tag = 'smem constant byte address 0x4 - core index']
  #allocation1 [shape = 'u32[144,128]{1,0:T(1,128)}', space=vmem, size = 0x12000, scoped, tag = 'internal scratch']
  %s0 = inlined_call_operand.vmem [shape: bf16[512,72], index: 0, kind: input, shape index: {}]
  %s1 = inlined_call_operand.vmem [shape: bf16[72,128], index: 1, kind: input, shape index: {}]
  %s2 = inlined_call_operand.vmem [shape: bf16[512,128], index: 2, kind: output, shape index: {0}]
  %s3 = inlined_call_operand.vmem [shape: f32[1,1,128], index: 3, kind: output, shape index: {1}]
  %s4 = inlined_call_operand.vmem [shape: f32[1,1,128], index: 4, kind: output, shape index: {2}]
  %5 = xla_tuple %s2, %s3, %s4
  %s6 = sld [smem:[#allocation0]]
  $region34: #{basic_block_forward.7} parent=0
    _
  %s8 = ssub.s32 1, %s6
  %s9 = scalar_select 0, %s8, %s6
  // Predicated region
  $region2: #{basic_block_forward.7} parent=0 // pred_check
    _
  $region3: #{basic_block_forward.7} parent=0 // pred_check_branch
    %11 = sbr.rel (0) target = $region5
  $region4: #{basic_block_forward.7} parent=0 // pred_region
    _
  $region5: #{basic_block_forward.7} parent=0 // pred_fallthru
    _
  // Predicated region
  $region6: #{basic_block_forward.7} parent=0 // pred_check
    _
  $region7: #{basic_block_forward.7} parent=0 // pred_check_branch
    %13 = sbr.rel (0) target = $region9
  $region8: #{basic_block_forward.7} parent=0 // pred_region
    _
  $region9: #{basic_block_forward.7} parent=0 // pred_fallthru
    _
  %v15 = vld [vmem:[%s0] sm:$0xf]
  %v16 = vld [vmem:[%s0 + $0x4] sm:$0xf]
  %v17 = vld [vmem:[%s0 + $0x8] sm:$0xf]
  %v18 = vld [vmem:[%s0 + $0xc] sm:$0xf]
  %v19 = vld [vmem:[%s0 + $0x10] sm:$0xf]
  %v20 = vld [vmem:[%s0 + $0x14] sm:$0xf]
  %v21 = vld [vmem:[%s0 + $0x18] sm:$0xf]
  %v22 = vld [vmem:[%s0 + $0x1c] sm:$0xf]
  %v23 = vld [vmem:[%s0 + $0x20] sm:$0xf]
  %v24 = vld [vmem:[%s0 + $0x24] sm:$0xf]
  %v25 = vld [vmem:[%s0 + $0x28] sm:$0xf]
  %v26 = vld [vmem:[%s0 + $0x2c] sm:$0xf]
  %v27 = vld [vmem:[%s0 + $0x30] sm:$0xf]
  %v28 = vld [vmem:[%s0 + $0x34] sm:$0xf]
  %v29 = vld [vmem:[%s0 + $0x38] sm:$0xf]
  %v30 = vld [vmem:[%s0 + $0x3c] sm:$0xf]
  %v31 = vld [vmem:[%s0 + $0x40] sm:$0xf]
  %v32 = vld [vmem:[%s0 + $0x44] sm:$0xf]
  %v33 = vld [vmem:[%s0 + $0x48] sm:$0xf]
  %v34 = vld [vmem:[%s0 + $0x4c] sm:$0xf]
  %v35 = vld [vmem:[%s0 + $0x50] sm:$0xf]
  %v36 = vld [vmem:[%s0 + $0x54] sm:$0xf]
  %v37 = vld [vmem:[%s0 + $0x58] sm:$0xf]
  %v38 = vld [vmem:[%s0 + $0x5c] sm:$0xf]
  %v39 = vld [vmem:[%s0 + $0x60] sm:$0xf]
  %v40 = vld [vmem:[%s0 + $0x64] sm:$0xf]
  %v41 = vld [vmem:[%s0 + $0x68] sm:$0xf]
  %v42 = vld [vmem:[%s0 + $0x6c] sm:$0xf]
  %v43 = vld [vmem:[%s0 + $0x70] sm:$0xf]
  %v44 = vld [vmem:[%s0 + $0x74] sm:$0xf]
  %v45 = vld [vmem:[%s0 + $0x78] sm:$0xf]
  %v46 = vld [vmem:[%s0 + $0x7c] sm:$0xf]
  %v47 = vld [vmem:[%s0 + $0x80] sm:$0xf]
  %v48 = vld [vmem:[%s0 + $0x84] sm:$0xf]
  %v49 = vld [vmem:[%s0 + $0x88] sm:$0xf]
  %v50 = vld [vmem:[%s0 + $0x8c] sm:$0xf]
  %v51 = vld [vmem:[%s0 + $0x90] sm:$0xf]
  %v52 = vld [vmem:[%s0 + $0x94] sm:$0xf]
  %v53 = vld [vmem:[%s0 + $0x98] sm:$0xf]
  %v54 = vld [vmem:[%s0 + $0x9c] sm:$0xf]
  %v55 = vld [vmem:[%s0 + $0xa0] sm:$0xf]
  %v56 = vld [vmem:[%s0 + $0xa4] sm:$0xf]
  %v57 = vld [vmem:[%s0 + $0xa8] sm:$0xf]
  %v58 = vld [vmem:[%s0 + $0xac] sm:$0xf]
  %v59 = vld [vmem:[%s0 + $0xb0] sm:$0xf]
  %v60 = vld [vmem:[%s0 + $0xb4] sm:$0xf]
  %v61 = vld [vmem:[%s0 + $0xb8] sm:$0xf]
  %v62 = vld [vmem:[%s0 + $0xbc] sm:$0xf]
  %v63 = vld [vmem:[%s0 + $0xc0] sm:$0xf]
  %v64 = vld [vmem:[%s0 + $0xc4] sm:$0xf]
  %v65 = vld [vmem:[%s0 + $0xc8] sm:$0xf]
  %v66 = vld [vmem:[%s0 + $0xcc] sm:$0xf]
  %v67 = vld [vmem:[%s0 + $0xd0] sm:$0xf]
  %v68 = vld [vmem:[%s0 + $0xd4] sm:$0xf]
  %v69 = vld [vmem:[%s0 + $0xd8] sm:$0xf]
  %v70 = vld [vmem:[%s0 + $0xdc] sm:$0xf]
  %v71 = vld [vmem:[%s0 + $0xe0] sm:$0xf]
  %v72 = vld [vmem:[%s0 + $0xe4] sm:$0xf]
  %v73 = vld [vmem:[%s0 + $0xe8] sm:$0xf]
  %v74 = vld [vmem:[%s0 + $0xec] sm:$0xf]
  %v75 = vld [vmem:[%s0 + $0xf0] sm:$0xf]
  %v76 = vld [vmem:[%s0 + $0xf4] sm:$0xf]
  %v77 = vld [vmem:[%s0 + $0xf8] sm:$0xf]
  %v78 = vld [vmem:[%s0 + $0xfc] sm:$0xf]
  %v79 = vld [vmem:[%s1] sm:$0xf]
  %v80 = vld [vmem:[%s1 + $0x4] sm:$0xf]
  %v81 = vld [vmem:[%s1 + $0x8] sm:$0xf]
  %v82 = vld [vmem:[%s1 + $0xc] sm:$0xf]
  %v83 = vld [vmem:[%s1 + $0x10] sm:$0xf]
  %v84 = vld [vmem:[%s1 + $0x14] sm:$0xf]
  %v85 = vld [vmem:[%s1 + $0x18] sm:$0xf]
  %v86 = vld [vmem:[%s1 + $0x1c] sm:$0xf]
  %v87 = vld [vmem:[%s1 + $0x20] sm:$0xf]
  %v152 = vunpack.c.l.b16 %v15
  %v153 = vunpack.c.l.b16 %v16
  %v154 = vunpack.c.l.b16 %v17
  %v155 = vunpack.c.l.b16 %v18
  %v156 = vunpack.c.l.b16 %v19
  %v157 = vunpack.c.l.b16 %v20
  %v158 = vunpack.c.l.b16 %v21
  %v159 = vunpack.c.l.b16 %v22
  %v160 = vunpack.c.l.b16 %v23
  %v161 = vunpack.c.l.b16 %v24
  %v162 = vunpack.c.l.b16 %v25
  %v163 = vunpack.c.l.b16 %v26
  %v164 = vunpack.c.l.b16 %v27
  %v165 = vunpack.c.l.b16 %v28
  %v166 = vunpack.c.l.b16 %v29
  %v167 = vunpack.c.l.b16 %v30
  %v168 = vunpack.c.l.b16 %v31
  %v169 = vunpack.c.l.b16 %v32
  %v170 = vunpack.c.l.b16 %v33
  %v171 = vunpack.c.l.b16 %v34
  %v172 = vunpack.c.l.b16 %v35
  %v173 = vunpack.c.l.b16 %v36
  %v174 = vunpack.c.l.b16 %v37
  %v175 = vunpack.c.l.b16 %v38
  %v176 = vunpack.c.l.b16 %v39
  %v177 = vunpack.c.l.b16 %v40
  %v178 = vunpack.c.l.b16 %v41
  %v179 = vunpack.c.l.b16 %v42
  %v180 = vunpack.c.l.b16 %v43
  %v181 = vunpack.c.l.b16 %v44
  %v182 = vunpack.c.l.b16 %v45
  %v183 = vunpack.c.l.b16 %v46
  %v184 = vunpack.c.l.b16 %v47
  %v185 = vunpack.c.l.b16 %v48
  %v186 = vunpack.c.l.b16 %v49
  %v187 = vunpack.c.l.b16 %v50
  %v188 = vunpack.c.l.b16 %v51
  %v189 = vunpack.c.l.b16 %v52
  %v190 = vunpack.c.l.b16 %v53
  %v191 = vunpack.c.l.b16 %v54
  %v192 = vunpack.c.l.b16 %v55
  %v193 = vunpack.c.l.b16 %v56
  %v194 = vunpack.c.l.b16 %v57
  %v195 = vunpack.c.l.b16 %v58
  %v196 = vunpack.c.l.b16 %v59
  %v197 = vunpack.c.l.b16 %v60
  %v198 = vunpack.c.l.b16 %v61
  %v199 = vunpack.c.l.b16 %v62
  %v200 = vunpack.c.l.b16 %v63
  %v201 = vunpack.c.l.b16 %v64
  %v202 = vunpack.c.l.b16 %v65
  %v203 = vunpack.c.l.b16 %v66
  %v204 = vunpack.c.l.b16 %v67
  %v205 = vunpack.c.l.b16 %v68
  %v206 = vunpack.c.l.b16 %v69
  %v207 = vunpack.c.l.b16 %v70
  %v208 = vunpack.c.l.b16 %v71
  %v209 = vunpack.c.l.b16 %v72
  %v210 = vunpack.c.l.b16 %v73
  %v211 = vunpack.c.l.b16 %v74
  %v212 = vunpack.c.l.b16 %v75
  %v213 = vunpack.c.l.b16 %v76
  %v214 = vunpack.c.l.b16 %v77
  %v215 = vunpack.c.l.b16 %v78
  %v216 = vpack.c.b16 %v153, %v152
  %v217 = vpack.c.b16 %v155, %v154
  %v218 = vpack.c.b16 %v157, %v156
  %v219 = vpack.c.b16 %v159, %v158
  %v220 = vpack.c.b16 %v161, %v160
  %v221 = vpack.c.b16 %v163, %v162
  %v222 = vpack.c.b16 %v165, %v164
  %v223 = vpack.c.b16 %v167, %v166
  %v224 = vpack.c.b16 %v169, %v168
  %v225 = vpack.c.b16 %v171, %v170
  %v226 = vpack.c.b16 %v173, %v172
  %v227 = vpack.c.b16 %v175, %v174
  %v228 = vpack.c.b16 %v177, %v176
  %v229 = vpack.c.b16 %v179, %v178
  %v230 = vpack.c.b16 %v181, %v180
  %v231 = vpack.c.b16 %v183, %v182
  %v232 = vpack.c.b16 %v185, %v184
  %v233 = vpack.c.b16 %v187, %v186
  %v234 = vpack.c.b16 %v189, %v188
  %v235 = vpack.c.b16 %v191, %v190
  %v236 = vpack.c.b16 %v193, %v192
  %v237 = vpack.c.b16 %v195, %v194
  %v238 = vpack.c.b16 %v197, %v196
  %v239 = vpack.c.b16 %v199, %v198
  %v240 = vpack.c.b16 %v201, %v200
  %v241 = vpack.c.b16 %v203, %v202
  %v242 = vpack.c.b16 %v205, %v204
  %v243 = vpack.c.b16 %v207, %v206
  %v244 = vpack.c.b16 %v209, %v208
  %v245 = vpack.c.b16 %v211, %v210
  %v246 = vpack.c.b16 %v213, %v212
  %v247 = vpack.c.b16 %v215, %v214
  %v257 = vunpack.c.l.b16 %v79
  %v258 = vunpack.c.l.b16 %v80
  %v259 = vunpack.c.l.b16 %v81
  %v260 = vunpack.c.l.b16 %v82
  %v261 = vunpack.c.l.b16 %v83
  %v262 = vunpack.c.l.b16 %v84
  %v263 = vunpack.c.l.b16 %v85
  %v264 = vunpack.c.l.b16 %v86
  %v265 = vunpack.c.l.b16 %v87
  %v266 = vpack.c.b16 %v258, %v257
  %v267 = vpack.c.b16 %v260, %v259
  %v268 = vpack.c.b16 %v262, %v261
  %v269 = vpack.c.b16 %v264, %v263
  %v270 = vpack.c.b16 %v265, %v265
  %vm275 = vcmask 588800
  %v277 = vsel %vm275, %v216, 0
  %v280 = vsel %vm275, %v217, 0
  %v283 = vsel %vm275, %v218, 0
  %v286 = vsel %vm275, %v219, 0
  %v289 = vsel %vm275, %v220, 0
  %v292 = vsel %vm275, %v221, 0
  %v295 = vsel %vm275, %v222, 0
  %v298 = vsel %vm275, %v223, 0
  %v301 = vsel %vm275, %v224, 0
  %v304 = vsel %vm275, %v225, 0
  %v307 = vsel %vm275, %v226, 0
  %v310 = vsel %vm275, %v227, 0
  %v313 = vsel %vm275, %v228, 0
  %v316 = vsel %vm275, %v229, 0
  %v319 = vsel %vm275, %v230, 0
  %v322 = vsel %vm275, %v231, 0
  %v325 = vsel %vm275, %v232, 0
  %v328 = vsel %vm275, %v233, 0
  %v331 = vsel %vm275, %v234, 0
  %v334 = vsel %vm275, %v235, 0
  %v337 = vsel %vm275, %v236, 0
  %v340 = vsel %vm275, %v237, 0
  %v343 = vsel %vm275, %v238, 0
  %v346 = vsel %vm275, %v239, 0
  %v349 = vsel %vm275, %v240, 0
  %v352 = vsel %vm275, %v241, 0
  %v355 = vsel %vm275, %v242, 0
  %v358 = vsel %vm275, %v243, 0
  %v361 = vsel %vm275, %v244, 0
  %v364 = vsel %vm275, %v245, 0
  %v367 = vsel %vm275, %v246, 0
  %v370 = vsel %vm275, %v247, 0
  %vm372 = vcmask 1043456
  %v374 = vsel %vm372, %v270, 0
  %376 = vmatprep.subr.bf16.mxu0 0
  %377 = vmatpush1.bf16.msra.mxu0 %v266
  %378 = vmatprep.subr.bf16.mxu0 0
  %379 = vmatpush1.bf16.msra.mxu0 %v267
  %380 = vmatprep.subr.bf16.mxu0 0
  %381 = vmatpush1.bf16.msra.mxu0 %v268
  %382 = vmatprep.subr.bf16.mxu0 0
  %383 = vmatpush1.bf16.msra.mxu0 %v269
  %384 = vmatprep.subr.bf16.mxu0 0
  %385 = vmatpush1.bf16.msra.mxu0 %v374
  %386 = vmatprep.subr.bf16.mxu0 0
  %387 = vmatpush1.bf16.msra.mxu0 0
  %388 = vmatprep.subr.bf16.mxu0 0
  %389 = vmatpush1.bf16.msra.mxu0 0
  %390 = vmatprep.subr.bf16.mxu0 0
  %391 = vmatpush1.bf16.msra.mxu0 0
  %392 = vmatprep.subr.bf16.mxu0 0
  %393 = vmatpush1.bf16.msra.mxu0 0
  %394 = vmatprep.subr.bf16.mxu0 0
  %395 = vmatpush1.bf16.msra.mxu0 0
  %396 = vmatprep.subr.bf16.mxu0 0
  %397 = vmatpush1.bf16.msra.mxu0 0
  %398 = vmatprep.subr.bf16.mxu0 0
  %399 = vmatpush1.bf16.msra.mxu0 0
  %400 = vmatprep.subr.bf16.mxu0 0
  %401 = vmatpush1.bf16.msra.mxu0 0
  %402 = vmatprep.subr.bf16.mxu0 0
  %403 = vmatpush1.bf16.msra.mxu0 0
  %404 = vmatprep.subr.bf16.mxu0 0
  %405 = vmatpush1.bf16.msra.mxu0 0
  %406 = vmatprep.subr.bf16.mxu0 0
  %407 = vmatpush1.bf16.msra.mxu0 0
  %408 = vmatprep.mubr.bf16.mxu0 0
  %409 = vmatmul.mubr.bf16.gmra.mrb[0].mxu0 %v277
  %v410 = vpop.f32.mrb[0].mxu0
  %v411 = vadd.f32 0.0, %v410
  %v412 = vpop.f32.mrb[0].mxu0
  %v413 = vpop.f32.mrb[0].mxu0
  %v414 = vadd.f32 0.0, %v413
  %v415 = vpop.f32.mrb[0].mxu0
  %416 = vmatprep.mubr.bf16.mxu0 0
  %417 = vmatmul.mubr.bf16.gmra.mrb[0].mxu0 %v280
  %v418 = vpop.f32.mrb[0].mxu0
  %v419 = vadd.f32 0.0, %v418
  %v420 = vpop.f32.mrb[0].mxu0
  %v421 = vpop.f32.mrb[0].mxu0
  %v422 = vadd.f32 0.0, %v421
  %v423 = vpop.f32.mrb[0].mxu0
  %424 = vmatprep.mubr.bf16.mxu0 0
  %425 = vmatmul.mubr.bf16.gmra.mrb[0].mxu0 %v283
  %v426 = vpop.f32.mrb[0].mxu0
  %v427 = vadd.f32 0.0, %v426
  %v428 = vpop.f32.mrb[0].mxu0
  %v429 = vpop.f32.mrb[0].mxu0
  %v430 = vadd.f32 0.0, %v429
  %v431 = vpop.f32.mrb[0].mxu0
  %432 = vmatprep.mubr.bf16.mxu0 0
  %433 = vmatmul.mubr.bf16.gmra.mrb[0].mxu0 %v286
  %v434 = vpop.f32.mrb[0].mxu0
  %v435 = vadd.f32 0.0, %v434
  %v436 = vpop.f32.mrb[0].mxu0
  %v437 = vpop.f32.mrb[0].mxu0
  %v438 = vadd.f32 0.0, %v437
  %v439 = vpop.f32.mrb[0].mxu0
  %440 = vmatprep.mubr.bf16.mxu0 0
  %441 = vmatmul.mubr.bf16.gmra.mrb[0].mxu0 %v289
  %v442 = vpop.f32.mrb[0].mxu0
  %v443 = vadd.f32 0.0, %v442
  %v444 = vpop.f32.mrb[0].mxu0
  %v445 = vpop.f32.mrb[0].mxu0
  %v446 = vadd.f32 0.0, %v445
  %v447 = vpop.f32.mrb[0].mxu0
  %448 = vmatprep.mubr.bf16.mxu0 0
  %449 = vmatmul.mubr.bf16.gmra.mrb[0].mxu0 %v292
  %v450 = vpop.f32.mrb[0].mxu0
  %v451 = vadd.f32 0.0, %v450
  %v452 = vpop.f32.mrb[0].mxu0
  %v453 = vpop.f32.mrb[0].mxu0
  %v454 = vadd.f32 0.0, %v453
  %v455 = vpop.f32.mrb[0].mxu0
  %456 = vmatprep.mubr.bf16.mxu0 0
  %457 = vmatmul.mubr.bf16.gmra.mrb[0].mxu0 %v295
  %v458 = vpop.f32.mrb[0].mxu0
  %v459 = vadd.f32 0.0, %v458
  %v460 = vpop.f32.mrb[0].mxu0
  %v461 = vpop.f32.mrb[0].mxu0
  %v462 = vadd.f32 0.0, %v461
  %v463 = vpop.f32.mrb[0].mxu0
  %464 = vmatprep.mubr.bf16.mxu0 0
  %465 = vmatmul.mubr.bf16.gmra.mrb[0].mxu0 %v298
  %v466 = vpop.f32.mrb[0].mxu0
  %v467 = vadd.f32 0.0, %v466
  %v468 = vpop.f32.mrb[0].mxu0
  %v469 = vpop.f32.mrb[0].mxu0
  %v470 = vadd.f32 0.0, %v469
  %v471 = vpop.f32.mrb[0].mxu0
  %472 = vmatprep.mubr.bf16.mxu0 0
  %473 = vmatmul.mubr.bf16.gmra.mrb[0].mxu0 %v301
  %v474 = vpop.f32.mrb[0].mxu0
  %v475 = vadd.f32 0.0, %v474
  %v476 = vpop.f32.mrb[0].mxu0
  %v477 = vpop.f32.mrb[0].mxu0
  %v478 = vadd.f32 0.0, %v477
  %v479 = vpop.f32.mrb[0].mxu0
  %480 = vmatprep.mubr.bf16.mxu0 0
  %481 = vmatmul.mubr.bf16.gmra.mrb[0].mxu0 %v304
  %v482 = vpop.f32.mrb[0].mxu0
  %v483 = vadd.f32 0.0, %v482
  %v484 = vpop.f32.mrb[0].mxu0
  %v485 = vpop.f32.mrb[0].mxu0
  %v486 = vadd.f32 0.0, %v485
  %v487 = vpop.f32.mrb[0].mxu0
  %488 = vmatprep.mubr.bf16.mxu0 0
  %489 = vmatmul.mubr.bf16.gmra.mrb[0].mxu0 %v307
  %v490 = vpop.f32.mrb[0].mxu0
  %v491 = vadd.f32 0.0, %v490
  %v492 = vpop.f32.mrb[0].mxu0
  %v493 = vpop.f32.mrb[0].mxu0
  %v494 = vadd.f32 0.0, %v493
  %v495 = vpop.f32.mrb[0].mxu0
  %496 = vmatprep.mubr.bf16.mxu0 0
  %497 = vmatmul.mubr.bf16.gmra.mrb[0].mxu0 %v310
  %v498 = vpop.f32.mrb[0].mxu0
  %v499 = vadd.f32 0.0, %v498
  %v500 = vpop.f32.mrb[0].mxu0
  %v501 = vpop.f32.mrb[0].mxu0
  %v502 = vadd.f32 0.0, %v501
  %v503 = vpop.f32.mrb[0].mxu0
  %504 = vmatprep.mubr.bf16.mxu0 0
  %505 = vmatmul.mubr.bf16.gmra.mrb[0].mxu0 %v313
  %v506 = vpop.f32.mrb[0].mxu0
  %v507 = vadd.f32 0.0, %v506
  %v508 = vpop.f32.mrb[0].mxu0
  %v509 = vpop.f32.mrb[0].mxu0
  %v510 = vadd.f32 0.0, %v509
  %v511 = vpop.f32.mrb[0].mxu0
  %512 = vmatprep.mubr.bf16.mxu0 0
  %513 = vmatmul.mubr.bf16.gmra.mrb[0].mxu0 %v316
  %v514 = vpop.f32.mrb[0].mxu0
  %v515 = vadd.f32 0.0, %v514
  %v516 = vpop.f32.mrb[0].mxu0
  %v517 = vpop.f32.mrb[0].mxu0
  %v518 = vadd.f32 0.0, %v517
  %v519 = vpop.f32.mrb[0].mxu0
  %520 = vmatprep.mubr.bf16.mxu0 0
  %521 = vmatmul.mubr.bf16.gmra.mrb[0].mxu0 %v319
  %v522 = vpop.f32.mrb[0].mxu0
  %v523 = vadd.f32 0.0, %v522
  %v524 = vpop.f32.mrb[0].mxu0
  %v525 = vpop.f32.mrb[0].mxu0
  %v526 = vadd.f32 0.0, %v525
  %v527 = vpop.f32.mrb[0].mxu0
  %528 = vmatprep.mubr.bf16.mxu0 0
  %529 = vmatmul.mubr.bf16.gmra.mrb[0].mxu0 %v322
  %v530 = vpop.f32.mrb[0].mxu0
  %v531 = vadd.f32 0.0, %v530
  %v532 = vpop.f32.mrb[0].mxu0
  %v533 = vpop.f32.mrb[0].mxu0
  %v534 = vadd.f32 0.0, %v533
  %v535 = vpop.f32.mrb[0].mxu0
  %536 = vmatprep.mubr.bf16.mxu0 0
  %537 = vmatmul.mubr.bf16.gmra.mrb[0].mxu0 %v325
  %v538 = vpop.f32.mrb[0].mxu0
  %v539 = vadd.f32 0.0, %v538
  %v540 = vpop.f32.mrb[0].mxu0
  %v541 = vpop.f32.mrb[0].mxu0
  %v542 = vadd.f32 0.0, %v541
  %v543 = vpop.f32.mrb[0].mxu0
  %544 = vmatprep.mubr.bf16.mxu0 0
  %545 = vmatmul.mubr.bf16.gmra.mrb[0].mxu0 %v328
  %v546 = vpop.f32.mrb[0].mxu0
  %v547 = vadd.f32 0.0, %v546
  %v548 = vpop.f32.mrb[0].mxu0
  %v549 = vpop.f32.mrb[0].mxu0
  %v550 = vadd.f32 0.0, %v549
  %v551 = vpop.f32.mrb[0].mxu0
  %552 = vmatprep.mubr.bf16.mxu0 0
  %553 = vmatmul.mubr.bf16.gmra.mrb[0].mxu0 %v331
  %v554 = vpop.f32.mrb[0].mxu0
  %v555 = vadd.f32 0.0, %v554
  %v556 = vpop.f32.mrb[0].mxu0
  %v557 = vpop.f32.mrb[0].mxu0
  %v558 = vadd.f32 0.0, %v557
  %v559 = vpop.f32.mrb[0].mxu0
  %560 = vmatprep.mubr.bf16.mxu0 0
  %561 = vmatmul.mubr.bf16.gmra.mrb[0].mxu0 %v334
  %v562 = vpop.f32.mrb[0].mxu0
  %v563 = vadd.f32 0.0, %v562
  %v564 = vpop.f32.mrb[0].mxu0
  %v565 = vpop.f32.mrb[0].mxu0
  %v566 = vadd.f32 0.0, %v565
  %v567 = vpop.f32.mrb[0].mxu0
  %568 = vmatprep.mubr.bf16.mxu0 0
  %569 = vmatmul.mubr.bf16.gmra.mrb[0].mxu0 %v337
  %v570 = vpop.f32.mrb[0].mxu0
  %v571 = vadd.f32 0.0, %v570
  %v572 = vpop.f32.mrb[0].mxu0
  %v573 = vpop.f32.mrb[0].mxu0
  %v574 = vadd.f32 0.0, %v573
  %v575 = vpop.f32.mrb[0].mxu0
  %576 = vmatprep.mubr.bf16.mxu0 0
  %577 = vmatmul.mubr.bf16.gmra.mrb[0].mxu0 %v340
  %v578 = vpop.f32.mrb[0].mxu0
  %v579 = vadd.f32 0.0, %v578
  %v580 = vpop.f32.mrb[0].mxu0
  %v581 = vpop.f32.mrb[0].mxu0
  %v582 = vadd.f32 0.0, %v581
  %v583 = vpop.f32.mrb[0].mxu0
  %584 = vmatprep.mubr.bf16.mxu0 0
  %585 = vmatmul.mubr.bf16.gmra.mrb[0].mxu0 %v343
  %v586 = vpop.f32.mrb[0].mxu0
  %v587 = vadd.f32 0.0, %v586
  %v588 = vpop.f32.mrb[0].mxu0
  %v589 = vpop.f32.mrb[0].mxu0
  %v590 = vadd.f32 0.0, %v589
  %v591 = vpop.f32.mrb[0].mxu0
  %592 = vmatprep.mubr.bf16.mxu0 0
  %593 = vmatmul.mubr.bf16.gmra.mrb[0].mxu0 %v346
  %v594 = vpop.f32.mrb[0].mxu0
  %v595 = vadd.f32 0.0, %v594
  %v596 = vpop.f32.mrb[0].mxu0
  %v597 = vpop.f32.mrb[0].mxu0
  %v598 = vadd.f32 0.0, %v597
  %v599 = vpop.f32.mrb[0].mxu0
  %600 = vmatprep.mubr.bf16.mxu0 0
  %601 = vmatmul.mubr.bf16.gmra.mrb[0].mxu0 %v349
  %v602 = vpop.f32.mrb[0].mxu0
  %v603 = vadd.f32 0.0, %v602
  %v604 = vpop.f32.mrb[0].mxu0
  %v605 = vpop.f32.mrb[0].mxu0
  %v606 = vadd.f32 0.0, %v605
  %v607 = vpop.f32.mrb[0].mxu0
  %608 = vmatprep.mubr.bf16.mxu0 0
  %609 = vmatmul.mubr.bf16.gmra.mrb[0].mxu0 %v352
  %v610 = vpop.f32.mrb[0].mxu0
  %v611 = vadd.f32 0.0, %v610
  %v612 = vpop.f32.mrb[0].mxu0
  %v613 = vpop.f32.mrb[0].mxu0
  %v614 = vadd.f32 0.0, %v613
  %v615 = vpop.f32.mrb[0].mxu0
  %616 = vmatprep.mubr.bf16.mxu0 0
  %617 = vmatmul.mubr.bf16.gmra.mrb[0].mxu0 %v355
  %v618 = vpop.f32.mrb[0].mxu0
  %v619 = vadd.f32 0.0, %v618
  %v620 = vpop.f32.mrb[0].mxu0
  %v621 = vpop.f32.mrb[0].mxu0
  %v622 = vadd.f32 0.0, %v621
  %v623 = vpop.f32.mrb[0].mxu0
  %624 = vmatprep.mubr.bf16.mxu0 0
  %625 = vmatmul.mubr.bf16.gmra.mrb[0].mxu0 %v358
  %v626 = vpop.f32.mrb[0].mxu0
  %v627 = vadd.f32 0.0, %v626
  %v628 = vpop.f32.mrb[0].mxu0
  %v629 = vpop.f32.mrb[0].mxu0
  %v630 = vadd.f32 0.0, %v629
  %v631 = vpop.f32.mrb[0].mxu0
  %632 = vmatprep.mubr.bf16.mxu0 0
  %633 = vmatmul.mubr.bf16.gmra.mrb[0].mxu0 %v361
  %v634 = vpop.f32.mrb[0].mxu0
  %v635 = vadd.f32 0.0, %v634
  %v636 = vpop.f32.mrb[0].mxu0
  %v637 = vpop.f32.mrb[0].mxu0
  %v638 = vadd.f32 0.0, %v637
  %v639 = vpop.f32.mrb[0].mxu0
  %640 = vmatprep.mubr.bf16.mxu0 0
  %641 = vmatmul.mubr.bf16.gmra.mrb[0].mxu0 %v364
  %v642 = vpop.f32.mrb[0].mxu0
  %v643 = vadd.f32 0.0, %v642
  %v644 = vpop.f32.mrb[0].mxu0
  %v645 = vpop.f32.mrb[0].mxu0
  %v646 = vadd.f32 0.0, %v645
  %v647 = vpop.f32.mrb[0].mxu0
  %648 = vmatprep.mubr.bf16.mxu0 0
  %649 = vmatmul.mubr.bf16.gmra.mrb[0].mxu0 %v367
  %v650 = vpop.f32.mrb[0].mxu0
  %v651 = vadd.f32 0.0, %v650
  %v652 = vpop.f32.mrb[0].mxu0
  %v653 = vpop.f32.mrb[0].mxu0
  %v654 = vadd.f32 0.0, %v653
  %v655 = vpop.f32.mrb[0].mxu0
  %656 = vmatprep.mubr.bf16.mxu0 0
  %657 = vmatmul.mubr.bf16.gmra.mrb[0].mxu0 %v370
  %v658 = vpop.f32.mrb[0].mxu0
  %v659 = vadd.f32 0.0, %v658
  %v660 = vpop.f32.mrb[0].mxu0
  %v661 = vpop.f32.mrb[0].mxu0
  %v662 = vadd.f32 0.0, %v661
  %v663 = vpop.f32.mrb[0].mxu0
  %664 = vdwg.mxu0
  %v665 = vpack.c.bf16 %v414, %v411
  %v666 = vpack.c.bf16 %v422, %v419
  %v667 = vpack.c.bf16 %v430, %v427
  %v668 = vpack.c.bf16 %v438, %v435
  %v669 = vpack.c.bf16 %v446, %v443
  %v670 = vpack.c.bf16 %v454, %v451
  %v671 = vpack.c.bf16 %v462, %v459
  %v672 = vpack.c.bf16 %v470, %v467
  %v673 = vpack.c.bf16 %v478, %v475
  %v674 = vpack.c.bf16 %v486, %v483
  %v675 = vpack.c.bf16 %v494, %v491
  %v676 = vpack.c.bf16 %v502, %v499
  %v677 = vpack.c.bf16 %v510, %v507
  %v678 = vpack.c.bf16 %v518, %v515
  %v679 = vpack.c.bf16 %v526, %v523
  %v680 = vpack.c.bf16 %v534, %v531
  %v681 = vpack.c.bf16 %v542, %v539
  %v682 = vpack.c.bf16 %v550, %v547
  %v683 = vpack.c.bf16 %v558, %v555
  %v684 = vpack.c.bf16 %v566, %v563
  %v685 = vpack.c.bf16 %v574, %v571
  %v686 = vpack.c.bf16 %v582, %v579
  %v687 = vpack.c.bf16 %v590, %v587
  %v688 = vpack.c.bf16 %v598, %v595
  %v689 = vpack.c.bf16 %v606, %v603
  %v690 = vpack.c.bf16 %v614, %v611
  %v691 = vpack.c.bf16 %v622, %v619
  %v692 = vpack.c.bf16 %v630, %v627
  %v693 = vpack.c.bf16 %v638, %v635
  %v694 = vpack.c.bf16 %v646, %v643
  %v695 = vpack.c.bf16 %v654, %v651
  %v696 = vpack.c.bf16 %v662, %v659
  %v729 = vunpack.c.l.b16 %v665
  %v730 = vunpack.c.h.b16 %v665
  %v731 = vunpack.c.l.b16 %v666
  %v732 = vunpack.c.h.b16 %v666
  %v733 = vunpack.c.l.b16 %v667
  %v734 = vunpack.c.h.b16 %v667
  %v735 = vunpack.c.l.b16 %v668
  %v736 = vunpack.c.h.b16 %v668
  %v737 = vunpack.c.l.b16 %v669
  %v738 = vunpack.c.h.b16 %v669
  %v739 = vunpack.c.l.b16 %v670
  %v740 = vunpack.c.h.b16 %v670
  %v741 = vunpack.c.l.b16 %v671
  %v742 = vunpack.c.h.b16 %v671
  %v743 = vunpack.c.l.b16 %v672
  %v744 = vunpack.c.h.b16 %v672
  %v745 = vunpack.c.l.b16 %v673
  %v746 = vunpack.c.h.b16 %v673
  %v747 = vunpack.c.l.b16 %v674
  %v748 = vunpack.c.h.b16 %v674
  %v749 = vunpack.c.l.b16 %v675
  %v750 = vunpack.c.h.b16 %v675
  %v751 = vunpack.c.l.b16 %v676
  %v752 = vunpack.c.h.b16 %v676
  %v753 = vunpack.c.l.b16 %v677
  %v754 = vunpack.c.h.b16 %v677
  %v755 = vunpack.c.l.b16 %v678
  %v756 = vunpack.c.h.b16 %v678
  %v757 = vunpack.c.l.b16 %v679
  %v758 = vunpack.c.h.b16 %v679
  %v759 = vunpack.c.l.b16 %v680
  %v760 = vunpack.c.h.b16 %v680
  %v761 = vunpack.c.l.b16 %v681
  %v762 = vunpack.c.h.b16 %v681
  %v763 = vunpack.c.l.b16 %v682
  %v764 = vunpack.c.h.b16 %v682
  %v765 = vunpack.c.l.b16 %v683
  %v766 = vunpack.c.h.b16 %v683
  %v767 = vunpack.c.l.b16 %v684
  %v768 = vunpack.c.h.b16 %v684
  %v769 = vunpack.c.l.b16 %v685
  %v770 = vunpack.c.h.b16 %v685
  %v771 = vunpack.c.l.b16 %v686
  %v772 = vunpack.c.h.b16 %v686
  %v773 = vunpack.c.l.b16 %v687
  %v774 = vunpack.c.h.b16 %v687
  %v775 = vunpack.c.l.b16 %v688
  %v776 = vunpack.c.h.b16 %v688
  %v777 = vunpack.c.l.b16 %v689
  %v778 = vunpack.c.h.b16 %v689
  %v779 = vunpack.c.l.b16 %v690
  %v780 = vunpack.c.h.b16 %v690
  %v781 = vunpack.c.l.b16 %v691
  %v782 = vunpack.c.h.b16 %v691
  %v783 = vunpack.c.l.b16 %v692
  %v784 = vunpack.c.h.b16 %v692
  %v785 = vunpack.c.l.b16 %v693
  %v786 = vunpack.c.h.b16 %v693
  %v787 = vunpack.c.l.b16 %v694
  %v788 = vunpack.c.h.b16 %v694
  %v789 = vunpack.c.l.b16 %v695
  %v790 = vunpack.c.h.b16 %v695
  %v791 = vunpack.c.l.b16 %v696
  %v792 = vunpack.c.h.b16 %v696
  %v793 = vpack.c.b16 %v729, %v729
  %v794 = vpack.c.b16 %v730, %v730
  %v795 = vpack.c.b16 %v731, %v731
  %v796 = vpack.c.b16 %v732, %v732
  %v797 = vpack.c.b16 %v733, %v733
  %v798 = vpack.c.b16 %v734, %v734
  %v799 = vpack.c.b16 %v735, %v735
  %v800 = vpack.c.b16 %v736, %v736
  %v801 = vpack.c.b16 %v737, %v737
  %v802 = vpack.c.b16 %v738, %v738
  %v803 = vpack.c.b16 %v739, %v739
  %v804 = vpack.c.b16 %v740, %v740
  %v805 = vpack.c.b16 %v741, %v741
  %v806 = vpack.c.b16 %v742, %v742
  %v807 = vpack.c.b16 %v743, %v743
  %v808 = vpack.c.b16 %v744, %v744
  %v809 = vpack.c.b16 %v745, %v745
  %v810 = vpack.c.b16 %v746, %v746
  %v811 = vpack.c.b16 %v747, %v747
  %v812 = vpack.c.b16 %v748, %v748
  %v813 = vpack.c.b16 %v749, %v749
  %v814 = vpack.c.b16 %v750, %v750
  %v815 = vpack.c.b16 %v751, %v751
  %v816 = vpack.c.b16 %v752, %v752
  %v817 = vpack.c.b16 %v753, %v753
  %v818 = vpack.c.b16 %v754, %v754
  %v819 = vpack.c.b16 %v755, %v755
  %v820 = vpack.c.b16 %v756, %v756
  %v821 = vpack.c.b16 %v757, %v757
  %v822 = vpack.c.b16 %v758, %v758
  %v823 = vpack.c.b16 %v759, %v759
  %v824 = vpack.c.b16 %v760, %v760
  %v825 = vpack.c.b16 %v761, %v761
  %v826 = vpack.c.b16 %v762, %v762
  %v827 = vpack.c.b16 %v763, %v763
  %v828 = vpack.c.b16 %v764, %v764
  %v829 = vpack.c.b16 %v765, %v765
  %v830 = vpack.c.b16 %v766, %v766
  %v831 = vpack.c.b16 %v767, %v767
  %v832 = vpack.c.b16 %v768, %v768
  %v833 = vpack.c.b16 %v769, %v769
  %v834 = vpack.c.b16 %v770, %v770
  %v835 = vpack.c.b16 %v771, %v771
  %v836 = vpack.c.b16 %v772, %v772
  %v837 = vpack.c.b16 %v773, %v773
  %v838 = vpack.c.b16 %v774, %v774
  %v839 = vpack.c.b16 %v775, %v775
  %v840 = vpack.c.b16 %v776, %v776
  %v841 = vpack.c.b16 %v777, %v777
  %v842 = vpack.c.b16 %v778, %v778
  %v843 = vpack.c.b16 %v779, %v779
  %v844 = vpack.c.b16 %v780, %v780
  %v845 = vpack.c.b16 %v781, %v781
  %v846 = vpack.c.b16 %v782, %v782
  %v847 = vpack.c.b16 %v783, %v783
  %v848 = vpack.c.b16 %v784, %v784
  %v849 = vpack.c.b16 %v785, %v785
  %v850 = vpack.c.b16 %v786, %v786
  %v851 = vpack.c.b16 %v787, %v787
  %v852 = vpack.c.b16 %v788, %v788
  %v853 = vpack.c.b16 %v789, %v789
  %v854 = vpack.c.b16 %v790, %v790
  %v855 = vpack.c.b16 %v791, %v791
  %v856 = vpack.c.b16 %v792, %v792
  %921 = vst [vmem:[%s2] sm:$0xf] %v793
  %922 = vst [vmem:[%s2 + $0x4] sm:$0xf] %v794
  %923 = vst [vmem:[%s2 + $0x8] sm:$0xf] %v795
  %924 = vst [vmem:[%s2 + $0xc] sm:$0xf] %v796
  %925 = vst [vmem:[%s2 + $0x10] sm:$0xf] %v797
  %926 = vst [vmem:[%s2 + $0x14] sm:$0xf] %v798
  %927 = vst [vmem:[%s2 + $0x18] sm:$0xf] %v799
  %928 = vst [vmem:[%s2 + $0x1c] sm:$0xf] %v800
  %929 = vst [vmem:[%s2 + $0x20] sm:$0xf] %v801
  %930 = vst [vmem:[%s2 + $0x24] sm:$0xf] %v802
  %931 = vst [vmem:[%s2 + $0x28] sm:$0xf] %v803
  %932 = vst [vmem:[%s2 + $0x2c] sm:$0xf] %v804
  %933 = vst [vmem:[%s2 + $0x30] sm:$0xf] %v805
  %934 = vst [vmem:[%s2 + $0x34] sm:$0xf] %v806
  %935 = vst [vmem:[%s2 + $0x38] sm:$0xf] %v807
  %936 = vst [vmem:[%s2 + $0x3c] sm:$0xf] %v808
  %937 = vst [vmem:[%s2 + $0x40] sm:$0xf] %v809
  %938 = vst [vmem:[%s2 + $0x44] sm:$0xf] %v810
  %939 = vst [vmem:[%s2 + $0x48] sm:$0xf] %v811
  %940 = vst [vmem:[%s2 + $0x4c] sm:$0xf] %v812
  %941 = vst [vmem:[%s2 + $0x50] sm:$0xf] %v813
  %942 = vst [vmem:[%s2 + $0x54] sm:$0xf] %v814
  %943 = vst [vmem:[%s2 + $0x58] sm:$0xf] %v815
  %944 = vst [vmem:[%s2 + $0x5c] sm:$0xf] %v816
  %945 = vst [vmem:[%s2 + $0x60] sm:$0xf] %v817
  %946 = vst [vmem:[%s2 + $0x64] sm:$0xf] %v818
  %947 = vst [vmem:[%s2 + $0x68] sm:$0xf] %v819
  %948 = vst [vmem:[%s2 + $0x6c] sm:$0xf] %v820
  %949 = vst [vmem:[%s2 + $0x70] sm:$0xf] %v821
  %950 = vst [vmem:[%s2 + $0x74] sm:$0xf] %v822
  %951 = vst [vmem:[%s2 + $0x78] sm:$0xf] %v823
  %952 = vst [vmem:[%s2 + $0x7c] sm:$0xf] %v824
  %953 = vst [vmem:[%s2 + $0x80] sm:$0xf] %v825
  %954 = vst [vmem:[%s2 + $0x84] sm:$0xf] %v826
  %955 = vst [vmem:[%s2 + $0x88] sm:$0xf] %v827
  %956 = vst [vmem:[%s2 + $0x8c] sm:$0xf] %v828
  %957 = vst [vmem:[%s2 + $0x90] sm:$0xf] %v829
  %958 = vst [vmem:[%s2 + $0x94] sm:$0xf] %v830
  %959 = vst [vmem:[%s2 + $0x98] sm:$0xf] %v831
  %960 = vst [vmem:[%s2 + $0x9c] sm:$0xf] %v832
  %961 = vst [vmem:[%s2 + $0xa0] sm:$0xf] %v833
  %962 = vst [vmem:[%s2 + $0xa4] sm:$0xf] %v834
  %963 = vst [vmem:[%s2 + $0xa8] sm:$0xf] %v835
  %964 = vst [vmem:[%s2 + $0xac] sm:$0xf] %v836
  %965 = vst [vmem:[%s2 + $0xb0] sm:$0xf] %v837
  %966 = vst [vmem:[%s2 + $0xb4] sm:$0xf] %v838
  %967 = vst [vmem:[%s2 + $0xb8] sm:$0xf] %v839
  %968 = vst [vmem:[%s2 + $0xbc] sm:$0xf] %v840
  %969 = vst [vmem:[%s2 + $0xc0] sm:$0xf] %v841
  %970 = vst [vmem:[%s2 + $0xc4] sm:$0xf] %v842
  %971 = vst [vmem:[%s2 + $0xc8] sm:$0xf] %v843
  %972 = vst [vmem:[%s2 + $0xcc] sm:$0xf] %v844
  %973 = vst [vmem:[%s2 + $0xd0] sm:$0xf] %v845
  %974 = vst [vmem:[%s2 + $0xd4] sm:$0xf] %v846
  %975 = vst [vmem:[%s2 + $0xd8] sm:$0xf] %v847
  %976 = vst [vmem:[%s2 + $0xdc] sm:$0xf] %v848
  %977 = vst [vmem:[%s2 + $0xe0] sm:$0xf] %v849
  %978 = vst [vmem:[%s2 + $0xe4] sm:$0xf] %v850
  %979 = vst [vmem:[%s2 + $0xe8] sm:$0xf] %v851
  %980 = vst [vmem:[%s2 + $0xec] sm:$0xf] %v852
  %981 = vst [vmem:[%s2 + $0xf0] sm:$0xf] %v853
  %982 = vst [vmem:[%s2 + $0xf4] sm:$0xf] %v854
  %983 = vst [vmem:[%s2 + $0xf8] sm:$0xf] %v855
  %984 = vst [vmem:[%s2 + $0xfc] sm:$0xf] %v856
  %v985 = vadd.f32 %v411, %v414
  %v986 = vadd.f32 %v985, %v419
  %v987 = vadd.f32 %v986, %v422
  %v988 = vadd.f32 %v987, %v427
  %v989 = vadd.f32 %v988, %v430
  %v990 = vadd.f32 %v989, %v435
  %v991 = vadd.f32 %v990, %v438
  %v992 = vadd.f32 %v991, %v443
  %v993 = vadd.f32 %v992, %v446
  %v994 = vadd.f32 %v993, %v451
  %v995 = vadd.f32 %v994, %v454
  %v996 = vadd.f32 %v995, %v459
  %v997 = vadd.f32 %v996, %v462
  %v998 = vadd.f32 %v997, %v467
  %v999 = vadd.f32 %v998, %v470
  %v1000 = vadd.f32 %v999, %v475
  %v1001 = vadd.f32 %v1000, %v478
  %v1002 = vadd.f32 %v1001, %v483
  %v1003 = vadd.f32 %v1002, %v486
  %v1004 = vadd.f32 %v1003, %v491
  %v1005 = vadd.f32 %v1004, %v494
  %v1006 = vadd.f32 %v1005, %v499
  %v1007 = vadd.f32 %v1006, %v502
  %v1008 = vadd.f32 %v1007, %v507
  %v1009 = vadd.f32 %v1008, %v510
  %v1010 = vadd.f32 %v1009, %v515
  %v1011 = vadd.f32 %v1010, %v518
  %v1012 = vadd.f32 %v1011, %v523
  %v1013 = vadd.f32 %v1012, %v526
  %v1014 = vadd.f32 %v1013, %v531
  %v1015 = vadd.f32 %v1014, %v534
  %v1016 = vadd.f32 %v1015, %v539
  %v1017 = vadd.f32 %v1016, %v542
  %v1018 = vadd.f32 %v1017, %v547
  %v1019 = vadd.f32 %v1018, %v550
  %v1020 = vadd.f32 %v1019, %v555
  %v1021 = vadd.f32 %v1020, %v558
  %v1022 = vadd.f32 %v1021, %v563
  %v1023 = vadd.f32 %v1022, %v566
  %v1024 = vadd.f32 %v1023, %v571
  %v1025 = vadd.f32 %v1024, %v574
  %v1026 = vadd.f32 %v1025, %v579
  %v1027 = vadd.f32 %v1026, %v582
  %v1028 = vadd.f32 %v1027, %v587
  %v1029 = vadd.f32 %v1028, %v590
  %v1030 = vadd.f32 %v1029, %v595
  %v1031 = vadd.f32 %v1030, %v598
  %v1032 = vadd.f32 %v1031, %v603
  %v1033 = vadd.f32 %v1032, %v606
  %v1034 = vadd.f32 %v1033, %v611
  %v1035 = vadd.f32 %v1034, %v614
  %v1036 = vadd.f32 %v1035, %v619
  %v1037 = vadd.f32 %v1036, %v622
  %v1038 = vadd.f32 %v1037, %v627
  %v1039 = vadd.f32 %v1038, %v630
  %v1040 = vadd.f32 %v1039, %v635
  %v1041 = vadd.f32 %v1040, %v638
  %v1042 = vadd.f32 %v1041, %v643
  %v1043 = vadd.f32 %v1042, %v646
  %v1044 = vadd.f32 %v1043, %v651
  %v1045 = vadd.f32 %v1044, %v654
  %v1046 = vadd.f32 %v1045, %v659
  %v1047 = vadd.f32 %v1046, %v662
  %v1048 = vrot.slane %v1047, 4
  %v1049 = vadd.f32 %v1047, %v1048
  %v1050 = vrot.slane %v1049, 2
  %v1051 = vadd.f32 %v1049, %v1050
  %v1052 = vrot.slane %v1051, 1
  %v1053 = vadd.f32 %v1051, %v1052
  %1054 = vst [vmem:[%s3] sm:$0x1] %v1053
  %v1055 = vmul.f32 %v411, %v411
  %v1056 = vmul.f32 %v414, %v414
  %v1057 = vmul.f32 %v419, %v419
  %v1058 = vmul.f32 %v422, %v422
  %v1059 = vmul.f32 %v427, %v427
  %v1060 = vmul.f32 %v430, %v430
  %v1061 = vmul.f32 %v435, %v435
  %v1062 = vmul.f32 %v438, %v438
  %v1063 = vmul.f32 %v443, %v443
  %v1064 = vmul.f32 %v446, %v446
  %v1065 = vmul.f32 %v451, %v451
  %v1066 = vmul.f32 %v454, %v454
  %v1067 = vmul.f32 %v459, %v459
  %v1068 = vmul.f32 %v462, %v462
  %v1069 = vmul.f32 %v467, %v467
  %v1070 = vmul.f32 %v470, %v470
  %v1071 = vmul.f32 %v475, %v475
  %v1072 = vmul.f32 %v478, %v478
  %v1073 = vmul.f32 %v483, %v483
  %v1074 = vmul.f32 %v486, %v486
  %v1075 = vmul.f32 %v491, %v491
  %v1076 = vmul.f32 %v494, %v494
  %v1077 = vmul.f32 %v499, %v499
  %v1078 = vmul.f32 %v502, %v502
  %v1079 = vmul.f32 %v507, %v507
  %v1080 = vmul.f32 %v510, %v510
  %v1081 = vmul.f32 %v515, %v515
  %v1082 = vmul.f32 %v518, %v518
  %v1083 = vmul.f32 %v523, %v523
  %v1084 = vmul.f32 %v526, %v526
  %v1085 = vmul.f32 %v531, %v531
  %v1086 = vmul.f32 %v534, %v534
  %v1087 = vmul.f32 %v539, %v539
  %v1088 = vmul.f32 %v542, %v542
  %v1089 = vmul.f32 %v547, %v547
  %v1090 = vmul.f32 %v550, %v550
  %v1091 = vmul.f32 %v555, %v555
  %v1092 = vmul.f32 %v558, %v558
  %v1093 = vmul.f32 %v563, %v563
  %v1094 = vmul.f32 %v566, %v566
  %v1095 = vmul.f32 %v571, %v571
  %v1096 = vmul.f32 %v574, %v574
  %v1097 = vmul.f32 %v579, %v579
  %v1098 = vmul.f32 %v582, %v582
  %v1099 = vmul.f32 %v587, %v587
  %v1100 = vmul.f32 %v590, %v590
  %v1101 = vmul.f32 %v595, %v595
  %v1102 = vmul.f32 %v598, %v598
  %v1103 = vmul.f32 %v603, %v603
  %v1104 = vmul.f32 %v606, %v606
  %v1105 = vmul.f32 %v611, %v611
  %v1106 = vmul.f32 %v614, %v614
  %v1107 = vmul.f32 %v619, %v619
  %v1108 = vmul.f32 %v622, %v622
  %v1109 = vmul.f32 %v627, %v627
  %v1110 = vmul.f32 %v630, %v630
  %v1111 = vmul.f32 %v635, %v635
  %v1112 = vmul.f32 %v638, %v638
  %v1113 = vmul.f32 %v643, %v643
  %v1114 = vmul.f32 %v646, %v646
  %v1115 = vmul.f32 %v651, %v651
  %v1116 = vmul.f32 %v654, %v654
  %v1117 = vmul.f32 %v659, %v659
  %v1118 = vmul.f32 %v662, %v662
  %v1119 = vadd.f32 %v1055, %v1056
  %v1120 = vadd.f32 %v1119, %v1057
  %v1121 = vadd.f32 %v1120, %v1058
  %v1122 = vadd.f32 %v1121, %v1059
  %v1123 = vadd.f32 %v1122, %v1060
  %v1124 = vadd.f32 %v1123, %v1061
  %v1125 = vadd.f32 %v1124, %v1062
  %v1126 = vadd.f32 %v1125, %v1063
  %v1127 = vadd.f32 %v1126, %v1064
  %v1128 = vadd.f32 %v1127, %v1065
  %v1129 = vadd.f32 %v1128, %v1066
  %v1130 = vadd.f32 %v1129, %v1067
  %v1131 = vadd.f32 %v1130, %v1068
  %v1132 = vadd.f32 %v1131, %v1069
  %v1133 = vadd.f32 %v1132, %v1070
  %v1134 = vadd.f32 %v1133, %v1071
  %v1135 = vadd.f32 %v1134, %v1072
  %v1136 = vadd.f32 %v1135, %v1073
  %v1137 = vadd.f32 %v1136, %v1074
  %v1138 = vadd.f32 %v1137, %v1075
  %v1139 = vadd.f32 %v1138, %v1076
  %v1140 = vadd.f32 %v1139, %v1077
  %v1141 = vadd.f32 %v1140, %v1078
  %v1142 = vadd.f32 %v1141, %v1079
  %v1143 = vadd.f32 %v1142, %v1080
  %v1144 = vadd.f32 %v1143, %v1081
  %v1145 = vadd.f32 %v1144, %v1082
  %v1146 = vadd.f32 %v1145, %v1083
  %v1147 = vadd.f32 %v1146, %v1084
  %v1148 = vadd.f32 %v1147, %v1085
  %v1149 = vadd.f32 %v1148, %v1086
  %v1150 = vadd.f32 %v1149, %v1087
  %v1151 = vadd.f32 %v1150, %v1088
  %v1152 = vadd.f32 %v1151, %v1089
  %v1153 = vadd.f32 %v1152, %v1090
  %v1154 = vadd.f32 %v1153, %v1091
  %v1155 = vadd.f32 %v1154, %v1092
  %v1156 = vadd.f32 %v1155, %v1093
  %v1157 = vadd.f32 %v1156, %v1094
  %v1158 = vadd.f32 %v1157, %v1095
  %v1159 = vadd.f32 %v1158, %v1096
  %v1160 = vadd.f32 %v1159, %v1097
  %v1161 = vadd.f32 %v1160, %v1098
  %v1162 = vadd.f32 %v1161, %v1099
  %v1163 = vadd.f32 %v1162, %v1100
  %v1164 = vadd.f32 %v1163, %v1101
  %v1165 = vadd.f32 %v1164, %v1102
  %v1166 = vadd.f32 %v1165, %v1103
  %v1167 = vadd.f32 %v1166, %v1104
  %v1168 = vadd.f32 %v1167, %v1105
  %v1169 = vadd.f32 %v1168, %v1106
  %v1170 = vadd.f32 %v1169, %v1107
  %v1171 = vadd.f32 %v1170, %v1108
  %v1172 = vadd.f32 %v1171, %v1109
  %v1173 = vadd.f32 %v1172, %v1110
  %v1174 = vadd.f32 %v1173, %v1111
  %v1175 = vadd.f32 %v1174, %v1112
  %v1176 = vadd.f32 %v1175, %v1113
  %v1177 = vadd.f32 %v1176, %v1114
  %v1178 = vadd.f32 %v1177, %v1115
  %v1179 = vadd.f32 %v1178, %v1116
  %v1180 = vadd.f32 %v1179, %v1117
  %v1181 = vadd.f32 %v1180, %v1118
  %v1182 = vrot.slane %v1181, 4
  %v1183 = vadd.f32 %v1181, %v1182
  %v1184 = vrot.slane %v1183, 2
  %v1185 = vadd.f32 %v1183, %v1184
  %v1186 = vrot.slane %v1185, 1
  %v1187 = vadd.f32 %v1185, %v1186
  %1188 = vst [vmem:[%s4] sm:$0x1] %v1187
  // Predicated region
  $region10: #{basic_block_forward.7} parent=0 // pred_check
    _
  $region11: #{basic_block_forward.7} parent=0 // pred_check_branch
    %1190 = sbr.rel (0) target = $region13
  $region12: #{basic_block_forward.7} parent=0 // pred_region
    _
  $region13: #{basic_block_forward.7} parent=0 // pred_fallthru
    _
  // Predicated region
  $region14: #{basic_block_forward.7} parent=0 // pred_check
    _
  $region15: #{basic_block_forward.7} parent=0 // pred_check_branch
    %1192 = sbr.rel (0) target = $region17
  $region16: #{basic_block_forward.7} parent=0 // pred_region
    _
  $region17: #{basic_block_forward.7} parent=0 // pred_fallthru
    _
  // Predicated region
  $region18: #{basic_block_forward.7} parent=0 // pred_check
    _
  $region19: #{basic_block_forward.7} parent=0 // pred_check_branch
    %1194 = sbr.rel (0) target = $region21
  $region20: #{basic_block_forward.7} parent=0 // pred_region
    _
  $region21: #{basic_block_forward.7} parent=0 // pred_fallthru
    _
  // Predicated region
  $region22: #{basic_block_forward.7} parent=0 // pred_check
    _
  $region23: #{basic_block_forward.7} parent=0 // pred_check_branch
    %1196 = sbr.rel (0) target = $region25
  $region24: #{basic_block_forward.7} parent=0 // pred_region
    _
  $region25: #{basic_block_forward.7} parent=0 // pred_fallthru
    _
  // Predicated region
  $region26: #{basic_block_forward.7} parent=0 // pred_check
    _
  $region27: #{basic_block_forward.7} parent=0 // pred_check_branch
    %1198 = sbr.rel (0) target = $region29
  $region28: #{basic_block_forward.7} parent=0 // pred_region
    _
  $region29: #{basic_block_forward.7} parent=0 // pred_fallthru
    _
  // Predicated region
  $region30: #{basic_block_forward.7} parent=0 // pred_check
    _
  $region31: #{basic_block_forward.7} parent=0 // pred_check_branch
    %1200 = sbr.rel (0) target = $region33
  $region32: #{basic_block_forward.7} parent=0 // pred_region
    _
  $region33: #{basic_block_forward.7} parent=0 // pred_fallthru
    _

// kernel: basic_block_forward.8
$region0: #{basic_block_forward.8}
  #allocation0 [shape = 'u32[]', space=smem, size = 0x4, offset = 0x4, fixed_abs, tag = 'smem constant byte address 0x4 - core index']
  #allocation1 [shape = 'u32[144,128]{1,0:T(1,128)}', space=vmem, size = 0x12000, scoped, tag = 'internal scratch']
  %s0 = inlined_call_operand.vmem [shape: bf16[512,4], index: 0, kind: input, shape index: {}]
  %s1 = inlined_call_operand.vmem [shape: bf16[4,128], index: 1, kind: input, shape index: {}]
  %s2 = inlined_call_operand.vmem [shape: bf16[512,128], index: 2, kind: output, shape index: {0}]
  %s3 = inlined_call_operand.vmem [shape: f32[1,1,128], index: 3, kind: output, shape index: {1}]
  %s4 = inlined_call_operand.vmem [shape: f32[1,1,128], index: 4, kind: output, shape index: {2}]
  %5 = xla_tuple %s2, %s3, %s4
  %s6 = sld [smem:[#allocation0]]
  $region34: #{basic_block_forward.8} parent=0
    _
  %s8 = ssub.s32 1, %s6
  %s9 = scalar_select 0, %s8, %s6
  // Predicated region
  $region2: #{basic_block_forward.8} parent=0 // pred_check
    _
  $region3: #{basic_block_forward.8} parent=0 // pred_check_branch
    %11 = sbr.rel (0) target = $region5
  $region4: #{basic_block_forward.8} parent=0 // pred_region
    _
  $region5: #{basic_block_forward.8} parent=0 // pred_fallthru
    _
  // Predicated region
  $region6: #{basic_block_forward.8} parent=0 // pred_check
    _
  $region7: #{basic_block_forward.8} parent=0 // pred_check_branch
    %13 = sbr.rel (0) target = $region9
  $region8: #{basic_block_forward.8} parent=0 // pred_region
    _
  $region9: #{basic_block_forward.8} parent=0 // pred_fallthru
    _
  %v15 = vld [vmem:[%s0] sm:$0xf]
  %v16 = vld [vmem:[%s0 + $0x4] sm:$0xf]
  %v17 = vld [vmem:[%s0 + $0x8] sm:$0xf]
  %v18 = vld [vmem:[%s0 + $0xc] sm:$0xf]
  %v19 = vld [vmem:[%s0 + $0x10] sm:$0xf]
  %v20 = vld [vmem:[%s0 + $0x14] sm:$0xf]
  %v21 = vld [vmem:[%s0 + $0x18] sm:$0xf]
  %v22 = vld [vmem:[%s0 + $0x1c] sm:$0xf]
  %v23 = vld [vmem:[%s0 + $0x20] sm:$0xf]
  %v24 = vld [vmem:[%s0 + $0x24] sm:$0xf]
  %v25 = vld [vmem:[%s0 + $0x28] sm:$0xf]
  %v26 = vld [vmem:[%s0 + $0x2c] sm:$0xf]
  %v27 = vld [vmem:[%s0 + $0x30] sm:$0xf]
  %v28 = vld [vmem:[%s0 + $0x34] sm:$0xf]
  %v29 = vld [vmem:[%s0 + $0x38] sm:$0xf]
  %v30 = vld [vmem:[%s0 + $0x3c] sm:$0xf]
  %v31 = vld [vmem:[%s0 + $0x40] sm:$0xf]
  %v32 = vld [vmem:[%s0 + $0x44] sm:$0xf]
  %v33 = vld [vmem:[%s0 + $0x48] sm:$0xf]
  %v34 = vld [vmem:[%s0 + $0x4c] sm:$0xf]
  %v35 = vld [vmem:[%s0 + $0x50] sm:$0xf]
  %v36 = vld [vmem:[%s0 + $0x54] sm:$0xf]
  %v37 = vld [vmem:[%s0 + $0x58] sm:$0xf]
  %v38 = vld [vmem:[%s0 + $0x5c] sm:$0xf]
  %v39 = vld [vmem:[%s0 + $0x60] sm:$0xf]
  %v40 = vld [vmem:[%s0 + $0x64] sm:$0xf]
  %v41 = vld [vmem:[%s0 + $0x68] sm:$0xf]
  %v42 = vld [vmem:[%s0 + $0x6c] sm:$0xf]
  %v43 = vld [vmem:[%s0 + $0x70] sm:$0xf]
  %v44 = vld [vmem:[%s0 + $0x74] sm:$0xf]
  %v45 = vld [vmem:[%s0 + $0x78] sm:$0xf]
  %v46 = vld [vmem:[%s0 + $0x7c] sm:$0xf]
  %v47 = vld [vmem:[%s0 + $0x80] sm:$0xf]
  %v48 = vld [vmem:[%s0 + $0x84] sm:$0xf]
  %v49 = vld [vmem:[%s0 + $0x88] sm:$0xf]
  %v50 = vld [vmem:[%s0 + $0x8c] sm:$0xf]
  %v51 = vld [vmem:[%s0 + $0x90] sm:$0xf]
  %v52 = vld [vmem:[%s0 + $0x94] sm:$0xf]
  %v53 = vld [vmem:[%s0 + $0x98] sm:$0xf]
  %v54 = vld [vmem:[%s0 + $0x9c] sm:$0xf]
  %v55 = vld [vmem:[%s0 + $0xa0] sm:$0xf]
  %v56 = vld [vmem:[%s0 + $0xa4] sm:$0xf]
  %v57 = vld [vmem:[%s0 + $0xa8] sm:$0xf]
  %v58 = vld [vmem:[%s0 + $0xac] sm:$0xf]
  %v59 = vld [vmem:[%s0 + $0xb0] sm:$0xf]
  %v60 = vld [vmem:[%s0 + $0xb4] sm:$0xf]
  %v61 = vld [vmem:[%s0 + $0xb8] sm:$0xf]
  %v62 = vld [vmem:[%s0 + $0xbc] sm:$0xf]
  %v63 = vld [vmem:[%s0 + $0xc0] sm:$0xf]
  %v64 = vld [vmem:[%s0 + $0xc4] sm:$0xf]
  %v65 = vld [vmem:[%s0 + $0xc8] sm:$0xf]
  %v66 = vld [vmem:[%s0 + $0xcc] sm:$0xf]
  %v67 = vld [vmem:[%s0 + $0xd0] sm:$0xf]
  %v68 = vld [vmem:[%s0 + $0xd4] sm:$0xf]
  %v69 = vld [vmem:[%s0 + $0xd8] sm:$0xf]
  %v70 = vld [vmem:[%s0 + $0xdc] sm:$0xf]
  %v71 = vld [vmem:[%s0 + $0xe0] sm:$0xf]
  %v72 = vld [vmem:[%s0 + $0xe4] sm:$0xf]
  %v73 = vld [vmem:[%s0 + $0xe8] sm:$0xf]
  %v74 = vld [vmem:[%s0 + $0xec] sm:$0xf]
  %v75 = vld [vmem:[%s0 + $0xf0] sm:$0xf]
  %v76 = vld [vmem:[%s0 + $0xf4] sm:$0xf]
  %v77 = vld [vmem:[%s0 + $0xf8] sm:$0xf]
  %v78 = vld [vmem:[%s0 + $0xfc] sm:$0xf]
  %v79 = vld [vmem:[%s1] sm:$0x3]
  %v144 = vunpack.c.l.b16 %v15
  %v145 = vunpack.c.l.b16 %v16
  %v146 = vunpack.c.l.b16 %v17
  %v147 = vunpack.c.l.b16 %v18
  %v148 = vunpack.c.l.b16 %v19
  %v149 = vunpack.c.l.b16 %v20
  %v150 = vunpack.c.l.b16 %v21
  %v151 = vunpack.c.l.b16 %v22
  %v152 = vunpack.c.l.b16 %v23
  %v153 = vunpack.c.l.b16 %v24
  %v154 = vunpack.c.l.b16 %v25
  %v155 = vunpack.c.l.b16 %v26
  %v156 = vunpack.c.l.b16 %v27
  %v157 = vunpack.c.l.b16 %v28
  %v158 = vunpack.c.l.b16 %v29
  %v159 = vunpack.c.l.b16 %v30
  %v160 = vunpack.c.l.b16 %v31
  %v161 = vunpack.c.l.b16 %v32
  %v162 = vunpack.c.l.b16 %v33
  %v163 = vunpack.c.l.b16 %v34
  %v164 = vunpack.c.l.b16 %v35
  %v165 = vunpack.c.l.b16 %v36
  %v166 = vunpack.c.l.b16 %v37
  %v167 = vunpack.c.l.b16 %v38
  %v168 = vunpack.c.l.b16 %v39
  %v169 = vunpack.c.l.b16 %v40
  %v170 = vunpack.c.l.b16 %v41
  %v171 = vunpack.c.l.b16 %v42
  %v172 = vunpack.c.l.b16 %v43
  %v173 = vunpack.c.l.b16 %v44
  %v174 = vunpack.c.l.b16 %v45
  %v175 = vunpack.c.l.b16 %v46
  %v176 = vunpack.c.l.b16 %v47
  %v177 = vunpack.c.l.b16 %v48
  %v178 = vunpack.c.l.b16 %v49
  %v179 = vunpack.c.l.b16 %v50
  %v180 = vunpack.c.l.b16 %v51
  %v181 = vunpack.c.l.b16 %v52
  %v182 = vunpack.c.l.b16 %v53
  %v183 = vunpack.c.l.b16 %v54
  %v184 = vunpack.c.l.b16 %v55
  %v185 = vunpack.c.l.b16 %v56
  %v186 = vunpack.c.l.b16 %v57
  %v187 = vunpack.c.l.b16 %v58
  %v188 = vunpack.c.l.b16 %v59
  %v189 = vunpack.c.l.b16 %v60
  %v190 = vunpack.c.l.b16 %v61
  %v191 = vunpack.c.l.b16 %v62
  %v192 = vunpack.c.l.b16 %v63
  %v193 = vunpack.c.l.b16 %v64
  %v194 = vunpack.c.l.b16 %v65
  %v195 = vunpack.c.l.b16 %v66
  %v196 = vunpack.c.l.b16 %v67
  %v197 = vunpack.c.l.b16 %v68
  %v198 = vunpack.c.l.b16 %v69
  %v199 = vunpack.c.l.b16 %v70
  %v200 = vunpack.c.l.b16 %v71
  %v201 = vunpack.c.l.b16 %v72
  %v202 = vunpack.c.l.b16 %v73
  %v203 = vunpack.c.l.b16 %v74
  %v204 = vunpack.c.l.b16 %v75
  %v205 = vunpack.c.l.b16 %v76
  %v206 = vunpack.c.l.b16 %v77
  %v207 = vunpack.c.l.b16 %v78
  %v208 = vpack.c.b16 %v145, %v144
  %v209 = vpack.c.b16 %v147, %v146
  %v210 = vpack.c.b16 %v149, %v148
  %v211 = vpack.c.b16 %v151, %v150
  %v212 = vpack.c.b16 %v153, %v152
  %v213 = vpack.c.b16 %v155, %v154
  %v214 = vpack.c.b16 %v157, %v156
  %v215 = vpack.c.b16 %v159, %v158
  %v216 = vpack.c.b16 %v161, %v160
  %v217 = vpack.c.b16 %v163, %v162
  %v218 = vpack.c.b16 %v165, %v164
  %v219 = vpack.c.b16 %v167, %v166
  %v220 = vpack.c.b16 %v169, %v168
  %v221 = vpack.c.b16 %v171, %v170
  %v222 = vpack.c.b16 %v173, %v172
  %v223 = vpack.c.b16 %v175, %v174
  %v224 = vpack.c.b16 %v177, %v176
  %v225 = vpack.c.b16 %v179, %v178
  %v226 = vpack.c.b16 %v181, %v180
  %v227 = vpack.c.b16 %v183, %v182
  %v228 = vpack.c.b16 %v185, %v184
  %v229 = vpack.c.b16 %v187, %v186
  %v230 = vpack.c.b16 %v189, %v188
  %v231 = vpack.c.b16 %v191, %v190
  %v232 = vpack.c.b16 %v193, %v192
  %v233 = vpack.c.b16 %v195, %v194
  %v234 = vpack.c.b16 %v197, %v196
  %v235 = vpack.c.b16 %v199, %v198
  %v236 = vpack.c.b16 %v201, %v200
  %v237 = vpack.c.b16 %v203, %v202
  %v238 = vpack.c.b16 %v205, %v204
  %v239 = vpack.c.b16 %v207, %v206
  %vm240 = vcmask 31744
  %v242 = vsel %vm240, %v208, 0
  %v245 = vsel %vm240, %v209, 0
  %v248 = vsel %vm240, %v210, 0
  %v251 = vsel %vm240, %v211, 0
  %v254 = vsel %vm240, %v212, 0
  %v257 = vsel %vm240, %v213, 0
  %v260 = vsel %vm240, %v214, 0
  %v263 = vsel %vm240, %v215, 0
  %v266 = vsel %vm240, %v216, 0
  %v269 = vsel %vm240, %v217, 0
  %v272 = vsel %vm240, %v218, 0
  %v275 = vsel %vm240, %v219, 0
  %v278 = vsel %vm240, %v220, 0
  %v281 = vsel %vm240, %v221, 0
  %v284 = vsel %vm240, %v222, 0
  %v287 = vsel %vm240, %v223, 0
  %v290 = vsel %vm240, %v224, 0
  %v293 = vsel %vm240, %v225, 0
  %v296 = vsel %vm240, %v226, 0
  %v299 = vsel %vm240, %v227, 0
  %v302 = vsel %vm240, %v228, 0
  %v305 = vsel %vm240, %v229, 0
  %v308 = vsel %vm240, %v230, 0
  %v311 = vsel %vm240, %v231, 0
  %v314 = vsel %vm240, %v232, 0
  %v317 = vsel %vm240, %v233, 0
  %v320 = vsel %vm240, %v234, 0
  %v323 = vsel %vm240, %v235, 0
  %v326 = vsel %vm240, %v236, 0
  %v329 = vsel %vm240, %v237, 0
  %v332 = vsel %vm240, %v238, 0
  %v335 = vsel %vm240, %v239, 0
  %vm337 = vcmask 1041408
  %v339 = vsel %vm337, %v79, 0
  %341 = vmatprep.subr.bf16.mxu0 0
  %342 = vmatpush1.bf16.msra.mxu0 %v339
  %343 = vmatprep.subr.bf16.mxu0 0
  %344 = vmatpush1.bf16.msra.mxu0 0
  %345 = vmatprep.subr.bf16.mxu0 0
  %346 = vmatpush1.bf16.msra.mxu0 0
  %347 = vmatprep.subr.bf16.mxu0 0
  %348 = vmatpush1.bf16.msra.mxu0 0
  %349 = vmatprep.subr.bf16.mxu0 0
  %350 = vmatpush1.bf16.msra.mxu0 0
  %351 = vmatprep.subr.bf16.mxu0 0
  %352 = vmatpush1.bf16.msra.mxu0 0
  %353 = vmatprep.subr.bf16.mxu0 0
  %354 = vmatpush1.bf16.msra.mxu0 0
  %355 = vmatprep.subr.bf16.mxu0 0
  %356 = vmatpush1.bf16.msra.mxu0 0
  %357 = vmatprep.subr.bf16.mxu0 0
  %358 = vmatpush1.bf16.msra.mxu0 0
  %359 = vmatprep.subr.bf16.mxu0 0
  %360 = vmatpush1.bf16.msra.mxu0 0
  %361 = vmatprep.subr.bf16.mxu0 0
  %362 = vmatpush1.bf16.msra.mxu0 0
  %363 = vmatprep.subr.bf16.mxu0 0
  %364 = vmatpush1.bf16.msra.mxu0 0
  %365 = vmatprep.subr.bf16.mxu0 0
  %366 = vmatpush1.bf16.msra.mxu0 0
  %367 = vmatprep.subr.bf16.mxu0 0
  %368 = vmatpush1.bf16.msra.mxu0 0
  %369 = vmatprep.subr.bf16.mxu0 0
  %370 = vmatpush1.bf16.msra.mxu0 0
  %371 = vmatprep.subr.bf16.mxu0 0
  %372 = vmatpush1.bf16.msra.mxu0 0
  %373 = vmatprep.mubr.bf16.mxu0 0
  %374 = vmatmul.mubr.bf16.gmra.mrb[0].mxu0 %v242
  %v375 = vpop.f32.mrb[0].mxu0
  %v376 = vadd.f32 0.0, %v375
  %v377 = vpop.f32.mrb[0].mxu0
  %v378 = vpop.f32.mrb[0].mxu0
  %v379 = vadd.f32 0.0, %v378
  %v380 = vpop.f32.mrb[0].mxu0
  %381 = vmatprep.mubr.bf16.mxu0 0
  %382 = vmatmul.mubr.bf16.gmra.mrb[0].mxu0 %v245
  %v383 = vpop.f32.mrb[0].mxu0
  %v384 = vadd.f32 0.0, %v383
  %v385 = vpop.f32.mrb[0].mxu0
  %v386 = vpop.f32.mrb[0].mxu0
  %v387 = vadd.f32 0.0, %v386
  %v388 = vpop.f32.mrb[0].mxu0
  %389 = vmatprep.mubr.bf16.mxu0 0
  %390 = vmatmul.mubr.bf16.gmra.mrb[0].mxu0 %v248
  %v391 = vpop.f32.mrb[0].mxu0
  %v392 = vadd.f32 0.0, %v391
  %v393 = vpop.f32.mrb[0].mxu0
  %v394 = vpop.f32.mrb[0].mxu0
  %v395 = vadd.f32 0.0, %v394
  %v396 = vpop.f32.mrb[0].mxu0
  %397 = vmatprep.mubr.bf16.mxu0 0
  %398 = vmatmul.mubr.bf16.gmra.mrb[0].mxu0 %v251
  %v399 = vpop.f32.mrb[0].mxu0
  %v400 = vadd.f32 0.0, %v399
  %v401 = vpop.f32.mrb[0].mxu0
  %v402 = vpop.f32.mrb[0].mxu0
  %v403 = vadd.f32 0.0, %v402
  %v404 = vpop.f32.mrb[0].mxu0
  %405 = vmatprep.mubr.bf16.mxu0 0
  %406 = vmatmul.mubr.bf16.gmra.mrb[0].mxu0 %v254
  %v407 = vpop.f32.mrb[0].mxu0
  %v408 = vadd.f32 0.0, %v407
  %v409 = vpop.f32.mrb[0].mxu0
  %v410 = vpop.f32.mrb[0].mxu0
  %v411 = vadd.f32 0.0, %v410
  %v412 = vpop.f32.mrb[0].mxu0
  %413 = vmatprep.mubr.bf16.mxu0 0
  %414 = vmatmul.mubr.bf16.gmra.mrb[0].mxu0 %v257
  %v415 = vpop.f32.mrb[0].mxu0
  %v416 = vadd.f32 0.0, %v415
  %v417 = vpop.f32.mrb[0].mxu0
  %v418 = vpop.f32.mrb[0].mxu0
  %v419 = vadd.f32 0.0, %v418
  %v420 = vpop.f32.mrb[0].mxu0
  %421 = vmatprep.mubr.bf16.mxu0 0
  %422 = vmatmul.mubr.bf16.gmra.mrb[0].mxu0 %v260
  %v423 = vpop.f32.mrb[0].mxu0
  %v424 = vadd.f32 0.0, %v423
  %v425 = vpop.f32.mrb[0].mxu0
  %v426 = vpop.f32.mrb[0].mxu0
  %v427 = vadd.f32 0.0, %v426
  %v428 = vpop.f32.mrb[0].mxu0
  %429 = vmatprep.mubr.bf16.mxu0 0
  %430 = vmatmul.mubr.bf16.gmra.mrb[0].mxu0 %v263
  %v431 = vpop.f32.mrb[0].mxu0
  %v432 = vadd.f32 0.0, %v431
  %v433 = vpop.f32.mrb[0].mxu0
  %v434 = vpop.f32.mrb[0].mxu0
  %v435 = vadd.f32 0.0, %v434
  %v436 = vpop.f32.mrb[0].mxu0
  %437 = vmatprep.mubr.bf16.mxu0 0
  %438 = vmatmul.mubr.bf16.gmra.mrb[0].mxu0 %v266
  %v439 = vpop.f32.mrb[0].mxu0
  %v440 = vadd.f32 0.0, %v439
  %v441 = vpop.f32.mrb[0].mxu0
  %v442 = vpop.f32.mrb[0].mxu0
  %v443 = vadd.f32 0.0, %v442
  %v444 = vpop.f32.mrb[0].mxu0
  %445 = vmatprep.mubr.bf16.mxu0 0
  %446 = vmatmul.mubr.bf16.gmra.mrb[0].mxu0 %v269
  %v447 = vpop.f32.mrb[0].mxu0
  %v448 = vadd.f32 0.0, %v447
  %v449 = vpop.f32.mrb[0].mxu0
  %v450 = vpop.f32.mrb[0].mxu0
  %v451 = vadd.f32 0.0, %v450
  %v452 = vpop.f32.mrb[0].mxu0
  %453 = vmatprep.mubr.bf16.mxu0 0
  %454 = vmatmul.mubr.bf16.gmra.mrb[0].mxu0 %v272
  %v455 = vpop.f32.mrb[0].mxu0
  %v456 = vadd.f32 0.0, %v455
  %v457 = vpop.f32.mrb[0].mxu0
  %v458 = vpop.f32.mrb[0].mxu0
  %v459 = vadd.f32 0.0, %v458
  %v460 = vpop.f32.mrb[0].mxu0
  %461 = vmatprep.mubr.bf16.mxu0 0
  %462 = vmatmul.mubr.bf16.gmra.mrb[0].mxu0 %v275
  %v463 = vpop.f32.mrb[0].mxu0
  %v464 = vadd.f32 0.0, %v463
  %v465 = vpop.f32.mrb[0].mxu0
  %v466 = vpop.f32.mrb[0].mxu0
  %v467 = vadd.f32 0.0, %v466
  %v468 = vpop.f32.mrb[0].mxu0
  %469 = vmatprep.mubr.bf16.mxu0 0
  %470 = vmatmul.mubr.bf16.gmra.mrb[0].mxu0 %v278
  %v471 = vpop.f32.mrb[0].mxu0
  %v472 = vadd.f32 0.0, %v471
  %v473 = vpop.f32.mrb[0].mxu0
  %v474 = vpop.f32.mrb[0].mxu0
  %v475 = vadd.f32 0.0, %v474
  %v476 = vpop.f32.mrb[0].mxu0
  %477 = vmatprep.mubr.bf16.mxu0 0
  %478 = vmatmul.mubr.bf16.gmra.mrb[0].mxu0 %v281
  %v479 = vpop.f32.mrb[0].mxu0
  %v480 = vadd.f32 0.0, %v479
  %v481 = vpop.f32.mrb[0].mxu0
  %v482 = vpop.f32.mrb[0].mxu0
  %v483 = vadd.f32 0.0, %v482
  %v484 = vpop.f32.mrb[0].mxu0
  %485 = vmatprep.mubr.bf16.mxu0 0
  %486 = vmatmul.mubr.bf16.gmra.mrb[0].mxu0 %v284
  %v487 = vpop.f32.mrb[0].mxu0
  %v488 = vadd.f32 0.0, %v487
  %v489 = vpop.f32.mrb[0].mxu0
  %v490 = vpop.f32.mrb[0].mxu0
  %v491 = vadd.f32 0.0, %v490
  %v492 = vpop.f32.mrb[0].mxu0
  %493 = vmatprep.mubr.bf16.mxu0 0
  %494 = vmatmul.mubr.bf16.gmra.mrb[0].mxu0 %v287
  %v495 = vpop.f32.mrb[0].mxu0
  %v496 = vadd.f32 0.0, %v495
  %v497 = vpop.f32.mrb[0].mxu0
  %v498 = vpop.f32.mrb[0].mxu0
  %v499 = vadd.f32 0.0, %v498
  %v500 = vpop.f32.mrb[0].mxu0
  %501 = vmatprep.mubr.bf16.mxu0 0
  %502 = vmatmul.mubr.bf16.gmra.mrb[0].mxu0 %v290
  %v503 = vpop.f32.mrb[0].mxu0
  %v504 = vadd.f32 0.0, %v503
  %v505 = vpop.f32.mrb[0].mxu0
  %v506 = vpop.f32.mrb[0].mxu0
  %v507 = vadd.f32 0.0, %v506
  %v508 = vpop.f32.mrb[0].mxu0
  %509 = vmatprep.mubr.bf16.mxu0 0
  %510 = vmatmul.mubr.bf16.gmra.mrb[0].mxu0 %v293
  %v511 = vpop.f32.mrb[0].mxu0
  %v512 = vadd.f32 0.0, %v511
  %v513 = vpop.f32.mrb[0].mxu0
  %v514 = vpop.f32.mrb[0].mxu0
  %v515 = vadd.f32 0.0, %v514
  %v516 = vpop.f32.mrb[0].mxu0
  %517 = vmatprep.mubr.bf16.mxu0 0
  %518 = vmatmul.mubr.bf16.gmra.mrb[0].mxu0 %v296
  %v519 = vpop.f32.mrb[0].mxu0
  %v520 = vadd.f32 0.0, %v519
  %v521 = vpop.f32.mrb[0].mxu0
  %v522 = vpop.f32.mrb[0].mxu0
  %v523 = vadd.f32 0.0, %v522
  %v524 = vpop.f32.mrb[0].mxu0
  %525 = vmatprep.mubr.bf16.mxu0 0
  %526 = vmatmul.mubr.bf16.gmra.mrb[0].mxu0 %v299
  %v527 = vpop.f32.mrb[0].mxu0
  %v528 = vadd.f32 0.0, %v527
  %v529 = vpop.f32.mrb[0].mxu0
  %v530 = vpop.f32.mrb[0].mxu0
  %v531 = vadd.f32 0.0, %v530
  %v532 = vpop.f32.mrb[0].mxu0
  %533 = vmatprep.mubr.bf16.mxu0 0
  %534 = vmatmul.mubr.bf16.gmra.mrb[0].mxu0 %v302
  %v535 = vpop.f32.mrb[0].mxu0
  %v536 = vadd.f32 0.0, %v535
  %v537 = vpop.f32.mrb[0].mxu0
  %v538 = vpop.f32.mrb[0].mxu0
  %v539 = vadd.f32 0.0, %v538
  %v540 = vpop.f32.mrb[0].mxu0
  %541 = vmatprep.mubr.bf16.mxu0 0
  %542 = vmatmul.mubr.bf16.gmra.mrb[0].mxu0 %v305
  %v543 = vpop.f32.mrb[0].mxu0
  %v544 = vadd.f32 0.0, %v543
  %v545 = vpop.f32.mrb[0].mxu0
  %v546 = vpop.f32.mrb[0].mxu0
  %v547 = vadd.f32 0.0, %v546
  %v548 = vpop.f32.mrb[0].mxu0
  %549 = vmatprep.mubr.bf16.mxu0 0
  %550 = vmatmul.mubr.bf16.gmra.mrb[0].mxu0 %v308
  %v551 = vpop.f32.mrb[0].mxu0
  %v552 = vadd.f32 0.0, %v551
  %v553 = vpop.f32.mrb[0].mxu0
  %v554 = vpop.f32.mrb[0].mxu0
  %v555 = vadd.f32 0.0, %v554
  %v556 = vpop.f32.mrb[0].mxu0
  %557 = vmatprep.mubr.bf16.mxu0 0
  %558 = vmatmul.mubr.bf16.gmra.mrb[0].mxu0 %v311
  %v559 = vpop.f32.mrb[0].mxu0
  %v560 = vadd.f32 0.0, %v559
  %v561 = vpop.f32.mrb[0].mxu0
  %v562 = vpop.f32.mrb[0].mxu0
  %v563 = vadd.f32 0.0, %v562
  %v564 = vpop.f32.mrb[0].mxu0
  %565 = vmatprep.mubr.bf16.mxu0 0
  %566 = vmatmul.mubr.bf16.gmra.mrb[0].mxu0 %v314
  %v567 = vpop.f32.mrb[0].mxu0
  %v568 = vadd.f32 0.0, %v567
  %v569 = vpop.f32.mrb[0].mxu0
  %v570 = vpop.f32.mrb[0].mxu0
  %v571 = vadd.f32 0.0, %v570
  %v572 = vpop.f32.mrb[0].mxu0
  %573 = vmatprep.mubr.bf16.mxu0 0
  %574 = vmatmul.mubr.bf16.gmra.mrb[0].mxu0 %v317
  %v575 = vpop.f32.mrb[0].mxu0
  %v576 = vadd.f32 0.0, %v575
  %v577 = vpop.f32.mrb[0].mxu0
  %v578 = vpop.f32.mrb[0].mxu0
  %v579 = vadd.f32 0.0, %v578
  %v580 = vpop.f32.mrb[0].mxu0
  %581 = vmatprep.mubr.bf16.mxu0 0
  %582 = vmatmul.mubr.bf16.gmra.mrb[0].mxu0 %v320
  %v583 = vpop.f32.mrb[0].mxu0
  %v584 = vadd.f32 0.0, %v583
  %v585 = vpop.f32.mrb[0].mxu0
  %v586 = vpop.f32.mrb[0].mxu0
  %v587 = vadd.f32 0.0, %v586
  %v588 = vpop.f32.mrb[0].mxu0
  %589 = vmatprep.mubr.bf16.mxu0 0
  %590 = vmatmul.mubr.bf16.gmra.mrb[0].mxu0 %v323
  %v591 = vpop.f32.mrb[0].mxu0
  %v592 = vadd.f32 0.0, %v591
  %v593 = vpop.f32.mrb[0].mxu0
  %v594 = vpop.f32.mrb[0].mxu0
  %v595 = vadd.f32 0.0, %v594
  %v596 = vpop.f32.mrb[0].mxu0
  %597 = vmatprep.mubr.bf16.mxu0 0
  %598 = vmatmul.mubr.bf16.gmra.mrb[0].mxu0 %v326
  %v599 = vpop.f32.mrb[0].mxu0
  %v600 = vadd.f32 0.0, %v599
  %v601 = vpop.f32.mrb[0].mxu0
  %v602 = vpop.f32.mrb[0].mxu0
  %v603 = vadd.f32 0.0, %v602
  %v604 = vpop.f32.mrb[0].mxu0
  %605 = vmatprep.mubr.bf16.mxu0 0
  %606 = vmatmul.mubr.bf16.gmra.mrb[0].mxu0 %v329
  %v607 = vpop.f32.mrb[0].mxu0
  %v608 = vadd.f32 0.0, %v607
  %v609 = vpop.f32.mrb[0].mxu0
  %v610 = vpop.f32.mrb[0].mxu0
  %v611 = vadd.f32 0.0, %v610
  %v612 = vpop.f32.mrb[0].mxu0
  %613 = vmatprep.mubr.bf16.mxu0 0
  %614 = vmatmul.mubr.bf16.gmra.mrb[0].mxu0 %v332
  %v615 = vpop.f32.mrb[0].mxu0
  %v616 = vadd.f32 0.0, %v615
  %v617 = vpop.f32.mrb[0].mxu0
  %v618 = vpop.f32.mrb[0].mxu0
  %v619 = vadd.f32 0.0, %v618
  %v620 = vpop.f32.mrb[0].mxu0
  %621 = vmatprep.mubr.bf16.mxu0 0
  %622 = vmatmul.mubr.bf16.gmra.mrb[0].mxu0 %v335
  %v623 = vpop.f32.mrb[0].mxu0
  %v624 = vadd.f32 0.0, %v623
  %v625 = vpop.f32.mrb[0].mxu0
  %v626 = vpop.f32.mrb[0].mxu0
  %v627 = vadd.f32 0.0, %v626
  %v628 = vpop.f32.mrb[0].mxu0
  %629 = vdwg.mxu0
  %v630 = vpack.c.bf16 %v379, %v376
  %v631 = vpack.c.bf16 %v387, %v384
  %v632 = vpack.c.bf16 %v395, %v392
  %v633 = vpack.c.bf16 %v403, %v400
  %v634 = vpack.c.bf16 %v411, %v408
  %v635 = vpack.c.bf16 %v419, %v416
  %v636 = vpack.c.bf16 %v427, %v424
  %v637 = vpack.c.bf16 %v435, %v432
  %v638 = vpack.c.bf16 %v443, %v440
  %v639 = vpack.c.bf16 %v451, %v448
  %v640 = vpack.c.bf16 %v459, %v456
  %v641 = vpack.c.bf16 %v467, %v464
  %v642 = vpack.c.bf16 %v475, %v472
  %v643 = vpack.c.bf16 %v483, %v480
  %v644 = vpack.c.bf16 %v491, %v488
  %v645 = vpack.c.bf16 %v499, %v496
  %v646 = vpack.c.bf16 %v507, %v504
  %v647 = vpack.c.bf16 %v515, %v512
  %v648 = vpack.c.bf16 %v523, %v520
  %v649 = vpack.c.bf16 %v531, %v528
  %v650 = vpack.c.bf16 %v539, %v536
  %v651 = vpack.c.bf16 %v547, %v544
  %v652 = vpack.c.bf16 %v555, %v552
  %v653 = vpack.c.bf16 %v563, %v560
  %v654 = vpack.c.bf16 %v571, %v568
  %v655 = vpack.c.bf16 %v579, %v576
  %v656 = vpack.c.bf16 %v587, %v584
  %v657 = vpack.c.bf16 %v595, %v592
  %v658 = vpack.c.bf16 %v603, %v600
  %v659 = vpack.c.bf16 %v611, %v608
  %v660 = vpack.c.bf16 %v619, %v616
  %v661 = vpack.c.bf16 %v627, %v624
  %v694 = vunpack.c.l.b16 %v630
  %v695 = vunpack.c.h.b16 %v630
  %v696 = vunpack.c.l.b16 %v631
  %v697 = vunpack.c.h.b16 %v631
  %v698 = vunpack.c.l.b16 %v632
  %v699 = vunpack.c.h.b16 %v632
  %v700 = vunpack.c.l.b16 %v633
  %v701 = vunpack.c.h.b16 %v633
  %v702 = vunpack.c.l.b16 %v634
  %v703 = vunpack.c.h.b16 %v634
  %v704 = vunpack.c.l.b16 %v635
  %v705 = vunpack.c.h.b16 %v635
  %v706 = vunpack.c.l.b16 %v636
  %v707 = vunpack.c.h.b16 %v636
  %v708 = vunpack.c.l.b16 %v637
  %v709 = vunpack.c.h.b16 %v637
  %v710 = vunpack.c.l.b16 %v638
  %v711 = vunpack.c.h.b16 %v638
  %v712 = vunpack.c.l.b16 %v639
  %v713 = vunpack.c.h.b16 %v639
  %v714 = vunpack.c.l.b16 %v640
  %v715 = vunpack.c.h.b16 %v640
  %v716 = vunpack.c.l.b16 %v641
  %v717 = vunpack.c.h.b16 %v641
  %v718 = vunpack.c.l.b16 %v642
  %v719 = vunpack.c.h.b16 %v642
  %v720 = vunpack.c.l.b16 %v643
  %v721 = vunpack.c.h.b16 %v643
  %v722 = vunpack.c.l.b16 %v644
  %v723 = vunpack.c.h.b16 %v644
  %v724 = vunpack.c.l.b16 %v645
  %v725 = vunpack.c.h.b16 %v645
  %v726 = vunpack.c.l.b16 %v646
  %v727 = vunpack.c.h.b16 %v646
  %v728 = vunpack.c.l.b16 %v647
  %v729 = vunpack.c.h.b16 %v647
  %v730 = vunpack.c.l.b16 %v648
  %v731 = vunpack.c.h.b16 %v648
  %v732 = vunpack.c.l.b16 %v649
  %v733 = vunpack.c.h.b16 %v649
  %v734 = vunpack.c.l.b16 %v650
  %v735 = vunpack.c.h.b16 %v650
  %v736 = vunpack.c.l.b16 %v651
  %v737 = vunpack.c.h.b16 %v651
  %v738 = vunpack.c.l.b16 %v652
  %v739 = vunpack.c.h.b16 %v652
  %v740 = vunpack.c.l.b16 %v653
  %v741 = vunpack.c.h.b16 %v653
  %v742 = vunpack.c.l.b16 %v654
  %v743 = vunpack.c.h.b16 %v654
  %v744 = vunpack.c.l.b16 %v655
  %v745 = vunpack.c.h.b16 %v655
  %v746 = vunpack.c.l.b16 %v656
  %v747 = vunpack.c.h.b16 %v656
  %v748 = vunpack.c.l.b16 %v657
  %v749 = vunpack.c.h.b16 %v657
  %v750 = vunpack.c.l.b16 %v658
  %v751 = vunpack.c.h.b16 %v658
  %v752 = vunpack.c.l.b16 %v659
  %v753 = vunpack.c.h.b16 %v659
  %v754 = vunpack.c.l.b16 %v660
  %v755 = vunpack.c.h.b16 %v660
  %v756 = vunpack.c.l.b16 %v661
  %v757 = vunpack.c.h.b16 %v661
  %v758 = vpack.c.b16 %v694, %v694
  %v759 = vpack.c.b16 %v695, %v695
  %v760 = vpack.c.b16 %v696, %v696
  %v761 = vpack.c.b16 %v697, %v697
  %v762 = vpack.c.b16 %v698, %v698
  %v763 = vpack.c.b16 %v699, %v699
  %v764 = vpack.c.b16 %v700, %v700
  %v765 = vpack.c.b16 %v701, %v701
  %v766 = vpack.c.b16 %v702, %v702
  %v767 = vpack.c.b16 %v703, %v703
  %v768 = vpack.c.b16 %v704, %v704
  %v769 = vpack.c.b16 %v705, %v705
  %v770 = vpack.c.b16 %v706, %v706
  %v771 = vpack.c.b16 %v707, %v707
  %v772 = vpack.c.b16 %v708, %v708
  %v773 = vpack.c.b16 %v709, %v709
  %v774 = vpack.c.b16 %v710, %v710
  %v775 = vpack.c.b16 %v711, %v711
  %v776 = vpack.c.b16 %v712, %v712
  %v777 = vpack.c.b16 %v713, %v713
  %v778 = vpack.c.b16 %v714, %v714
  %v779 = vpack.c.b16 %v715, %v715
  %v780 = vpack.c.b16 %v716, %v716
  %v781 = vpack.c.b16 %v717, %v717
  %v782 = vpack.c.b16 %v718, %v718
  %v783 = vpack.c.b16 %v719, %v719
  %v784 = vpack.c.b16 %v720, %v720
  %v785 = vpack.c.b16 %v721, %v721
  %v786 = vpack.c.b16 %v722, %v722
  %v787 = vpack.c.b16 %v723, %v723
  %v788 = vpack.c.b16 %v724, %v724
  %v789 = vpack.c.b16 %v725, %v725
  %v790 = vpack.c.b16 %v726, %v726
  %v791 = vpack.c.b16 %v727, %v727
  %v792 = vpack.c.b16 %v728, %v728
  %v793 = vpack.c.b16 %v729, %v729
  %v794 = vpack.c.b16 %v730, %v730
  %v795 = vpack.c.b16 %v731, %v731
  %v796 = vpack.c.b16 %v732, %v732
  %v797 = vpack.c.b16 %v733, %v733
  %v798 = vpack.c.b16 %v734, %v734
  %v799 = vpack.c.b16 %v735, %v735
  %v800 = vpack.c.b16 %v736, %v736
  %v801 = vpack.c.b16 %v737, %v737
  %v802 = vpack.c.b16 %v738, %v738
  %v803 = vpack.c.b16 %v739, %v739
  %v804 = vpack.c.b16 %v740, %v740
  %v805 = vpack.c.b16 %v741, %v741
  %v806 = vpack.c.b16 %v742, %v742
  %v807 = vpack.c.b16 %v743, %v743
  %v808 = vpack.c.b16 %v744, %v744
  %v809 = vpack.c.b16 %v745, %v745
  %v810 = vpack.c.b16 %v746, %v746
  %v811 = vpack.c.b16 %v747, %v747
  %v812 = vpack.c.b16 %v748, %v748
  %v813 = vpack.c.b16 %v749, %v749
  %v814 = vpack.c.b16 %v750, %v750
  %v815 = vpack.c.b16 %v751, %v751
  %v816 = vpack.c.b16 %v752, %v752
  %v817 = vpack.c.b16 %v753, %v753
  %v818 = vpack.c.b16 %v754, %v754
  %v819 = vpack.c.b16 %v755, %v755
  %v820 = vpack.c.b16 %v756, %v756
  %v821 = vpack.c.b16 %v757, %v757
  %886 = vst [vmem:[%s2] sm:$0xf] %v758
  %887 = vst [vmem:[%s2 + $0x4] sm:$0xf] %v759
  %888 = vst [vmem:[%s2 + $0x8] sm:$0xf] %v760
  %889 = vst [vmem:[%s2 + $0xc] sm:$0xf] %v761
  %890 = vst [vmem:[%s2 + $0x10] sm:$0xf] %v762
  %891 = vst [vmem:[%s2 + $0x14] sm:$0xf] %v763
  %892 = vst [vmem:[%s2 + $0x18] sm:$0xf] %v764
  %893 = vst [vmem:[%s2 + $0x1c] sm:$0xf] %v765
  %894 = vst [vmem:[%s2 + $0x20] sm:$0xf] %v766
  %895 = vst [vmem:[%s2 + $0x24] sm:$0xf] %v767
  %896 = vst [vmem:[%s2 + $0x28] sm:$0xf] %v768
  %897 = vst [vmem:[%s2 + $0x2c] sm:$0xf] %v769
  %898 = vst [vmem:[%s2 + $0x30] sm:$0xf] %v770
  %899 = vst [vmem:[%s2 + $0x34] sm:$0xf] %v771
  %900 = vst [vmem:[%s2 + $0x38] sm:$0xf] %v772
  %901 = vst [vmem:[%s2 + $0x3c] sm:$0xf] %v773
  %902 = vst [vmem:[%s2 + $0x40] sm:$0xf] %v774
  %903 = vst [vmem:[%s2 + $0x44] sm:$0xf] %v775
  %904 = vst [vmem:[%s2 + $0x48] sm:$0xf] %v776
  %905 = vst [vmem:[%s2 + $0x4c] sm:$0xf] %v777
  %906 = vst [vmem:[%s2 + $0x50] sm:$0xf] %v778
  %907 = vst [vmem:[%s2 + $0x54] sm:$0xf] %v779
  %908 = vst [vmem:[%s2 + $0x58] sm:$0xf] %v780
  %909 = vst [vmem:[%s2 + $0x5c] sm:$0xf] %v781
  %910 = vst [vmem:[%s2 + $0x60] sm:$0xf] %v782
  %911 = vst [vmem:[%s2 + $0x64] sm:$0xf] %v783
  %912 = vst [vmem:[%s2 + $0x68] sm:$0xf] %v784
  %913 = vst [vmem:[%s2 + $0x6c] sm:$0xf] %v785
  %914 = vst [vmem:[%s2 + $0x70] sm:$0xf] %v786
  %915 = vst [vmem:[%s2 + $0x74] sm:$0xf] %v787
  %916 = vst [vmem:[%s2 + $0x78] sm:$0xf] %v788
  %917 = vst [vmem:[%s2 + $0x7c] sm:$0xf] %v789
  %918 = vst [vmem:[%s2 + $0x80] sm:$0xf] %v790
  %919 = vst [vmem:[%s2 + $0x84] sm:$0xf] %v791
  %920 = vst [vmem:[%s2 + $0x88] sm:$0xf] %v792
  %921 = vst [vmem:[%s2 + $0x8c] sm:$0xf] %v793
  %922 = vst [vmem:[%s2 + $0x90] sm:$0xf] %v794
  %923 = vst [vmem:[%s2 + $0x94] sm:$0xf] %v795
  %924 = vst [vmem:[%s2 + $0x98] sm:$0xf] %v796
  %925 = vst [vmem:[%s2 + $0x9c] sm:$0xf] %v797
  %926 = vst [vmem:[%s2 + $0xa0] sm:$0xf] %v798
  %927 = vst [vmem:[%s2 + $0xa4] sm:$0xf] %v799
  %928 = vst [vmem:[%s2 + $0xa8] sm:$0xf] %v800
  %929 = vst [vmem:[%s2 + $0xac] sm:$0xf] %v801
  %930 = vst [vmem:[%s2 + $0xb0] sm:$0xf] %v802
  %931 = vst [vmem:[%s2 + $0xb4] sm:$0xf] %v803
  %932 = vst [vmem:[%s2 + $0xb8] sm:$0xf] %v804
  %933 = vst [vmem:[%s2 + $0xbc] sm:$0xf] %v805
  %934 = vst [vmem:[%s2 + $0xc0] sm:$0xf] %v806
  %935 = vst [vmem:[%s2 + $0xc4] sm:$0xf] %v807
  %936 = vst [vmem:[%s2 + $0xc8] sm:$0xf] %v808
  %937 = vst [vmem:[%s2 + $0xcc] sm:$0xf] %v809
  %938 = vst [vmem:[%s2 + $0xd0] sm:$0xf] %v810
  %939 = vst [vmem:[%s2 + $0xd4] sm:$0xf] %v811
  %940 = vst [vmem:[%s2 + $0xd8] sm:$0xf] %v812
  %941 = vst [vmem:[%s2 + $0xdc] sm:$0xf] %v813
  %942 = vst [vmem:[%s2 + $0xe0] sm:$0xf] %v814
  %943 = vst [vmem:[%s2 + $0xe4] sm:$0xf] %v815
  %944 = vst [vmem:[%s2 + $0xe8] sm:$0xf] %v816
  %945 = vst [vmem:[%s2 + $0xec] sm:$0xf] %v817
  %946 = vst [vmem:[%s2 + $0xf0] sm:$0xf] %v818
  %947 = vst [vmem:[%s2 + $0xf4] sm:$0xf] %v819
  %948 = vst [vmem:[%s2 + $0xf8] sm:$0xf] %v820
  %949 = vst [vmem:[%s2 + $0xfc] sm:$0xf] %v821
  %v950 = vadd.f32 %v376, %v379
  %v951 = vadd.f32 %v950, %v384
  %v952 = vadd.f32 %v951, %v387
  %v953 = vadd.f32 %v952, %v392
  %v954 = vadd.f32 %v953, %v395
  %v955 = vadd.f32 %v954, %v400
  %v956 = vadd.f32 %v955, %v403
  %v957 = vadd.f32 %v956, %v408
  %v958 = vadd.f32 %v957, %v411
  %v959 = vadd.f32 %v958, %v416
  %v960 = vadd.f32 %v959, %v419
  %v961 = vadd.f32 %v960, %v424
  %v962 = vadd.f32 %v961, %v427
  %v963 = vadd.f32 %v962, %v432
  %v964 = vadd.f32 %v963, %v435
  %v965 = vadd.f32 %v964, %v440
  %v966 = vadd.f32 %v965, %v443
  %v967 = vadd.f32 %v966, %v448
  %v968 = vadd.f32 %v967, %v451
  %v969 = vadd.f32 %v968, %v456
  %v970 = vadd.f32 %v969, %v459
  %v971 = vadd.f32 %v970, %v464
  %v972 = vadd.f32 %v971, %v467
  %v973 = vadd.f32 %v972, %v472
  %v974 = vadd.f32 %v973, %v475
  %v975 = vadd.f32 %v974, %v480
  %v976 = vadd.f32 %v975, %v483
  %v977 = vadd.f32 %v976, %v488
  %v978 = vadd.f32 %v977, %v491
  %v979 = vadd.f32 %v978, %v496
  %v980 = vadd.f32 %v979, %v499
  %v981 = vadd.f32 %v980, %v504
  %v982 = vadd.f32 %v981, %v507
  %v983 = vadd.f32 %v982, %v512
  %v984 = vadd.f32 %v983, %v515
  %v985 = vadd.f32 %v984, %v520
  %v986 = vadd.f32 %v985, %v523
  %v987 = vadd.f32 %v986, %v528
  %v988 = vadd.f32 %v987, %v531
  %v989 = vadd.f32 %v988, %v536
  %v990 = vadd.f32 %v989, %v539
  %v991 = vadd.f32 %v990, %v544
  %v992 = vadd.f32 %v991, %v547
  %v993 = vadd.f32 %v992, %v552
  %v994 = vadd.f32 %v993, %v555
  %v995 = vadd.f32 %v994, %v560
  %v996 = vadd.f32 %v995, %v563
  %v997 = vadd.f32 %v996, %v568
  %v998 = vadd.f32 %v997, %v571
  %v999 = vadd.f32 %v998, %v576
  %v1000 = vadd.f32 %v999, %v579
  %v1001 = vadd.f32 %v1000, %v584
  %v1002 = vadd.f32 %v1001, %v587
  %v1003 = vadd.f32 %v1002, %v592
  %v1004 = vadd.f32 %v1003, %v595
  %v1005 = vadd.f32 %v1004, %v600
  %v1006 = vadd.f32 %v1005, %v603
  %v1007 = vadd.f32 %v1006, %v608
  %v1008 = vadd.f32 %v1007, %v611
  %v1009 = vadd.f32 %v1008, %v616
  %v1010 = vadd.f32 %v1009, %v619
  %v1011 = vadd.f32 %v1010, %v624
  %v1012 = vadd.f32 %v1011, %v627
  %v1013 = vrot.slane %v1012, 4
  %v1014 = vadd.f32 %v1012, %v1013
  %v1015 = vrot.slane %v1014, 2
  %v1016 = vadd.f32 %v1014, %v1015
  %v1017 = vrot.slane %v1016, 1
  %v1018 = vadd.f32 %v1016, %v1017
  %1019 = vst [vmem:[%s3] sm:$0x1] %v1018
  %v1020 = vmul.f32 %v376, %v376
  %v1021 = vmul.f32 %v379, %v379
  %v1022 = vmul.f32 %v384, %v384
  %v1023 = vmul.f32 %v387, %v387
  %v1024 = vmul.f32 %v392, %v392
  %v1025 = vmul.f32 %v395, %v395
  %v1026 = vmul.f32 %v400, %v400
  %v1027 = vmul.f32 %v403, %v403
  %v1028 = vmul.f32 %v408, %v408
  %v1029 = vmul.f32 %v411, %v411
  %v1030 = vmul.f32 %v416, %v416
  %v1031 = vmul.f32 %v419, %v419
  %v1032 = vmul.f32 %v424, %v424
  %v1033 = vmul.f32 %v427, %v427
  %v1034 = vmul.f32 %v432, %v432
  %v1035 = vmul.f32 %v435, %v435
  %v1036 = vmul.f32 %v440, %v440
  %v1037 = vmul.f32 %v443, %v443
  %v1038 = vmul.f32 %v448, %v448
  %v1039 = vmul.f32 %v451, %v451
  %v1040 = vmul.f32 %v456, %v456
  %v1041 = vmul.f32 %v459, %v459
  %v1042 = vmul.f32 %v464, %v464
  %v1043 = vmul.f32 %v467, %v467
  %v1044 = vmul.f32 %v472, %v472
  %v1045 = vmul.f32 %v475, %v475
  %v1046 = vmul.f32 %v480, %v480
  %v1047 = vmul.f32 %v483, %v483
  %v1048 = vmul.f32 %v488, %v488
  %v1049 = vmul.f32 %v491, %v491
  %v1050 = vmul.f32 %v496, %v496
  %v1051 = vmul.f32 %v499, %v499
  %v1052 = vmul.f32 %v504, %v504
  %v1053 = vmul.f32 %v507, %v507
  %v1054 = vmul.f32 %v512, %v512
  %v1055 = vmul.f32 %v515, %v515
  %v1056 = vmul.f32 %v520, %v520
  %v1057 = vmul.f32 %v523, %v523
  %v1058 = vmul.f32 %v528, %v528
  %v1059 = vmul.f32 %v531, %v531
  %v1060 = vmul.f32 %v536, %v536
  %v1061 = vmul.f32 %v539, %v539
  %v1062 = vmul.f32 %v544, %v544
  %v1063 = vmul.f32 %v547, %v547
  %v1064 = vmul.f32 %v552, %v552
  %v1065 = vmul.f32 %v555, %v555
  %v1066 = vmul.f32 %v560, %v560
  %v1067 = vmul.f32 %v563, %v563
  %v1068 = vmul.f32 %v568, %v568
  %v1069 = vmul.f32 %v571, %v571
  %v1070 = vmul.f32 %v576, %v576
  %v1071 = vmul.f32 %v579, %v579
  %v1072 = vmul.f32 %v584, %v584
  %v1073 = vmul.f32 %v587, %v587
  %v1074 = vmul.f32 %v592, %v592
  %v1075 = vmul.f32 %v595, %v595
  %v1076 = vmul.f32 %v600, %v600
  %v1077 = vmul.f32 %v603, %v603
  %v1078 = vmul.f32 %v608, %v608
  %v1079 = vmul.f32 %v611, %v611
  %v1080 = vmul.f32 %v616, %v616
  %v1081 = vmul.f32 %v619, %v619
  %v1082 = vmul.f32 %v624, %v624
  %v1083 = vmul.f32 %v627, %v627
  %v1084 = vadd.f32 %v1020, %v1021
  %v1085 = vadd.f32 %v1084, %v1022
  %v1086 = vadd.f32 %v1085, %v1023
  %v1087 = vadd.f32 %v1086, %v1024
  %v1088 = vadd.f32 %v1087, %v1025
  %v1089 = vadd.f32 %v1088, %v1026
  %v1090 = vadd.f32 %v1089, %v1027
  %v1091 = vadd.f32 %v1090, %v1028
  %v1092 = vadd.f32 %v1091, %v1029
  %v1093 = vadd.f32 %v1092, %v1030
  %v1094 = vadd.f32 %v1093, %v1031
  %v1095 = vadd.f32 %v1094, %v1032
  %v1096 = vadd.f32 %v1095, %v1033
  %v1097 = vadd.f32 %v1096, %v1034
  %v1098 = vadd.f32 %v1097, %v1035
  %v1099 = vadd.f32 %v1098, %v1036
  %v1100 = vadd.f32 %v1099, %v1037
  %v1101 = vadd.f32 %v1100, %v1038
  %v1102 = vadd.f32 %v1101, %v1039
  %v1103 = vadd.f32 %v1102, %v1040
  %v1104 = vadd.f32 %v1103, %v1041
  %v1105 = vadd.f32 %v1104, %v1042
  %v1106 = vadd.f32 %v1105, %v1043
  %v1107 = vadd.f32 %v1106, %v1044
  %v1108 = vadd.f32 %v1107, %v1045
  %v1109 = vadd.f32 %v1108, %v1046
  %v1110 = vadd.f32 %v1109, %v1047
  %v1111 = vadd.f32 %v1110, %v1048
  %v1112 = vadd.f32 %v1111, %v1049
  %v1113 = vadd.f32 %v1112, %v1050
  %v1114 = vadd.f32 %v1113, %v1051
  %v1115 = vadd.f32 %v1114, %v1052
  %v1116 = vadd.f32 %v1115, %v1053
  %v1117 = vadd.f32 %v1116, %v1054
  %v1118 = vadd.f32 %v1117, %v1055
  %v1119 = vadd.f32 %v1118, %v1056
  %v1120 = vadd.f32 %v1119, %v1057
  %v1121 = vadd.f32 %v1120, %v1058
  %v1122 = vadd.f32 %v1121, %v1059
  %v1123 = vadd.f32 %v1122, %v1060
  %v1124 = vadd.f32 %v1123, %v1061
  %v1125 = vadd.f32 %v1124, %v1062
  %v1126 = vadd.f32 %v1125, %v1063
  %v1127 = vadd.f32 %v1126, %v1064
  %v1128 = vadd.f32 %v1127, %v1065
  %v1129 = vadd.f32 %v1128, %v1066
  %v1130 = vadd.f32 %v1129, %v1067
  %v1131 = vadd.f32 %v1130, %v1068
  %v1132 = vadd.f32 %v1131, %v1069
  %v1133 = vadd.f32 %v1132, %v1070
  %v1134 = vadd.f32 %v1133, %v1071
  %v1135 = vadd.f32 %v1134, %v1072
  %v1136 = vadd.f32 %v1135, %v1073
  %v1137 = vadd.f32 %v1136, %v1074
  %v1138 = vadd.f32 %v1137, %v1075
  %v1139 = vadd.f32 %v1138, %v1076
  %v1140 = vadd.f32 %v1139, %v1077
  %v1141 = vadd.f32 %v1140, %v1078
  %v1142 = vadd.f32 %v1141, %v1079
  %v1143 = vadd.f32 %v1142, %v1080
  %v1144 = vadd.f32 %v1143, %v1081
  %v1145 = vadd.f32 %v1144, %v1082
  %v1146 = vadd.f32 %v1145, %v1083
  %v1147 = vrot.slane %v1146, 4
  %v1148 = vadd.f32 %v1146, %v1147
  %v1149 = vrot.slane %v1148, 2
  %v1150 = vadd.f32 %v1148, %v1149
  %v1151 = vrot.slane %v1150, 1
  %v1152 = vadd.f32 %v1150, %v1151
  %1153 = vst [vmem:[%s4] sm:$0x1] %v1152
  // Predicated region
  $region10: #{basic_block_forward.8} parent=0 // pred_check
    _
  $region11: #{basic_block_forward.8} parent=0 // pred_check_branch
    %1155 = sbr.rel (0) target = $region13
  $region12: #{basic_block_forward.8} parent=0 // pred_region
    _
  $region13: #{basic_block_forward.8} parent=0 // pred_fallthru
    _
  // Predicated region
  $region14: #{basic_block_forward.8} parent=0 // pred_check
    _
  $region15: #{basic_block_forward.8} parent=0 // pred_check_branch
    %1157 = sbr.rel (0) target = $region17
  $region16: #{basic_block_forward.8} parent=0 // pred_region
    _
  $region17: #{basic_block_forward.8} parent=0 // pred_fallthru
    _
  // Predicated region
  $region18: #{basic_block_forward.8} parent=0 // pred_check
    _
  $region19: #{basic_block_forward.8} parent=0 // pred_check_branch
    %1159 = sbr.rel (0) target = $region21
  $region20: #{basic_block_forward.8} parent=0 // pred_region
    _
  $region21: #{basic_block_forward.8} parent=0 // pred_fallthru
    _
  // Predicated region
  $region22: #{basic_block_forward.8} parent=0 // pred_check
    _
  $region23: #{basic_block_forward.8} parent=0 // pred_check_branch
    %1161 = sbr.rel (0) target = $region25
  $region24: #{basic_block_forward.8} parent=0 // pred_region
    _
  $region25: #{basic_block_forward.8} parent=0 // pred_fallthru
    _
  // Predicated region
  $region26: #{basic_block_forward.8} parent=0 // pred_check
    _
  $region27: #{basic_block_forward.8} parent=0 // pred_check_branch
    %1163 = sbr.rel (0) target = $region29
  $region28: #{basic_block_forward.8} parent=0 // pred_region
    _
  $region29: #{basic_block_forward.8} parent=0 // pred_fallthru
    _
  // Predicated region
  $region30: #{basic_block_forward.8} parent=0 // pred_check
    _
  $region31: #{basic_block_forward.8} parent=0 // pred_check_branch
    %1165 = sbr.rel (0) target = $region33
  $region32: #{basic_block_forward.8} parent=0 // pred_region
    _
  $region33: #{basic_block_forward.8} parent=0 // pred_fallthru
    _

// kernel: basic_block_forward.9
$region0: #{basic_block_forward.9}
  #allocation0 [shape = 'u32[]', space=smem, size = 0x4, offset = 0x4, fixed_abs, tag = 'smem constant byte address 0x4 - core index']
  #allocation1 [shape = 'u32[144,128]{1,0:T(1,128)}', space=vmem, size = 0x12000, scoped, tag = 'internal scratch']
  %s0 = inlined_call_operand.vmem [shape: bf16[512,128], index: 0, kind: input, shape index: {}]
  %s1 = inlined_call_operand.vmem [shape: f32[1,128], index: 1, kind: input, shape index: {}]
  %s2 = inlined_call_operand.vmem [shape: f32[1,128], index: 2, kind: input, shape index: {}]
  %s3 = inlined_call_operand.vmem [shape: bf16[512,128], index: 3, kind: input, shape index: {}]
  %s4 = inlined_call_operand.vmem [shape: f32[1,128], index: 4, kind: input, shape index: {}]
  %s5 = inlined_call_operand.vmem [shape: f32[1,128], index: 5, kind: input, shape index: {}]
  %s6 = inlined_call_operand.vmem [shape: f32[512,128], index: 6, kind: output, shape index: {}]
  %s7 = sld [smem:[#allocation0]]
  $region34: #{basic_block_forward.9} parent=0
    _
  %s9 = ssub.s32 1, %s7
  %s10 = scalar_select 0, %s9, %s7
  // Predicated region
  $region2: #{basic_block_forward.9} parent=0 // pred_check
    _
  $region3: #{basic_block_forward.9} parent=0 // pred_check_branch
    %12 = sbr.rel (0) target = $region5
  $region4: #{basic_block_forward.9} parent=0 // pred_region
    _
  $region5: #{basic_block_forward.9} parent=0 // pred_fallthru
    _
  // Predicated region
  $region6: #{basic_block_forward.9} parent=0 // pred_check
    _
  $region7: #{basic_block_forward.9} parent=0 // pred_check_branch
    %14 = sbr.rel (0) target = $region9
  $region8: #{basic_block_forward.9} parent=0 // pred_region
    _
  $region9: #{basic_block_forward.9} parent=0 // pred_fallthru
    _
  // Predicated region
  $region10: #{basic_block_forward.9} parent=0 // pred_check
    _
  $region11: #{basic_block_forward.9} parent=0 // pred_check_branch
    %16 = sbr.rel (0) target = $region13
  $region12: #{basic_block_forward.9} parent=0 // pred_region
    _
  $region13: #{basic_block_forward.9} parent=0 // pred_fallthru
    _
  // Predicated region
  $region14: #{basic_block_forward.9} parent=0 // pred_check
    _
  $region15: #{basic_block_forward.9} parent=0 // pred_check_branch
    %18 = sbr.rel (0) target = $region17
  $region16: #{basic_block_forward.9} parent=0 // pred_region
    _
  $region17: #{basic_block_forward.9} parent=0 // pred_fallthru
    _
  // Predicated region
  $region18: #{basic_block_forward.9} parent=0 // pred_check
    _
  $region19: #{basic_block_forward.9} parent=0 // pred_check_branch
    %20 = sbr.rel (0) target = $region21
  $region20: #{basic_block_forward.9} parent=0 // pred_region
    _
  $region21: #{basic_block_forward.9} parent=0 // pred_fallthru
    _
  // Predicated region
  $region22: #{basic_block_forward.9} parent=0 // pred_check
    _
  $region23: #{basic_block_forward.9} parent=0 // pred_check_branch
    %22 = sbr.rel (0) target = $region25
  $region24: #{basic_block_forward.9} parent=0 // pred_region
    _
  $region25: #{basic_block_forward.9} parent=0 // pred_fallthru
    _
  %v23 = vld [vmem:[%s0] sm:$0xf]
  %v24 = vld [vmem:[%s0 + $0x4] sm:$0xf]
  %v25 = vld [vmem:[%s0 + $0x8] sm:$0xf]
  %v26 = vld [vmem:[%s0 + $0xc] sm:$0xf]
  %v27 = vld [vmem:[%s0 + $0x10] sm:$0xf]
  %v28 = vld [vmem:[%s0 + $0x14] sm:$0xf]
  %v29 = vld [vmem:[%s0 + $0x18] sm:$0xf]
  %v30 = vld [vmem:[%s0 + $0x1c] sm:$0xf]
  %v31 = vld [vmem:[%s0 + $0x20] sm:$0xf]
  %v32 = vld [vmem:[%s0 + $0x24] sm:$0xf]
  %v33 = vld [vmem:[%s0 + $0x28] sm:$0xf]
  %v34 = vld [vmem:[%s0 + $0x2c] sm:$0xf]
  %v35 = vld [vmem:[%s0 + $0x30] sm:$0xf]
  %v36 = vld [vmem:[%s0 + $0x34] sm:$0xf]
  %v37 = vld [vmem:[%s0 + $0x38] sm:$0xf]
  %v38 = vld [vmem:[%s0 + $0x3c] sm:$0xf]
  %v39 = vld [vmem:[%s0 + $0x40] sm:$0xf]
  %v40 = vld [vmem:[%s0 + $0x44] sm:$0xf]
  %v41 = vld [vmem:[%s0 + $0x48] sm:$0xf]
  %v42 = vld [vmem:[%s0 + $0x4c] sm:$0xf]
  %v43 = vld [vmem:[%s0 + $0x50] sm:$0xf]
  %v44 = vld [vmem:[%s0 + $0x54] sm:$0xf]
  %v45 = vld [vmem:[%s0 + $0x58] sm:$0xf]
  %v46 = vld [vmem:[%s0 + $0x5c] sm:$0xf]
  %v47 = vld [vmem:[%s0 + $0x60] sm:$0xf]
  %v48 = vld [vmem:[%s0 + $0x64] sm:$0xf]
  %v49 = vld [vmem:[%s0 + $0x68] sm:$0xf]
  %v50 = vld [vmem:[%s0 + $0x6c] sm:$0xf]
  %v51 = vld [vmem:[%s0 + $0x70] sm:$0xf]
  %v52 = vld [vmem:[%s0 + $0x74] sm:$0xf]
  %v53 = vld [vmem:[%s0 + $0x78] sm:$0xf]
  %v54 = vld [vmem:[%s0 + $0x7c] sm:$0xf]
  %v55 = vld [vmem:[%s0 + $0x80] sm:$0xf]
  %v56 = vld [vmem:[%s0 + $0x84] sm:$0xf]
  %v57 = vld [vmem:[%s0 + $0x88] sm:$0xf]
  %v58 = vld [vmem:[%s0 + $0x8c] sm:$0xf]
  %v59 = vld [vmem:[%s0 + $0x90] sm:$0xf]
  %v60 = vld [vmem:[%s0 + $0x94] sm:$0xf]
  %v61 = vld [vmem:[%s0 + $0x98] sm:$0xf]
  %v62 = vld [vmem:[%s0 + $0x9c] sm:$0xf]
  %v63 = vld [vmem:[%s0 + $0xa0] sm:$0xf]
  %v64 = vld [vmem:[%s0 + $0xa4] sm:$0xf]
  %v65 = vld [vmem:[%s0 + $0xa8] sm:$0xf]
  %v66 = vld [vmem:[%s0 + $0xac] sm:$0xf]
  %v67 = vld [vmem:[%s0 + $0xb0] sm:$0xf]
  %v68 = vld [vmem:[%s0 + $0xb4] sm:$0xf]
  %v69 = vld [vmem:[%s0 + $0xb8] sm:$0xf]
  %v70 = vld [vmem:[%s0 + $0xbc] sm:$0xf]
  %v71 = vld [vmem:[%s0 + $0xc0] sm:$0xf]
  %v72 = vld [vmem:[%s0 + $0xc4] sm:$0xf]
  %v73 = vld [vmem:[%s0 + $0xc8] sm:$0xf]
  %v74 = vld [vmem:[%s0 + $0xcc] sm:$0xf]
  %v75 = vld [vmem:[%s0 + $0xd0] sm:$0xf]
  %v76 = vld [vmem:[%s0 + $0xd4] sm:$0xf]
  %v77 = vld [vmem:[%s0 + $0xd8] sm:$0xf]
  %v78 = vld [vmem:[%s0 + $0xdc] sm:$0xf]
  %v79 = vld [vmem:[%s0 + $0xe0] sm:$0xf]
  %v80 = vld [vmem:[%s0 + $0xe4] sm:$0xf]
  %v81 = vld [vmem:[%s0 + $0xe8] sm:$0xf]
  %v82 = vld [vmem:[%s0 + $0xec] sm:$0xf]
  %v83 = vld [vmem:[%s0 + $0xf0] sm:$0xf]
  %v84 = vld [vmem:[%s0 + $0xf4] sm:$0xf]
  %v85 = vld [vmem:[%s0 + $0xf8] sm:$0xf]
  %v86 = vld [vmem:[%s0 + $0xfc] sm:$0xf]
  %v87 = vunpack.c.l.bf16 %v23
  %v88 = vunpack.c.l.bf16 %v24
  %v89 = vunpack.c.l.bf16 %v25
  %v90 = vunpack.c.l.bf16 %v26
  %v91 = vunpack.c.l.bf16 %v27
  %v92 = vunpack.c.l.bf16 %v28
  %v93 = vunpack.c.l.bf16 %v29
  %v94 = vunpack.c.l.bf16 %v30
  %v95 = vunpack.c.l.bf16 %v31
  %v96 = vunpack.c.l.bf16 %v32
  %v97 = vunpack.c.l.bf16 %v33
  %v98 = vunpack.c.l.bf16 %v34
  %v99 = vunpack.c.l.bf16 %v35
  %v100 = vunpack.c.l.bf16 %v36
  %v101 = vunpack.c.l.bf16 %v37
  %v102 = vunpack.c.l.bf16 %v38
  %v103 = vunpack.c.l.bf16 %v39
  %v104 = vunpack.c.l.bf16 %v40
  %v105 = vunpack.c.l.bf16 %v41
  %v106 = vunpack.c.l.bf16 %v42
  %v107 = vunpack.c.l.bf16 %v43
  %v108 = vunpack.c.l.bf16 %v44
  %v109 = vunpack.c.l.bf16 %v45
  %v110 = vunpack.c.l.bf16 %v46
  %v111 = vunpack.c.l.bf16 %v47
  %v112 = vunpack.c.l.bf16 %v48
  %v113 = vunpack.c.l.bf16 %v49
  %v114 = vunpack.c.l.bf16 %v50
  %v115 = vunpack.c.l.bf16 %v51
  %v116 = vunpack.c.l.bf16 %v52
  %v117 = vunpack.c.l.bf16 %v53
  %v118 = vunpack.c.l.bf16 %v54
  %v119 = vunpack.c.l.bf16 %v55
  %v120 = vunpack.c.l.bf16 %v56
  %v121 = vunpack.c.l.bf16 %v57
  %v122 = vunpack.c.l.bf16 %v58
  %v123 = vunpack.c.l.bf16 %v59
  %v124 = vunpack.c.l.bf16 %v60
  %v125 = vunpack.c.l.bf16 %v61
  %v126 = vunpack.c.l.bf16 %v62
  %v127 = vunpack.c.l.bf16 %v63
  %v128 = vunpack.c.l.bf16 %v64
  %v129 = vunpack.c.l.bf16 %v65
  %v130 = vunpack.c.l.bf16 %v66
  %v131 = vunpack.c.l.bf16 %v67
  %v132 = vunpack.c.l.bf16 %v68
  %v133 = vunpack.c.l.bf16 %v69
  %v134 = vunpack.c.l.bf16 %v70
  %v135 = vunpack.c.l.bf16 %v71
  %v136 = vunpack.c.l.bf16 %v72
  %v137 = vunpack.c.l.bf16 %v73
  %v138 = vunpack.c.l.bf16 %v74
  %v139 = vunpack.c.l.bf16 %v75
  %v140 = vunpack.c.l.bf16 %v76
  %v141 = vunpack.c.l.bf16 %v77
  %v142 = vunpack.c.l.bf16 %v78
  %v143 = vunpack.c.l.bf16 %v79
  %v144 = vunpack.c.l.bf16 %v80
  %v145 = vunpack.c.l.bf16 %v81
  %v146 = vunpack.c.l.bf16 %v82
  %v147 = vunpack.c.l.bf16 %v83
  %v148 = vunpack.c.l.bf16 %v84
  %v149 = vunpack.c.l.bf16 %v85
  %v150 = vunpack.c.l.bf16 %v86
  %v151 = vld [vmem:[%s1] sm:$0x1]
  %v153 = vlaneseq
  %v154 = vshrl.u32 %v153, 7
  %v155 = vsub.s32 0, %v154
  %v156 = vrot.slane %v151, %v155
  %v158 = vmul.f32 %v87, %v156
  %v159 = vmul.f32 %v88, %v156
  %v160 = vmul.f32 %v89, %v156
  %v161 = vmul.f32 %v90, %v156
  %v162 = vmul.f32 %v91, %v156
  %v163 = vmul.f32 %v92, %v156
  %v164 = vmul.f32 %v93, %v156
  %v165 = vmul.f32 %v94, %v156
  %v166 = vmul.f32 %v95, %v156
  %v167 = vmul.f32 %v96, %v156
  %v168 = vmul.f32 %v97, %v156
  %v169 = vmul.f32 %v98, %v156
  %v170 = vmul.f32 %v99, %v156
  %v171 = vmul.f32 %v100, %v156
  %v172 = vmul.f32 %v101, %v156
  %v173 = vmul.f32 %v102, %v156
  %v174 = vmul.f32 %v103, %v156
  %v175 = vmul.f32 %v104, %v156
  %v176 = vmul.f32 %v105, %v156
  %v177 = vmul.f32 %v106, %v156
  %v178 = vmul.f32 %v107, %v156
  %v179 = vmul.f32 %v108, %v156
  %v180 = vmul.f32 %v109, %v156
  %v181 = vmul.f32 %v110, %v156
  %v182 = vmul.f32 %v111, %v156
  %v183 = vmul.f32 %v112, %v156
  %v184 = vmul.f32 %v113, %v156
  %v185 = vmul.f32 %v114, %v156
  %v186 = vmul.f32 %v115, %v156
  %v187 = vmul.f32 %v116, %v156
  %v188 = vmul.f32 %v117, %v156
  %v189 = vmul.f32 %v118, %v156
  %v190 = vmul.f32 %v119, %v156
  %v191 = vmul.f32 %v120, %v156
  %v192 = vmul.f32 %v121, %v156
  %v193 = vmul.f32 %v122, %v156
  %v194 = vmul.f32 %v123, %v156
  %v195 = vmul.f32 %v124, %v156
  %v196 = vmul.f32 %v125, %v156
  %v197 = vmul.f32 %v126, %v156
  %v198 = vmul.f32 %v127, %v156
  %v199 = vmul.f32 %v128, %v156
  %v200 = vmul.f32 %v129, %v156
  %v201 = vmul.f32 %v130, %v156
  %v202 = vmul.f32 %v131, %v156
  %v203 = vmul.f32 %v132, %v156
  %v204 = vmul.f32 %v133, %v156
  %v205 = vmul.f32 %v134, %v156
  %v206 = vmul.f32 %v135, %v156
  %v207 = vmul.f32 %v136, %v156
  %v208 = vmul.f32 %v137, %v156
  %v209 = vmul.f32 %v138, %v156
  %v210 = vmul.f32 %v139, %v156
  %v211 = vmul.f32 %v140, %v156
  %v212 = vmul.f32 %v141, %v156
  %v213 = vmul.f32 %v142, %v156
  %v214 = vmul.f32 %v143, %v156
  %v215 = vmul.f32 %v144, %v156
  %v216 = vmul.f32 %v145, %v156
  %v217 = vmul.f32 %v146, %v156
  %v218 = vmul.f32 %v147, %v156
  %v219 = vmul.f32 %v148, %v156
  %v220 = vmul.f32 %v149, %v156
  %v221 = vmul.f32 %v150, %v156
  %v222 = vld [vmem:[%s2] sm:$0x1]
  %v224 = vlaneseq
  %v225 = vshrl.u32 %v224, 7
  %v226 = vsub.s32 0, %v225
  %v227 = vrot.slane %v222, %v226
  %v229 = vadd.f32 %v158, %v227
  %v230 = vadd.f32 %v159, %v227
  %v231 = vadd.f32 %v160, %v227
  %v232 = vadd.f32 %v161, %v227
  %v233 = vadd.f32 %v162, %v227
  %v234 = vadd.f32 %v163, %v227
  %v235 = vadd.f32 %v164, %v227
  %v236 = vadd.f32 %v165, %v227
  %v237 = vadd.f32 %v166, %v227
  %v238 = vadd.f32 %v167, %v227
  %v239 = vadd.f32 %v168, %v227
  %v240 = vadd.f32 %v169, %v227
  %v241 = vadd.f32 %v170, %v227
  %v242 = vadd.f32 %v171, %v227
  %v243 = vadd.f32 %v172, %v227
  %v244 = vadd.f32 %v173, %v227
  %v245 = vadd.f32 %v174, %v227
  %v246 = vadd.f32 %v175, %v227
  %v247 = vadd.f32 %v176, %v227
  %v248 = vadd.f32 %v177, %v227
  %v249 = vadd.f32 %v178, %v227
  %v250 = vadd.f32 %v179, %v227
  %v251 = vadd.f32 %v180, %v227
  %v252 = vadd.f32 %v181, %v227
  %v253 = vadd.f32 %v182, %v227
  %v254 = vadd.f32 %v183, %v227
  %v255 = vadd.f32 %v184, %v227
  %v256 = vadd.f32 %v185, %v227
  %v257 = vadd.f32 %v186, %v227
  %v258 = vadd.f32 %v187, %v227
  %v259 = vadd.f32 %v188, %v227
  %v260 = vadd.f32 %v189, %v227
  %v261 = vadd.f32 %v190, %v227
  %v262 = vadd.f32 %v191, %v227
  %v263 = vadd.f32 %v192, %v227
  %v264 = vadd.f32 %v193, %v227
  %v265 = vadd.f32 %v194, %v227
  %v266 = vadd.f32 %v195, %v227
  %v267 = vadd.f32 %v196, %v227
  %v268 = vadd.f32 %v197, %v227
  %v269 = vadd.f32 %v198, %v227
  %v270 = vadd.f32 %v199, %v227
  %v271 = vadd.f32 %v200, %v227
  %v272 = vadd.f32 %v201, %v227
  %v273 = vadd.f32 %v202, %v227
  %v274 = vadd.f32 %v203, %v227
  %v275 = vadd.f32 %v204, %v227
  %v276 = vadd.f32 %v205, %v227
  %v277 = vadd.f32 %v206, %v227
  %v278 = vadd.f32 %v207, %v227
  %v279 = vadd.f32 %v208, %v227
  %v280 = vadd.f32 %v209, %v227
  %v281 = vadd.f32 %v210, %v227
  %v282 = vadd.f32 %v211, %v227
  %v283 = vadd.f32 %v212, %v227
  %v284 = vadd.f32 %v213, %v227
  %v285 = vadd.f32 %v214, %v227
  %v286 = vadd.f32 %v215, %v227
  %v287 = vadd.f32 %v216, %v227
  %v288 = vadd.f32 %v217, %v227
  %v289 = vadd.f32 %v218, %v227
  %v290 = vadd.f32 %v219, %v227
  %v291 = vadd.f32 %v220, %v227
  %v292 = vadd.f32 %v221, %v227
  %v293 = vld [vmem:[%s3] sm:$0xf]
  %v294 = vld [vmem:[%s3 + $0x4] sm:$0xf]
  %v295 = vld [vmem:[%s3 + $0x8] sm:$0xf]
  %v296 = vld [vmem:[%s3 + $0xc] sm:$0xf]
  %v297 = vld [vmem:[%s3 + $0x10] sm:$0xf]
  %v298 = vld [vmem:[%s3 + $0x14] sm:$0xf]
  %v299 = vld [vmem:[%s3 + $0x18] sm:$0xf]
  %v300 = vld [vmem:[%s3 + $0x1c] sm:$0xf]
  %v301 = vld [vmem:[%s3 + $0x20] sm:$0xf]
  %v302 = vld [vmem:[%s3 + $0x24] sm:$0xf]
  %v303 = vld [vmem:[%s3 + $0x28] sm:$0xf]
  %v304 = vld [vmem:[%s3 + $0x2c] sm:$0xf]
  %v305 = vld [vmem:[%s3 + $0x30] sm:$0xf]
  %v306 = vld [vmem:[%s3 + $0x34] sm:$0xf]
  %v307 = vld [vmem:[%s3 + $0x38] sm:$0xf]
  %v308 = vld [vmem:[%s3 + $0x3c] sm:$0xf]
  %v309 = vld [vmem:[%s3 + $0x40] sm:$0xf]
  %v310 = vld [vmem:[%s3 + $0x44] sm:$0xf]
  %v311 = vld [vmem:[%s3 + $0x48] sm:$0xf]
  %v312 = vld [vmem:[%s3 + $0x4c] sm:$0xf]
  %v313 = vld [vmem:[%s3 + $0x50] sm:$0xf]
  %v314 = vld [vmem:[%s3 + $0x54] sm:$0xf]
  %v315 = vld [vmem:[%s3 + $0x58] sm:$0xf]
  %v316 = vld [vmem:[%s3 + $0x5c] sm:$0xf]
  %v317 = vld [vmem:[%s3 + $0x60] sm:$0xf]
  %v318 = vld [vmem:[%s3 + $0x64] sm:$0xf]
  %v319 = vld [vmem:[%s3 + $0x68] sm:$0xf]
  %v320 = vld [vmem:[%s3 + $0x6c] sm:$0xf]
  %v321 = vld [vmem:[%s3 + $0x70] sm:$0xf]
  %v322 = vld [vmem:[%s3 + $0x74] sm:$0xf]
  %v323 = vld [vmem:[%s3 + $0x78] sm:$0xf]
  %v324 = vld [vmem:[%s3 + $0x7c] sm:$0xf]
  %v325 = vld [vmem:[%s3 + $0x80] sm:$0xf]
  %v326 = vld [vmem:[%s3 + $0x84] sm:$0xf]
  %v327 = vld [vmem:[%s3 + $0x88] sm:$0xf]
  %v328 = vld [vmem:[%s3 + $0x8c] sm:$0xf]
  %v329 = vld [vmem:[%s3 + $0x90] sm:$0xf]
  %v330 = vld [vmem:[%s3 + $0x94] sm:$0xf]
  %v331 = vld [vmem:[%s3 + $0x98] sm:$0xf]
  %v332 = vld [vmem:[%s3 + $0x9c] sm:$0xf]
  %v333 = vld [vmem:[%s3 + $0xa0] sm:$0xf]
  %v334 = vld [vmem:[%s3 + $0xa4] sm:$0xf]
  %v335 = vld [vmem:[%s3 + $0xa8] sm:$0xf]
  %v336 = vld [vmem:[%s3 + $0xac] sm:$0xf]
  %v337 = vld [vmem:[%s3 + $0xb0] sm:$0xf]
  %v338 = vld [vmem:[%s3 + $0xb4] sm:$0xf]
  %v339 = vld [vmem:[%s3 + $0xb8] sm:$0xf]
  %v340 = vld [vmem:[%s3 + $0xbc] sm:$0xf]
  %v341 = vld [vmem:[%s3 + $0xc0] sm:$0xf]
  %v342 = vld [vmem:[%s3 + $0xc4] sm:$0xf]
  %v343 = vld [vmem:[%s3 + $0xc8] sm:$0xf]
  %v344 = vld [vmem:[%s3 + $0xcc] sm:$0xf]
  %v345 = vld [vmem:[%s3 + $0xd0] sm:$0xf]
  %v346 = vld [vmem:[%s3 + $0xd4] sm:$0xf]
  %v347 = vld [vmem:[%s3 + $0xd8] sm:$0xf]
  %v348 = vld [vmem:[%s3 + $0xdc] sm:$0xf]
  %v349 = vld [vmem:[%s3 + $0xe0] sm:$0xf]
  %v350 = vld [vmem:[%s3 + $0xe4] sm:$0xf]
  %v351 = vld [vmem:[%s3 + $0xe8] sm:$0xf]
  %v352 = vld [vmem:[%s3 + $0xec] sm:$0xf]
  %v353 = vld [vmem:[%s3 + $0xf0] sm:$0xf]
  %v354 = vld [vmem:[%s3 + $0xf4] sm:$0xf]
  %v355 = vld [vmem:[%s3 + $0xf8] sm:$0xf]
  %v356 = vld [vmem:[%s3 + $0xfc] sm:$0xf]
  %v357 = vunpack.c.l.bf16 %v293
  %v358 = vunpack.c.l.bf16 %v294
  %v359 = vunpack.c.l.bf16 %v295
  %v360 = vunpack.c.l.bf16 %v296
  %v361 = vunpack.c.l.bf16 %v297
  %v362 = vunpack.c.l.bf16 %v298
  %v363 = vunpack.c.l.bf16 %v299
  %v364 = vunpack.c.l.bf16 %v300
  %v365 = vunpack.c.l.bf16 %v301
  %v366 = vunpack.c.l.bf16 %v302
  %v367 = vunpack.c.l.bf16 %v303
  %v368 = vunpack.c.l.bf16 %v304
  %v369 = vunpack.c.l.bf16 %v305
  %v370 = vunpack.c.l.bf16 %v306
  %v371 = vunpack.c.l.bf16 %v307
  %v372 = vunpack.c.l.bf16 %v308
  %v373 = vunpack.c.l.bf16 %v309
  %v374 = vunpack.c.l.bf16 %v310
  %v375 = vunpack.c.l.bf16 %v311
  %v376 = vunpack.c.l.bf16 %v312
  %v377 = vunpack.c.l.bf16 %v313
  %v378 = vunpack.c.l.bf16 %v314
  %v379 = vunpack.c.l.bf16 %v315
  %v380 = vunpack.c.l.bf16 %v316
  %v381 = vunpack.c.l.bf16 %v317
  %v382 = vunpack.c.l.bf16 %v318
  %v383 = vunpack.c.l.bf16 %v319
  %v384 = vunpack.c.l.bf16 %v320
  %v385 = vunpack.c.l.bf16 %v321
  %v386 = vunpack.c.l.bf16 %v322
  %v387 = vunpack.c.l.bf16 %v323
  %v388 = vunpack.c.l.bf16 %v324
  %v389 = vunpack.c.l.bf16 %v325
  %v390 = vunpack.c.l.bf16 %v326
  %v391 = vunpack.c.l.bf16 %v327
  %v392 = vunpack.c.l.bf16 %v328
  %v393 = vunpack.c.l.bf16 %v329
  %v394 = vunpack.c.l.bf16 %v330
  %v395 = vunpack.c.l.bf16 %v331
  %v396 = vunpack.c.l.bf16 %v332
  %v397 = vunpack.c.l.bf16 %v333
  %v398 = vunpack.c.l.bf16 %v334
  %v399 = vunpack.c.l.bf16 %v335
  %v400 = vunpack.c.l.bf16 %v336
  %v401 = vunpack.c.l.bf16 %v337
  %v402 = vunpack.c.l.bf16 %v338
  %v403 = vunpack.c.l.bf16 %v339
  %v404 = vunpack.c.l.bf16 %v340
  %v405 = vunpack.c.l.bf16 %v341
  %v406 = vunpack.c.l.bf16 %v342
  %v407 = vunpack.c.l.bf16 %v343
  %v408 = vunpack.c.l.bf16 %v344
  %v409 = vunpack.c.l.bf16 %v345
  %v410 = vunpack.c.l.bf16 %v346
  %v411 = vunpack.c.l.bf16 %v347
  %v412 = vunpack.c.l.bf16 %v348
  %v413 = vunpack.c.l.bf16 %v349
  %v414 = vunpack.c.l.bf16 %v350
  %v415 = vunpack.c.l.bf16 %v351
  %v416 = vunpack.c.l.bf16 %v352
  %v417 = vunpack.c.l.bf16 %v353
  %v418 = vunpack.c.l.bf16 %v354
  %v419 = vunpack.c.l.bf16 %v355
  %v420 = vunpack.c.l.bf16 %v356
  %v421 = vld [vmem:[%s4] sm:$0x1]
  %v423 = vlaneseq
  %v424 = vshrl.u32 %v423, 7
  %v425 = vsub.s32 0, %v424
  %v426 = vrot.slane %v421, %v425
  %v428 = vmul.f32 %v357, %v426
  %v429 = vmul.f32 %v358, %v426
  %v430 = vmul.f32 %v359, %v426
  %v431 = vmul.f32 %v360, %v426
  %v432 = vmul.f32 %v361, %v426
  %v433 = vmul.f32 %v362, %v426
  %v434 = vmul.f32 %v363, %v426
  %v435 = vmul.f32 %v364, %v426
  %v436 = vmul.f32 %v365, %v426
  %v437 = vmul.f32 %v366, %v426
  %v438 = vmul.f32 %v367, %v426
  %v439 = vmul.f32 %v368, %v426
  %v440 = vmul.f32 %v369, %v426
  %v441 = vmul.f32 %v370, %v426
  %v442 = vmul.f32 %v371, %v426
  %v443 = vmul.f32 %v372, %v426
  %v444 = vmul.f32 %v373, %v426
  %v445 = vmul.f32 %v374, %v426
  %v446 = vmul.f32 %v375, %v426
  %v447 = vmul.f32 %v376, %v426
  %v448 = vmul.f32 %v377, %v426
  %v449 = vmul.f32 %v378, %v426
  %v450 = vmul.f32 %v379, %v426
  %v451 = vmul.f32 %v380, %v426
  %v452 = vmul.f32 %v381, %v426
  %v453 = vmul.f32 %v382, %v426
  %v454 = vmul.f32 %v383, %v426
  %v455 = vmul.f32 %v384, %v426
  %v456 = vmul.f32 %v385, %v426
  %v457 = vmul.f32 %v386, %v426
  %v458 = vmul.f32 %v387, %v426
  %v459 = vmul.f32 %v388, %v426
  %v460 = vmul.f32 %v389, %v426
  %v461 = vmul.f32 %v390, %v426
  %v462 = vmul.f32 %v391, %v426
  %v463 = vmul.f32 %v392, %v426
  %v464 = vmul.f32 %v393, %v426
  %v465 = vmul.f32 %v394, %v426
  %v466 = vmul.f32 %v395, %v426
  %v467 = vmul.f32 %v396, %v426
  %v468 = vmul.f32 %v397, %v426
  %v469 = vmul.f32 %v398, %v426
  %v470 = vmul.f32 %v399, %v426
  %v471 = vmul.f32 %v400, %v426
  %v472 = vmul.f32 %v401, %v426
  %v473 = vmul.f32 %v402, %v426
  %v474 = vmul.f32 %v403, %v426
  %v475 = vmul.f32 %v404, %v426
  %v476 = vmul.f32 %v405, %v426
  %v477 = vmul.f32 %v406, %v426
  %v478 = vmul.f32 %v407, %v426
  %v479 = vmul.f32 %v408, %v426
  %v480 = vmul.f32 %v409, %v426
  %v481 = vmul.f32 %v410, %v426
  %v482 = vmul.f32 %v411, %v426
  %v483 = vmul.f32 %v412, %v426
  %v484 = vmul.f32 %v413, %v426
  %v485 = vmul.f32 %v414, %v426
  %v486 = vmul.f32 %v415, %v426
  %v487 = vmul.f32 %v416, %v426
  %v488 = vmul.f32 %v417, %v426
  %v489 = vmul.f32 %v418, %v426
  %v490 = vmul.f32 %v419, %v426
  %v491 = vmul.f32 %v420, %v426
  %v492 = vld [vmem:[%s5] sm:$0x1]
  %v494 = vlaneseq
  %v495 = vshrl.u32 %v494, 7
  %v496 = vsub.s32 0, %v495
  %v497 = vrot.slane %v492, %v496
  %v499 = vadd.f32 %v428, %v497
  %v500 = vadd.f32 %v429, %v497
  %v501 = vadd.f32 %v430, %v497
  %v502 = vadd.f32 %v431, %v497
  %v503 = vadd.f32 %v432, %v497
  %v504 = vadd.f32 %v433, %v497
  %v505 = vadd.f32 %v434, %v497
  %v506 = vadd.f32 %v435, %v497
  %v507 = vadd.f32 %v436, %v497
  %v508 = vadd.f32 %v437, %v497
  %v509 = vadd.f32 %v438, %v497
  %v510 = vadd.f32 %v439, %v497
  %v511 = vadd.f32 %v440, %v497
  %v512 = vadd.f32 %v441, %v497
  %v513 = vadd.f32 %v442, %v497
  %v514 = vadd.f32 %v443, %v497
  %v515 = vadd.f32 %v444, %v497
  %v516 = vadd.f32 %v445, %v497
  %v517 = vadd.f32 %v446, %v497
  %v518 = vadd.f32 %v447, %v497
  %v519 = vadd.f32 %v448, %v497
  %v520 = vadd.f32 %v449, %v497
  %v521 = vadd.f32 %v450, %v497
  %v522 = vadd.f32 %v451, %v497
  %v523 = vadd.f32 %v452, %v497
  %v524 = vadd.f32 %v453, %v497
  %v525 = vadd.f32 %v454, %v497
  %v526 = vadd.f32 %v455, %v497
  %v527 = vadd.f32 %v456, %v497
  %v528 = vadd.f32 %v457, %v497
  %v529 = vadd.f32 %v458, %v497
  %v530 = vadd.f32 %v459, %v497
  %v531 = vadd.f32 %v460, %v497
  %v532 = vadd.f32 %v461, %v497
  %v533 = vadd.f32 %v462, %v497
  %v534 = vadd.f32 %v463, %v497
  %v535 = vadd.f32 %v464, %v497
  %v536 = vadd.f32 %v465, %v497
  %v537 = vadd.f32 %v466, %v497
  %v538 = vadd.f32 %v467, %v497
  %v539 = vadd.f32 %v468, %v497
  %v540 = vadd.f32 %v469, %v497
  %v541 = vadd.f32 %v470, %v497
  %v542 = vadd.f32 %v471, %v497
  %v543 = vadd.f32 %v472, %v497
  %v544 = vadd.f32 %v473, %v497
  %v545 = vadd.f32 %v474, %v497
  %v546 = vadd.f32 %v475, %v497
  %v547 = vadd.f32 %v476, %v497
  %v548 = vadd.f32 %v477, %v497
  %v549 = vadd.f32 %v478, %v497
  %v550 = vadd.f32 %v479, %v497
  %v551 = vadd.f32 %v480, %v497
  %v552 = vadd.f32 %v481, %v497
  %v553 = vadd.f32 %v482, %v497
  %v554 = vadd.f32 %v483, %v497
  %v555 = vadd.f32 %v484, %v497
  %v556 = vadd.f32 %v485, %v497
  %v557 = vadd.f32 %v486, %v497
  %v558 = vadd.f32 %v487, %v497
  %v559 = vadd.f32 %v488, %v497
  %v560 = vadd.f32 %v489, %v497
  %v561 = vadd.f32 %v490, %v497
  %v562 = vadd.f32 %v491, %v497
  %v563 = vadd.f32 %v229, %v499
  %v564 = vadd.f32 %v230, %v500
  %v565 = vadd.f32 %v231, %v501
  %v566 = vadd.f32 %v232, %v502
  %v567 = vadd.f32 %v233, %v503
  %v568 = vadd.f32 %v234, %v504
  %v569 = vadd.f32 %v235, %v505
  %v570 = vadd.f32 %v236, %v506
  %v571 = vadd.f32 %v237, %v507
  %v572 = vadd.f32 %v238, %v508
  %v573 = vadd.f32 %v239, %v509
  %v574 = vadd.f32 %v240, %v510
  %v575 = vadd.f32 %v241, %v511
  %v576 = vadd.f32 %v242, %v512
  %v577 = vadd.f32 %v243, %v513
  %v578 = vadd.f32 %v244, %v514
  %v579 = vadd.f32 %v245, %v515
  %v580 = vadd.f32 %v246, %v516
  %v581 = vadd.f32 %v247, %v517
  %v582 = vadd.f32 %v248, %v518
  %v583 = vadd.f32 %v249, %v519
  %v584 = vadd.f32 %v250, %v520
  %v585 = vadd.f32 %v251, %v521
  %v586 = vadd.f32 %v252, %v522
  %v587 = vadd.f32 %v253, %v523
  %v588 = vadd.f32 %v254, %v524
  %v589 = vadd.f32 %v255, %v525
  %v590 = vadd.f32 %v256, %v526
  %v591 = vadd.f32 %v257, %v527
  %v592 = vadd.f32 %v258, %v528
  %v593 = vadd.f32 %v259, %v529
  %v594 = vadd.f32 %v260, %v530
  %v595 = vadd.f32 %v261, %v531
  %v596 = vadd.f32 %v262, %v532
  %v597 = vadd.f32 %v263, %v533
  %v598 = vadd.f32 %v264, %v534
  %v599 = vadd.f32 %v265, %v535
  %v600 = vadd.f32 %v266, %v536
  %v601 = vadd.f32 %v267, %v537
  %v602 = vadd.f32 %v268, %v538
  %v603 = vadd.f32 %v269, %v539
  %v604 = vadd.f32 %v270, %v540
  %v605 = vadd.f32 %v271, %v541
  %v606 = vadd.f32 %v272, %v542
  %v607 = vadd.f32 %v273, %v543
  %v608 = vadd.f32 %v274, %v544
  %v609 = vadd.f32 %v275, %v545
  %v610 = vadd.f32 %v276, %v546
  %v611 = vadd.f32 %v277, %v547
  %v612 = vadd.f32 %v278, %v548
  %v613 = vadd.f32 %v279, %v549
  %v614 = vadd.f32 %v280, %v550
  %v615 = vadd.f32 %v281, %v551
  %v616 = vadd.f32 %v282, %v552
  %v617 = vadd.f32 %v283, %v553
  %v618 = vadd.f32 %v284, %v554
  %v619 = vadd.f32 %v285, %v555
  %v620 = vadd.f32 %v286, %v556
  %v621 = vadd.f32 %v287, %v557
  %v622 = vadd.f32 %v288, %v558
  %v623 = vadd.f32 %v289, %v559
  %v624 = vadd.f32 %v290, %v560
  %v625 = vadd.f32 %v291, %v561
  %v626 = vadd.f32 %v292, %v562
  %v627 = vmax.f32 %v563, 0.0
  %v628 = vmax.f32 %v564, 0.0
  %v629 = vmax.f32 %v565, 0.0
  %v630 = vmax.f32 %v566, 0.0
  %v631 = vmax.f32 %v567, 0.0
  %v632 = vmax.f32 %v568, 0.0
  %v633 = vmax.f32 %v569, 0.0
  %v634 = vmax.f32 %v570, 0.0
  %v635 = vmax.f32 %v571, 0.0
  %v636 = vmax.f32 %v572, 0.0
  %v637 = vmax.f32 %v573, 0.0
  %v638 = vmax.f32 %v574, 0.0
  %v639 = vmax.f32 %v575, 0.0
  %v640 = vmax.f32 %v576, 0.0
  %v641 = vmax.f32 %v577, 0.0
  %v642 = vmax.f32 %v578, 0.0
  %v643 = vmax.f32 %v579, 0.0
  %v644 = vmax.f32 %v580, 0.0
  %v645 = vmax.f32 %v581, 0.0
  %v646 = vmax.f32 %v582, 0.0
  %v647 = vmax.f32 %v583, 0.0
  %v648 = vmax.f32 %v584, 0.0
  %v649 = vmax.f32 %v585, 0.0
  %v650 = vmax.f32 %v586, 0.0
  %v651 = vmax.f32 %v587, 0.0
  %v652 = vmax.f32 %v588, 0.0
  %v653 = vmax.f32 %v589, 0.0
  %v654 = vmax.f32 %v590, 0.0
  %v655 = vmax.f32 %v591, 0.0
  %v656 = vmax.f32 %v592, 0.0
  %v657 = vmax.f32 %v593, 0.0
  %v658 = vmax.f32 %v594, 0.0
  %v659 = vmax.f32 %v595, 0.0
  %v660 = vmax.f32 %v596, 0.0
  %v661 = vmax.f32 %v597, 0.0
  %v662 = vmax.f32 %v598, 0.0
  %v663 = vmax.f32 %v599, 0.0
  %v664 = vmax.f32 %v600, 0.0
  %v665 = vmax.f32 %v601, 0.0
  %v666 = vmax.f32 %v602, 0.0
  %v667 = vmax.f32 %v603, 0.0
  %v668 = vmax.f32 %v604, 0.0
  %v669 = vmax.f32 %v605, 0.0
  %v670 = vmax.f32 %v606, 0.0
  %v671 = vmax.f32 %v607, 0.0
  %v672 = vmax.f32 %v608, 0.0
  %v673 = vmax.f32 %v609, 0.0
  %v674 = vmax.f32 %v610, 0.0
  %v675 = vmax.f32 %v611, 0.0
  %v676 = vmax.f32 %v612, 0.0
  %v677 = vmax.f32 %v613, 0.0
  %v678 = vmax.f32 %v614, 0.0
  %v679 = vmax.f32 %v615, 0.0
  %v680 = vmax.f32 %v616, 0.0
  %v681 = vmax.f32 %v617, 0.0
  %v682 = vmax.f32 %v618, 0.0
  %v683 = vmax.f32 %v619, 0.0
  %v684 = vmax.f32 %v620, 0.0
  %v685 = vmax.f32 %v621, 0.0
  %v686 = vmax.f32 %v622, 0.0
  %v687 = vmax.f32 %v623, 0.0
  %v688 = vmax.f32 %v624, 0.0
  %v689 = vmax.f32 %v625, 0.0
  %v690 = vmax.f32 %v626, 0.0
  %691 = vst [vmem:[%s6] sm:$0xff] %v627
  %692 = vst [vmem:[%s6 + $0x8] sm:$0xff] %v628
  %693 = vst [vmem:[%s6 + $0x10] sm:$0xff] %v629
  %694 = vst [vmem:[%s6 + $0x18] sm:$0xff] %v630
  %695 = vst [vmem:[%s6 + $0x20] sm:$0xff] %v631
  %696 = vst [vmem:[%s6 + $0x28] sm:$0xff] %v632
  %697 = vst [vmem:[%s6 + $0x30] sm:$0xff] %v633
  %698 = vst [vmem:[%s6 + $0x38] sm:$0xff] %v634
  %699 = vst [vmem:[%s6 + $0x40] sm:$0xff] %v635
  %700 = vst [vmem:[%s6 + $0x48] sm:$0xff] %v636
  %701 = vst [vmem:[%s6 + $0x50] sm:$0xff] %v637
  %702 = vst [vmem:[%s6 + $0x58] sm:$0xff] %v638
  %703 = vst [vmem:[%s6 + $0x60] sm:$0xff] %v639
  %704 = vst [vmem:[%s6 + $0x68] sm:$0xff] %v640
  %705 = vst [vmem:[%s6 + $0x70] sm:$0xff] %v641
  %706 = vst [vmem:[%s6 + $0x78] sm:$0xff] %v642
  %707 = vst [vmem:[%s6 + $0x80] sm:$0xff] %v643
  %708 = vst [vmem:[%s6 + $0x88] sm:$0xff] %v644
  %709 = vst [vmem:[%s6 + $0x90] sm:$0xff] %v645
  %710 = vst [vmem:[%s6 + $0x98] sm:$0xff] %v646
  %711 = vst [vmem:[%s6 + $0xa0] sm:$0xff] %v647
  %712 = vst [vmem:[%s6 + $0xa8] sm:$0xff] %v648
  %713 = vst [vmem:[%s6 + $0xb0] sm:$0xff] %v649
  %714 = vst [vmem:[%s6 + $0xb8] sm:$0xff] %v650
  %715 = vst [vmem:[%s6 + $0xc0] sm:$0xff] %v651
  %716 = vst [vmem:[%s6 + $0xc8] sm:$0xff] %v652
  %717 = vst [vmem:[%s6 + $0xd0] sm:$0xff] %v653
  %718 = vst [vmem:[%s6 + $0xd8] sm:$0xff] %v654
  %719 = vst [vmem:[%s6 + $0xe0] sm:$0xff] %v655
  %720 = vst [vmem:[%s6 + $0xe8] sm:$0xff] %v656
  %721 = vst [vmem:[%s6 + $0xf0] sm:$0xff] %v657
  %722 = vst [vmem:[%s6 + $0xf8] sm:$0xff] %v658
  %723 = vst [vmem:[%s6 + $0x100] sm:$0xff] %v659
  %724 = vst [vmem:[%s6 + $0x108] sm:$0xff] %v660
  %725 = vst [vmem:[%s6 + $0x110] sm:$0xff] %v661
  %726 = vst [vmem:[%s6 + $0x118] sm:$0xff] %v662
  %727 = vst [vmem:[%s6 + $0x120] sm:$0xff] %v663
  %728 = vst [vmem:[%s6 + $0x128] sm:$0xff] %v664
  %729 = vst [vmem:[%s6 + $0x130] sm:$0xff] %v665
  %730 = vst [vmem:[%s6 + $0x138] sm:$0xff] %v666
  %731 = vst [vmem:[%s6 + $0x140] sm:$0xff] %v667
  %732 = vst [vmem:[%s6 + $0x148] sm:$0xff] %v668
  %733 = vst [vmem:[%s6 + $0x150] sm:$0xff] %v669
  %734 = vst [vmem:[%s6 + $0x158] sm:$0xff] %v670
  %735 = vst [vmem:[%s6 + $0x160] sm:$0xff] %v671
  %736 = vst [vmem:[%s6 + $0x168] sm:$0xff] %v672
  %737 = vst [vmem:[%s6 + $0x170] sm:$0xff] %v673
  %738 = vst [vmem:[%s6 + $0x178] sm:$0xff] %v674
  %739 = vst [vmem:[%s6 + $0x180] sm:$0xff] %v675
  %740 = vst [vmem:[%s6 + $0x188] sm:$0xff] %v676
  %741 = vst [vmem:[%s6 + $0x190] sm:$0xff] %v677
  %742 = vst [vmem:[%s6 + $0x198] sm:$0xff] %v678
  %743 = vst [vmem:[%s6 + $0x1a0] sm:$0xff] %v679
  %744 = vst [vmem:[%s6 + $0x1a8] sm:$0xff] %v680
  %745 = vst [vmem:[%s6 + $0x1b0] sm:$0xff] %v681
  %746 = vst [vmem:[%s6 + $0x1b8] sm:$0xff] %v682
  %747 = vst [vmem:[%s6 + $0x1c0] sm:$0xff] %v683
  %748 = vst [vmem:[%s6 + $0x1c8] sm:$0xff] %v684
  %749 = vst [vmem:[%s6 + $0x1d0] sm:$0xff] %v685
  %750 = vst [vmem:[%s6 + $0x1d8] sm:$0xff] %v686
  %751 = vst [vmem:[%s6 + $0x1e0] sm:$0xff] %v687
  %752 = vst [vmem:[%s6 + $0x1e8] sm:$0xff] %v688
  %753 = vst [vmem:[%s6 + $0x1f0] sm:$0xff] %v689
  %754 = vst [vmem:[%s6 + $0x1f8] sm:$0xff] %v690
  // Predicated region
  $region26: #{basic_block_forward.9} parent=0 // pred_check
    _
  $region27: #{basic_block_forward.9} parent=0 // pred_check_branch
    %756 = sbr.rel (0) target = $region29
  $region28: #{basic_block_forward.9} parent=0 // pred_region
    _
  $region29: #{basic_block_forward.9} parent=0 // pred_fallthru
    _
  // Predicated region
  $region30: #{basic_block_forward.9} parent=0 // pred_check
    _
  $region31: #{basic_block_forward.9} parent=0 // pred_check_branch
    %758 = sbr.rel (0) target = $region33
  $region32: #{basic_block_forward.9} parent=0 // pred_region
    _
  $region33: #{basic_block_forward.9} parent=0 // pred_fallthru
    _

</llo_original>
